<compile_context>
chip_gen: v7x
topology: tpu7x:2x2x1
jax: 0.10.0
libtpu: 0.0.40
codegen_flags: <defaults>
</compile_context>

<pallas_src>
import math

import numpy as np
import jax
import jax.numpy as jnp
from jax import lax
from jax.experimental import pallas as pl
from jax.experimental.pallas import tpu as pltpu

# ----------------------------------------------------------------------------
# Model hyper-parameters (small, consistent with the reference module defaults)
# ----------------------------------------------------------------------------
NUM_ENT = 20
NUM_REL = 6
NUM_BASES = 3                 # < NUM_REL so the w_comp path is exercised
IN_DIM = 32
K_W = 5
K_H = 5
KER_SZ = 5
EMBED_DIM = K_W * K_H         # layer_size[-1]; must equal k_w*k_h for ConvE reshape
NUM_FILT = 8
E_PER = 4                     # fixed in-degree of the synthetic graph (dense mailbox)
BATCH = 2
FLAT_SZ_H = 2 * K_W - KER_SZ + 1          # 6
FLAT_SZ_W = K_H - KER_SZ + 1              # 1
FLAT_SZ = FLAT_SZ_H * FLAT_SZ_W * NUM_FILT  # 48

_BN_EPS = 1e-5
_BN_SCALE = 1.0 / math.sqrt(1.0 + _BN_EPS)   # eval-mode BatchNorm: x / sqrt(1+eps)

# Padded, lane-dense TPU shapes (last dim multiple of 128, 2nd-to-last multiple of 8)
N_P = 128      # entities      20 -> 128   (lane dim of the score output)
D_P = 128      # embed/out dim 25 -> 128
IN_P = 128     # input dim     32 -> 128
R_P = 8        # relations      6 -> 8     (+ loop_rel in row NUM_REL)
NB_P = 8       # bases          3 -> 8
B_P = 8        # batch          2 -> 8
F_P = 128      # conv flat size 48 -> 128

_CPARAMS = pltpu.CompilerParams(dimension_semantics=("arbitrary",))


# ----------------------------------------------------------------------------
# The single fused Pallas kernel (everything resident in VMEM, one grid step)
# ----------------------------------------------------------------------------
def _fused_kernel(n_ref, relcoef_ref, basis_ref, loop_ref, wcomp_ref, ratt_ref,
                  kvqs_wt_ref, kvqs_b_ref, wr_wt_ref, wr_b_ref, alpha_ref,
                  g_src_ref, g_et_ref, s_sel_ref, r_sel_ref,
                  m_sub_ref, m_rel_ref, fc_wt_ref, fc_b_ref, ebias_ref, o_ref):
    f32 = jnp.float32

    # ---------------- CompGCN encoder ----------------
    # relation features from basis decomposition: r_feats = weights @ basis
    r_feats = jnp.dot(relcoef_ref[...], basis_ref[...], preferred_element_type=f32)  # (R_P, IN_P)
    r_cat = r_feats + loop_ref[...]                 # row NUM_REL carries loop_rel
    # relation attention weights: relations_weights = w_comp @ relation_att
    rel_w = jnp.dot(wcomp_ref[...], ratt_ref[...], preferred_element_type=f32)       # (R_P, D_P)

    # fused [K | V | Q | W_S] projections of node features: one MXU pass
    proj = (jnp.dot(n_ref[...], kvqs_wt_ref[...], preferred_element_type=f32)
            + kvqs_b_ref[...])                      # (N_P, 4*D_P)
    q_all = proj[:, 2 * D_P:3 * D_P]                # destination queries   (N_P, D_P)
    ws = proj[:, 3 * D_P:4 * D_P]                   # W_S(h)                (N_P, D_P)

    # mailbox gathers as one-hot matmuls (per-destination dense mailbox, E_PER edges)
    kv_gath = jnp.dot(g_src_ref[...], proj[:, 0:2 * D_P],
                      preferred_element_type=f32)   # (E*N_P, 2*D_P)  [k | v] of src
    w_gath = jnp.dot(g_et_ref[...], rel_w,
                     preferred_element_type=f32)    # (E*N_P, D_P)    relation weight

    # edge attention: att = (k * w * q).sum(-1); softmax over incoming edges;
    # weighted sum of v.  Static unroll over E_PER (all (N_P, .) 2-D slabs).
    scores, vals = [], []
    for e in range(E_PER):
        k_e = kv_gath[e * N_P:(e + 1) * N_P, 0:D_P]
        v_e = kv_gath[e * N_P:(e + 1) * N_P, D_P:2 * D_P]
        w_e = w_gath[e * N_P:(e + 1) * N_P, :]
        scores.append(jnp.sum(k_e * w_e * q_all, axis=-1, keepdims=True))   # (N_P, 1)
        vals.append(v_e)
    m = scores[0]
    for e in range(1, E_PER):
        m = jnp.maximum(m, scores[e])
    ps = [jnp.exp(s - m) for s in scores]           # stable softmax (== F.softmax)
    z = ps[0]
    for e in range(1, E_PER):
        z = z + ps[e]
    acc = ps[0] * vals[0]
    for e in range(1, E_PER):
        acc = acc + ps[e] * vals[e]
    final = acc * pl.reciprocal(z, approx=True)     # (N_P, D_P)

    # alpha-gated mix (dropout identity in eval), BatchNorm (eval), tanh
    a = 1.0 / (1.0 + jnp.exp(-alpha_ref[...]))      # sigmoid(alpha), (1, D_P)
    n_out = a * ws + (1.0 - a) * final
    n_feats = jnp.tanh(n_out * _BN_SCALE)           # (N_P, D_P)

    # relation output: W_R(r_cat)
    r_out = (jnp.dot(r_cat, wr_wt_ref[...], preferred_element_type=f32)
             + wr_b_ref[...])                        # (R_P, D_P)

    # ---------------- ConvE decoder ----------------
    sub_emb = jnp.dot(s_sel_ref[...], n_feats, preferred_element_type=f32)  # (B_P, D_P)
    rel_emb = jnp.dot(r_sel_ref[...], r_out, preferred_element_type=f32)    # (B_P, D_P)

    # conv2d over the interleaved (sub, rel) 10x5 image, expressed as an exact
    # precomputed linear map; columns already follow PyTorch's NCHW flatten order.
    x = (jnp.dot(sub_emb, m_sub_ref[...], preferred_element_type=f32)
         + jnp.dot(rel_emb, m_rel_ref[...], preferred_element_type=f32))    # (B_P, F_P)
    x = x * (_BN_SCALE * _BN_SCALE)                 # bn0 (pre-conv) & bn1 (post-conv)
    x = jnp.maximum(x, 0.0)                         # relu; feature_drop identity (eval)
    x = (jnp.dot(x, fc_wt_ref[...], preferred_element_type=f32)
         + fc_b_ref[...])                           # fc; hidden_drop identity (eval)
    x = jnp.maximum(x * _BN_SCALE, 0.0)             # bn2; relu

    # scoring: relu(x) @ n_feats.T + bias, sigmoid
    logits = lax.dot_general(x, n_feats, (((1,), (1,)), ((), ())),
                             preferred_element_type=f32) + ebias_ref[...]   # (B_P, N_P)
    # exact sigmoid (keeps scores strictly inside [0, 1])
    o_ref[...] = 1.0 / (1.0 + jnp.exp(-logits))


# ----------------------------------------------------------------------------
# One-time parameter / graph preprocessing (padding, transposes, fusions)
# ----------------------------------------------------------------------------
def _pad2(x, rows, cols):
    x = jnp.asarray(x, jnp.float32)
    out = jnp.zeros((rows, cols), jnp.float32)
    return out.at[:x.shape[0], :x.shape[1]].set(x)


def prepare_inputs(params, mail_src, mail_etype):
    """Pad weights to lane-dense fp32 tiles, pre-transpose linears, fuse the four node
    projections, and turn the mailbox gathers and the ConvE conv2d into matmul operands."""
    l0 = params["layer0"]

    # fused [K | V | Q | W_S] projection (PyTorch (out,in) -> transposed, padded)
    kvqs_wt = jnp.concatenate(
        [_pad2(l0["k_w"].T, IN_P, D_P), _pad2(l0["v_w"].T, IN_P, D_P),
         _pad2(l0["q_w"].T, IN_P, D_P), _pad2(l0["ws_w"].T, IN_P, D_P)], axis=1)
    kvqs_b = jnp.concatenate(
        [_pad2(l0["k_b"][None, :], 1, D_P), _pad2(l0["v_b"][None, :], 1, D_P),
         _pad2(l0["q_b"][None, :], 1, D_P), _pad2(l0["ws_b"][None, :], 1, D_P)], axis=1)

    # one-hot gather operators for the dense per-destination mailbox
    # row e*N_P + n is one-hot at mail_src[n, e] / mail_etype[n, e]; padded rows zero.
    src_idx = jnp.full((E_PER, N_P), N_P, dtype=jnp.int32).at[:, :NUM_ENT].set(mail_src.T)
    et_idx = jnp.full((E_PER, N_P), R_P, dtype=jnp.int32).at[:, :NUM_ENT].set(mail_etype.T)
    g_src = jax.nn.one_hot(src_idx.reshape(E_PER * N_P), N_P, dtype=jnp.float32)
    g_et = jax.nn.one_hot(et_idx.reshape(E_PER * N_P), R_P, dtype=jnp.float32)

    # loop_rel occupies row NUM_REL of the padded (R_P, IN_P) relation block
    loop_pad = jnp.zeros((R_P, IN_P), jnp.float32).at[NUM_REL, :IN_DIM].set(l0["loop_rel"][0])

    # ConvE conv2d (1 in-channel, 5x5 kernel, stride 1, no pad) over the interleaved
    # (2*K_W, K_H) image is an exact linear map of (sub_emb, rel_emb):
    #   conv_flat = sub_emb @ M_sub + rel_emb @ M_rel
    # with columns in PyTorch NCHW flatten order (filt * FLAT_SZ_H + oh).
    sel_sub = np.zeros((EMBED_DIM, FLAT_SZ_H, KER_SZ, KER_SZ), np.float32)
    sel_rel = np.zeros((EMBED_DIM, FLAT_SZ_H, KER_SZ, KER_SZ), np.float32)
    for oh in range(FLAT_SZ_H):
        for i in range(KER_SZ):
            for j in range(KER_SZ):
                f = (oh + i) * K_H + j        # flat index in the (2*K_W, K_H) image
                (sel_sub if f % 2 == 0 else sel_rel)[f // 2, oh, i, j] = 1.0
    cw = params["conv_w"][:, 0]               # (NUM_FILT, KER_SZ, KER_SZ)
    m_sub = jnp.einsum("doij,fij->dfo", jnp.asarray(sel_sub), cw).reshape(
        EMBED_DIM, NUM_FILT * FLAT_SZ_H)
    m_rel = jnp.einsum("doij,fij->dfo", jnp.asarray(sel_rel), cw).reshape(
        EMBED_DIM, NUM_FILT * FLAT_SZ_H)

    return {
        "n_embds": _pad2(params["n_embds"], N_P, IN_P),
        "weights": _pad2(params["weights"], R_P, NB_P),
        "basis": _pad2(params["basis"], NB_P, IN_P),
        "loop_pad": loop_pad,
        "w_comp": _pad2(l0["w_comp"], R_P, NB_P),
        "relation_att": _pad2(l0["relation_att"], NB_P, D_P),
        "kvqs_wt": kvqs_wt,
        "kvqs_b": kvqs_b,
        "wr_wt": _pad2(l0["wr_w"].T, IN_P, D_P),
        "wr_b": _pad2(l0["wr_b"][None, :], 1, D_P),
        "alpha": jnp.full((1, D_P), l0["alpha"][0], dtype=jnp.float32),
        "g_src": g_src,
        "g_et": g_et,
        "m_sub": _pad2(m_sub, D_P, F_P),
        "m_rel": _pad2(m_rel, D_P, F_P),
        "fc_wt": _pad2(params["fc_w"].T, F_P, D_P),
        "fc_b": _pad2(params["fc_b"][None, :], 1, D_P),
        "ent_bias": _pad2(params["ent_bias"][None, :], 1, N_P),
    }


# ----------------------------------------------------------------------------
# Forward: one pallas_call; only index one-hots for (sub, rel) are built outside
# ----------------------------------------------------------------------------
def compgcn_conve_forward(prep, sub, rel):
    B = sub.shape[0]
    sub_pad = jnp.full((B_P,), N_P, dtype=jnp.int32).at[:B].set(sub)
    rel_pad = jnp.full((B_P,), R_P, dtype=jnp.int32).at[:B].set(rel)
    s_sel = jax.nn.one_hot(sub_pad, N_P, dtype=jnp.float32)     # (B_P, N_P)
    r_sel = jax.nn.one_hot(rel_pad, R_P, dtype=jnp.float32)     # (B_P, R_P)

    args = (prep["n_embds"], prep["weights"], prep["basis"], prep["loop_pad"],
            prep["w_comp"], prep["relation_att"], prep["kvqs_wt"], prep["kvqs_b"],
            prep["wr_wt"], prep["wr_b"], prep["alpha"], prep["g_src"], prep["g_et"],
            s_sel, r_sel, prep["m_sub"], prep["m_rel"], prep["fc_wt"], prep["fc_b"],
            prep["ent_bias"])

    score_p = pl.pallas_call(
        _fused_kernel,
        out_shape=jax.ShapeDtypeStruct((B_P, N_P), jnp.float32),
        grid=(1,),
        in_specs=[pl.BlockSpec(a.shape, lambda i: (0, 0)) for a in args],
        out_specs=pl.BlockSpec((B_P, N_P), lambda i: (0, 0)),
        compiler_params=_CPARAMS,
    )(*args)
    return score_p[:B, :NUM_ENT]


# ----------------------------------------------------------------------------
# Deterministic parameter init (PyTorch layouts; identical to the reference setup)
# ----------------------------------------------------------------------------
def _xavier_normal(key, shape):
    std = math.sqrt(2.0 / (shape[0] + shape[1]))
    return std * jax.random.normal(key, shape, dtype=jnp.float32)


def _linear_init(key, out_dim, in_dim):
    kw, kb = jax.random.split(key)
    bound = 1.0 / math.sqrt(in_dim)
    w = jax.random.uniform(kw, (out_dim, in_dim), jnp.float32, -bound, bound)
    b = jax.random.uniform(kb, (out_dim,), jnp.float32, -bound, bound)
    return w, b


def build_params(key):
    keys = jax.random.split(key, 16)
    ws_w, ws_b = _linear_init(keys[0], EMBED_DIM, IN_DIM)
    k_w, k_b = _linear_init(keys[1], EMBED_DIM, IN_DIM)
    q_w, q_b = _linear_init(keys[2], EMBED_DIM, IN_DIM)
    v_w, v_b = _linear_init(keys[3], EMBED_DIM, IN_DIM)
    wr_w, wr_b = _linear_init(keys[4], EMBED_DIM, IN_DIM)
    layer0 = {
        "ws_w": ws_w, "ws_b": ws_b,
        "k_w": k_w, "k_b": k_b,
        "q_w": q_w, "q_b": q_b,
        "v_w": v_w, "v_b": v_b,
        "wr_w": wr_w, "wr_b": wr_b,
        "relation_att": _xavier_normal(keys[5], (NUM_BASES, EMBED_DIM)),
        "w_comp": _xavier_normal(keys[6], (NUM_REL, NUM_BASES)),
        "loop_rel": _xavier_normal(keys[7], (1, IN_DIM)),
        "alpha": jnp.ones((1,), jnp.float32),
    }
    fc_w, fc_b = _linear_init(keys[8], EMBED_DIM, FLAT_SZ)
    conv_bound = 1.0 / math.sqrt(1 * KER_SZ * KER_SZ)
    params = {
        "layer0": layer0,
        "basis": _xavier_normal(keys[9], (NUM_BASES, IN_DIM)),
        "weights": _xavier_normal(keys[10], (NUM_REL, NUM_BASES)),
        "n_embds": _xavier_normal(keys[11], (NUM_ENT, IN_DIM)),
        "conv_w": jax.random.uniform(keys[12], (NUM_FILT, 1, KER_SZ, KER_SZ),
                                     jnp.float32, -conv_bound, conv_bound),
        "fc_w": fc_w, "fc_b": fc_b,
        "ent_bias": jnp.zeros((NUM_ENT,), jnp.float32),
    }
    return params


# ----------------------------------------------------------------------------
# Main
# ----------------------------------------------------------------------------
if __name__ == "__main__":
    key = jax.random.PRNGKey(0)
    params = build_params(key)

    # Synthetic graph with fixed in-degree E_PER (dense mailbox representation).
    mail_src = ((jnp.arange(NUM_ENT)[:, None] + jnp.arange(1, E_PER + 1)[None, :])
                % NUM_ENT).astype(jnp.int32)                           # (N, E)
    mail_etype = ((jnp.arange(NUM_ENT)[:, None] * E_PER + jnp.arange(E_PER)[None, :])
                  % NUM_REL).astype(jnp.int32)                         # (N, E)

    # One-time preprocessing (padding / transposes / conv-as-matmul / gather one-hots).
    prep = prepare_inputs(params, mail_src, mail_etype)

    sub = jnp.array([3, 11], dtype=jnp.int32)                          # (B,)
    rel = jnp.array([1, 4], dtype=jnp.int32)                           # (B,)

    fwd = jax.jit(compgcn_conve_forward)
    score = fwd(prep, sub, rel)
    score = jax.block_until_ready(score)

    assert score.shape == (BATCH, NUM_ENT)
    assert bool(jnp.all(jnp.isfinite(score)))
    assert bool(jnp.all((score >= 0.0) & (score <= 1.0)))
    print("KERNEL_OK")
</pallas_src>

<mosaic_0001>
module attributes {stable_mosaic.version = 11 : i64} {
  func.func @_fused_kernel(%arg0: i32, %arg1: memref<128x128xf32, #tpu.memory_space<vmem>>, %arg2: memref<8x8xf32, #tpu.memory_space<vmem>>, %arg3: memref<8x128xf32, #tpu.memory_space<vmem>>, %arg4: memref<8x128xf32, #tpu.memory_space<vmem>>, %arg5: memref<8x8xf32, #tpu.memory_space<vmem>>, %arg6: memref<8x128xf32, #tpu.memory_space<vmem>>, %arg7: memref<128x512xf32, #tpu.memory_space<vmem>>, %arg8: memref<1x512xf32, #tpu.memory_space<vmem>>, %arg9: memref<128x128xf32, #tpu.memory_space<vmem>>, %arg10: memref<1x128xf32, #tpu.memory_space<vmem>>, %arg11: memref<1x128xf32, #tpu.memory_space<vmem>>, %arg12: memref<512x128xf32, #tpu.memory_space<vmem>>, %arg13: memref<512x8xf32, #tpu.memory_space<vmem>>, %arg14: memref<8x128xf32, #tpu.memory_space<vmem>>, %arg15: memref<8x8xf32, #tpu.memory_space<vmem>>, %arg16: memref<128x128xf32, #tpu.memory_space<vmem>>, %arg17: memref<128x128xf32, #tpu.memory_space<vmem>>, %arg18: memref<128x128xf32, #tpu.memory_space<vmem>>, %arg19: memref<1x128xf32, #tpu.memory_space<vmem>>, %arg20: memref<1x128xf32, #tpu.memory_space<vmem>>, %arg21: memref<8x128xf32, #tpu.memory_space<vmem>>) attributes {dimension_semantics = [#tpu.dimension_semantics<arbitrary>], iteration_bounds = array<i64: 1>, scalar_prefetch = 0 : i64, scratch_operands = 0 : i64, tpu.core_type = #tpu.core_type<tc>, window_params = [{pipeline_mode = #tpu.pipeline_mode<synchronous>, transform_indices = @transform_0, window_bounds = array<i64: 128, 128>}, {pipeline_mode = #tpu.pipeline_mode<synchronous>, transform_indices = @transform_1, window_bounds = array<i64: 8, 8>}, {pipeline_mode = #tpu.pipeline_mode<synchronous>, transform_indices = @transform_2, window_bounds = array<i64: 8, 128>}, {pipeline_mode = #tpu.pipeline_mode<synchronous>, transform_indices = @transform_3, window_bounds = array<i64: 8, 128>}, {pipeline_mode = #tpu.pipeline_mode<synchronous>, transform_indices = @transform_4, window_bounds = array<i64: 8, 8>}, {pipeline_mode = #tpu.pipeline_mode<synchronous>, transform_indices = @transform_5, window_bounds = array<i64: 8, 128>}, {pipeline_mode = #tpu.pipeline_mode<synchronous>, transform_indices = @transform_6, window_bounds = array<i64: 128, 512>}, {pipeline_mode = #tpu.pipeline_mode<synchronous>, transform_indices = @transform_7, window_bounds = array<i64: 1, 512>}, {pipeline_mode = #tpu.pipeline_mode<synchronous>, transform_indices = @transform_8, window_bounds = array<i64: 128, 128>}, {pipeline_mode = #tpu.pipeline_mode<synchronous>, transform_indices = @transform_9, window_bounds = array<i64: 1, 128>}, {pipeline_mode = #tpu.pipeline_mode<synchronous>, transform_indices = @transform_10, window_bounds = array<i64: 1, 128>}, {pipeline_mode = #tpu.pipeline_mode<synchronous>, transform_indices = @transform_11, window_bounds = array<i64: 512, 128>}, {pipeline_mode = #tpu.pipeline_mode<synchronous>, transform_indices = @transform_12, window_bounds = array<i64: 512, 8>}, {pipeline_mode = #tpu.pipeline_mode<synchronous>, transform_indices = @transform_13, window_bounds = array<i64: 8, 128>}, {pipeline_mode = #tpu.pipeline_mode<synchronous>, transform_indices = @transform_14, window_bounds = array<i64: 8, 8>}, {pipeline_mode = #tpu.pipeline_mode<synchronous>, transform_indices = @transform_15, window_bounds = array<i64: 128, 128>}, {pipeline_mode = #tpu.pipeline_mode<synchronous>, transform_indices = @transform_16, window_bounds = array<i64: 128, 128>}, {pipeline_mode = #tpu.pipeline_mode<synchronous>, transform_indices = @transform_17, window_bounds = array<i64: 128, 128>}, {pipeline_mode = #tpu.pipeline_mode<synchronous>, transform_indices = @transform_18, window_bounds = array<i64: 1, 128>}, {pipeline_mode = #tpu.pipeline_mode<synchronous>, transform_indices = @transform_19, window_bounds = array<i64: 1, 128>}, {pipeline_mode = #tpu.pipeline_mode<synchronous>, transform_indices = @transform_20, window_bounds = array<i64: 8, 128>}]} {
    %c0 = arith.constant 0 : index
    %c0_0 = arith.constant 0 : index
    %0 = vector.load %arg2[%c0, %c0_0] : memref<8x8xf32, #tpu.memory_space<vmem>>, vector<8x8xf32>
    %c0_1 = arith.constant 0 : index
    %c0_2 = arith.constant 0 : index
    %1 = vector.load %arg3[%c0_1, %c0_2] : memref<8x128xf32, #tpu.memory_space<vmem>>, vector<8x128xf32>
    %cst = arith.constant dense<0.000000e+00> : vector<8x128xf32>
    %2 = tpu.matmul %0, %1, %cst {dimension_numbers = #tpu.dot_dimension_numbers<[1], [0], [0], [1], [0, 0, 1, 1], [], []>} : vector<8x8xf32>, vector<8x128xf32>, vector<8x128xf32> -> vector<8x128xf32>
    %c0_3 = arith.constant 0 : index
    %c0_4 = arith.constant 0 : index
    %3 = vector.load %arg4[%c0_3, %c0_4] : memref<8x128xf32, #tpu.memory_space<vmem>>, vector<8x128xf32>
    %4 = arith.addf %2, %3 : vector<8x128xf32>
    %c0_5 = arith.constant 0 : index
    %c0_6 = arith.constant 0 : index
    %5 = vector.load %arg5[%c0_5, %c0_6] : memref<8x8xf32, #tpu.memory_space<vmem>>, vector<8x8xf32>
    %c0_7 = arith.constant 0 : index
    %c0_8 = arith.constant 0 : index
    %6 = vector.load %arg6[%c0_7, %c0_8] : memref<8x128xf32, #tpu.memory_space<vmem>>, vector<8x128xf32>
    %cst_9 = arith.constant dense<0.000000e+00> : vector<8x128xf32>
    %7 = tpu.matmul %5, %6, %cst_9 {dimension_numbers = #tpu.dot_dimension_numbers<[1], [0], [0], [1], [0, 0, 1, 1], [], []>} : vector<8x8xf32>, vector<8x128xf32>, vector<8x128xf32> -> vector<8x128xf32>
    %c0_10 = arith.constant 0 : index
    %c0_11 = arith.constant 0 : index
    %8 = vector.load %arg1[%c0_10, %c0_11] : memref<128x128xf32, #tpu.memory_space<vmem>>, vector<128x128xf32>
    %c0_12 = arith.constant 0 : index
    %c0_13 = arith.constant 0 : index
    %9 = vector.load %arg7[%c0_12, %c0_13] : memref<128x512xf32, #tpu.memory_space<vmem>>, vector<128x512xf32>
    %cst_14 = arith.constant dense<0.000000e+00> : vector<128x512xf32>
    %10 = tpu.matmul %8, %9, %cst_14 {dimension_numbers = #tpu.dot_dimension_numbers<[1], [0], [0], [1], [0, 0, 1, 1], [], []>} : vector<128x128xf32>, vector<128x512xf32>, vector<128x512xf32> -> vector<128x512xf32>
    %c0_15 = arith.constant 0 : index
    %c0_16 = arith.constant 0 : index
    %11 = vector.load %arg8[%c0_15, %c0_16] : memref<1x512xf32, #tpu.memory_space<vmem>>, vector<1x512xf32>
    %12 = vector.broadcast %11 : vector<1x512xf32> to vector<128x512xf32>
    %13 = arith.addf %10, %12 : vector<128x512xf32>
    %14 = vector.extract_strided_slice %13 {offsets = [0, 256], sizes = [128, 128], strides = [1, 1]} : vector<128x512xf32> to vector<128x128xf32>
    %15 = vector.extract_strided_slice %13 {offsets = [0, 384], sizes = [128, 128], strides = [1, 1]} : vector<128x512xf32> to vector<128x128xf32>
    %c0_17 = arith.constant 0 : index
    %c0_18 = arith.constant 0 : index
    %16 = vector.load %arg12[%c0_17, %c0_18] : memref<512x128xf32, #tpu.memory_space<vmem>>, vector<512x128xf32>
    %17 = vector.extract_strided_slice %13 {offsets = [0, 0], sizes = [128, 256], strides = [1, 1]} : vector<128x512xf32> to vector<128x256xf32>
    %cst_19 = arith.constant dense<0.000000e+00> : vector<512x256xf32>
    %18 = tpu.matmul %16, %17, %cst_19 {dimension_numbers = #tpu.dot_dimension_numbers<[1], [0], [0], [1], [0, 0, 1, 1], [], []>} : vector<512x128xf32>, vector<128x256xf32>, vector<512x256xf32> -> vector<512x256xf32>
    %c0_20 = arith.constant 0 : index
    %c0_21 = arith.constant 0 : index
    %19 = vector.load %arg13[%c0_20, %c0_21] : memref<512x8xf32, #tpu.memory_space<vmem>>, vector<512x8xf32>
    %cst_22 = arith.constant dense<0.000000e+00> : vector<512x128xf32>
    %20 = tpu.matmul %19, %7, %cst_22 {dimension_numbers = #tpu.dot_dimension_numbers<[1], [0], [0], [1], [0, 0, 1, 1], [], []>} : vector<512x8xf32>, vector<8x128xf32>, vector<512x128xf32> -> vector<512x128xf32>
    %21 = vector.extract_strided_slice %18 {offsets = [0, 0], sizes = [128, 128], strides = [1, 1]} : vector<512x256xf32> to vector<128x128xf32>
    %22 = vector.extract_strided_slice %18 {offsets = [0, 128], sizes = [128, 128], strides = [1, 1]} : vector<512x256xf32> to vector<128x128xf32>
    %23 = vector.extract_strided_slice %20 {offsets = [0, 0], sizes = [128, 128], strides = [1, 1]} : vector<512x128xf32> to vector<128x128xf32>
    %24 = arith.mulf %21, %23 : vector<128x128xf32>
    %25 = arith.mulf %24, %14 : vector<128x128xf32>
    %cst_23 = arith.constant dense<0.000000e+00> : vector<128xf32>
    %26 = vector.multi_reduction <add>, %25, %cst_23 [1] : vector<128x128xf32> to vector<128xf32>
    %27 = vector.shape_cast %26 : vector<128xf32> to vector<128x1xf32>
    %28 = vector.extract_strided_slice %18 {offsets = [128, 0], sizes = [128, 128], strides = [1, 1]} : vector<512x256xf32> to vector<128x128xf32>
    %29 = vector.extract_strided_slice %18 {offsets = [128, 128], sizes = [128, 128], strides = [1, 1]} : vector<512x256xf32> to vector<128x128xf32>
    %30 = vector.extract_strided_slice %20 {offsets = [128, 0], sizes = [128, 128], strides = [1, 1]} : vector<512x128xf32> to vector<128x128xf32>
    %31 = arith.mulf %28, %30 : vector<128x128xf32>
    %32 = arith.mulf %31, %14 : vector<128x128xf32>
    %cst_24 = arith.constant dense<0.000000e+00> : vector<128xf32>
    %33 = vector.multi_reduction <add>, %32, %cst_24 [1] : vector<128x128xf32> to vector<128xf32>
    %34 = vector.shape_cast %33 : vector<128xf32> to vector<128x1xf32>
    %35 = vector.extract_strided_slice %18 {offsets = [256, 0], sizes = [128, 128], strides = [1, 1]} : vector<512x256xf32> to vector<128x128xf32>
    %36 = vector.extract_strided_slice %18 {offsets = [256, 128], sizes = [128, 128], strides = [1, 1]} : vector<512x256xf32> to vector<128x128xf32>
    %37 = vector.extract_strided_slice %20 {offsets = [256, 0], sizes = [128, 128], strides = [1, 1]} : vector<512x128xf32> to vector<128x128xf32>
    %38 = arith.mulf %35, %37 : vector<128x128xf32>
    %39 = arith.mulf %38, %14 : vector<128x128xf32>
    %cst_25 = arith.constant dense<0.000000e+00> : vector<128xf32>
    %40 = vector.multi_reduction <add>, %39, %cst_25 [1] : vector<128x128xf32> to vector<128xf32>
    %41 = vector.shape_cast %40 : vector<128xf32> to vector<128x1xf32>
    %42 = vector.extract_strided_slice %18 {offsets = [384, 0], sizes = [128, 128], strides = [1, 1]} : vector<512x256xf32> to vector<128x128xf32>
    %43 = vector.extract_strided_slice %18 {offsets = [384, 128], sizes = [128, 128], strides = [1, 1]} : vector<512x256xf32> to vector<128x128xf32>
    %44 = vector.extract_strided_slice %20 {offsets = [384, 0], sizes = [128, 128], strides = [1, 1]} : vector<512x128xf32> to vector<128x128xf32>
    %45 = arith.mulf %42, %44 : vector<128x128xf32>
    %46 = arith.mulf %45, %14 : vector<128x128xf32>
    %cst_26 = arith.constant dense<0.000000e+00> : vector<128xf32>
    %47 = vector.multi_reduction <add>, %46, %cst_26 [1] : vector<128x128xf32> to vector<128xf32>
    %48 = vector.shape_cast %47 : vector<128xf32> to vector<128x1xf32>
    %49 = arith.maximumf %27, %34 : vector<128x1xf32>
    %50 = arith.maximumf %49, %41 : vector<128x1xf32>
    %51 = arith.maximumf %50, %48 : vector<128x1xf32>
    %52 = arith.subf %27, %51 : vector<128x1xf32>
    %53 = math.exp %52 : vector<128x1xf32>
    %54 = arith.subf %34, %51 : vector<128x1xf32>
    %55 = math.exp %54 : vector<128x1xf32>
    %56 = arith.subf %41, %51 : vector<128x1xf32>
    %57 = math.exp %56 : vector<128x1xf32>
    %58 = arith.subf %48, %51 : vector<128x1xf32>
    %59 = math.exp %58 : vector<128x1xf32>
    %60 = arith.addf %53, %55 : vector<128x1xf32>
    %61 = arith.addf %60, %57 : vector<128x1xf32>
    %62 = arith.addf %61, %59 : vector<128x1xf32>
    %63 = vector.broadcast %53 : vector<128x1xf32> to vector<128x128xf32>
    %64 = arith.mulf %63, %22 : vector<128x128xf32>
    %65 = vector.broadcast %55 : vector<128x1xf32> to vector<128x128xf32>
    %66 = arith.mulf %65, %29 : vector<128x128xf32>
    %67 = arith.addf %64, %66 : vector<128x128xf32>
    %68 = vector.broadcast %57 : vector<128x1xf32> to vector<128x128xf32>
    %69 = arith.mulf %68, %36 : vector<128x128xf32>
    %70 = arith.addf %67, %69 : vector<128x128xf32>
    %71 = vector.broadcast %59 : vector<128x1xf32> to vector<128x128xf32>
    %72 = arith.mulf %71, %43 : vector<128x128xf32>
    %73 = arith.addf %70, %72 : vector<128x128xf32>
    %74 = tpu.reciprocal %62 {approx = true} : vector<128x1xf32> -> vector<128x1xf32>
    %75 = vector.broadcast %74 : vector<128x1xf32> to vector<128x128xf32>
    %76 = arith.mulf %73, %75 : vector<128x128xf32>
    %c0_27 = arith.constant 0 : index
    %c0_28 = arith.constant 0 : index
    %77 = vector.load %arg11[%c0_27, %c0_28] : memref<1x128xf32, #tpu.memory_space<vmem>>, vector<1x128xf32>
    %cst_29 = arith.constant 0.000000e+00 : f32
    %78 = vector.broadcast %cst_29 : f32 to vector<1x128xf32>
    %79 = arith.subf %78, %77 : vector<1x128xf32>
    %80 = math.exp %79 : vector<1x128xf32>
    %cst_30 = arith.constant 1.000000e+00 : f32
    %81 = vector.broadcast %cst_30 : f32 to vector<1x128xf32>
    %82 = arith.addf %81, %80 : vector<1x128xf32>
    %cst_31 = arith.constant 1.000000e+00 : f32
    %83 = vector.broadcast %cst_31 : f32 to vector<1x128xf32>
    %84 = arith.divf %83, %82 : vector<1x128xf32>
    %85 = vector.broadcast %84 : vector<1x128xf32> to vector<128x128xf32>
    %86 = arith.mulf %85, %15 : vector<128x128xf32>
    %cst_32 = arith.constant 1.000000e+00 : f32
    %87 = vector.broadcast %cst_32 : f32 to vector<1x128xf32>
    %88 = arith.subf %87, %84 : vector<1x128xf32>
    %89 = vector.broadcast %88 : vector<1x128xf32> to vector<128x128xf32>
    %90 = arith.mulf %89, %76 : vector<128x128xf32>
    %91 = arith.addf %86, %90 : vector<128x128xf32>
    %cst_33 = arith.constant 0.999994993 : f32
    %92 = vector.broadcast %cst_33 : f32 to vector<128x128xf32>
    %93 = arith.mulf %91, %92 : vector<128x128xf32>
    %94 = math.tanh %93 : vector<128x128xf32>
    %c0_34 = arith.constant 0 : index
    %c0_35 = arith.constant 0 : index
    %95 = vector.load %arg9[%c0_34, %c0_35] : memref<128x128xf32, #tpu.memory_space<vmem>>, vector<128x128xf32>
    %cst_36 = arith.constant dense<0.000000e+00> : vector<8x128xf32>
    %96 = tpu.matmul %4, %95, %cst_36 {dimension_numbers = #tpu.dot_dimension_numbers<[1], [0], [0], [1], [0, 0, 1, 1], [], []>} : vector<8x128xf32>, vector<128x128xf32>, vector<8x128xf32> -> vector<8x128xf32>
    %c0_37 = arith.constant 0 : index
    %c0_38 = arith.constant 0 : index
    %97 = vector.load %arg10[%c0_37, %c0_38] : memref<1x128xf32, #tpu.memory_space<vmem>>, vector<1x128xf32>
    %98 = vector.broadcast %97 : vector<1x128xf32> to vector<8x128xf32>
    %99 = arith.addf %96, %98 : vector<8x128xf32>
    %c0_39 = arith.constant 0 : index
    %c0_40 = arith.constant 0 : index
    %100 = vector.load %arg14[%c0_39, %c0_40] : memref<8x128xf32, #tpu.memory_space<vmem>>, vector<8x128xf32>
    %cst_41 = arith.constant dense<0.000000e+00> : vector<8x128xf32>
    %101 = tpu.matmul %100, %94, %cst_41 {dimension_numbers = #tpu.dot_dimension_numbers<[1], [0], [0], [1], [0, 0, 1, 1], [], []>} : vector<8x128xf32>, vector<128x128xf32>, vector<8x128xf32> -> vector<8x128xf32>
    %c0_42 = arith.constant 0 : index
    %c0_43 = arith.constant 0 : index
    %102 = vector.load %arg15[%c0_42, %c0_43] : memref<8x8xf32, #tpu.memory_space<vmem>>, vector<8x8xf32>
    %cst_44 = arith.constant dense<0.000000e+00> : vector<8x128xf32>
    %103 = tpu.matmul %102, %99, %cst_44 {dimension_numbers = #tpu.dot_dimension_numbers<[1], [0], [0], [1], [0, 0, 1, 1], [], []>} : vector<8x8xf32>, vector<8x128xf32>, vector<8x128xf32> -> vector<8x128xf32>
    %c0_45 = arith.constant 0 : index
    %c0_46 = arith.constant 0 : index
    %104 = vector.load %arg16[%c0_45, %c0_46] : memref<128x128xf32, #tpu.memory_space<vmem>>, vector<128x128xf32>
    %cst_47 = arith.constant dense<0.000000e+00> : vector<8x128xf32>
    %105 = tpu.matmul %101, %104, %cst_47 {dimension_numbers = #tpu.dot_dimension_numbers<[1], [0], [0], [1], [0, 0, 1, 1], [], []>} : vector<8x128xf32>, vector<128x128xf32>, vector<8x128xf32> -> vector<8x128xf32>
    %c0_48 = arith.constant 0 : index
    %c0_49 = arith.constant 0 : index
    %106 = vector.load %arg17[%c0_48, %c0_49] : memref<128x128xf32, #tpu.memory_space<vmem>>, vector<128x128xf32>
    %cst_50 = arith.constant dense<0.000000e+00> : vector<8x128xf32>
    %107 = tpu.matmul %103, %106, %cst_50 {dimension_numbers = #tpu.dot_dimension_numbers<[1], [0], [0], [1], [0, 0, 1, 1], [], []>} : vector<8x128xf32>, vector<128x128xf32>, vector<8x128xf32> -> vector<8x128xf32>
    %108 = arith.addf %105, %107 : vector<8x128xf32>
    %cst_51 = arith.constant 0.999989986 : f32
    %109 = vector.broadcast %cst_51 : f32 to vector<8x128xf32>
    %110 = arith.mulf %108, %109 : vector<8x128xf32>
    %cst_52 = arith.constant 0.000000e+00 : f32
    %111 = vector.broadcast %cst_52 : f32 to vector<8x128xf32>
    %112 = arith.maximumf %110, %111 : vector<8x128xf32>
    %c0_53 = arith.constant 0 : index
    %c0_54 = arith.constant 0 : index
    %113 = vector.load %arg18[%c0_53, %c0_54] : memref<128x128xf32, #tpu.memory_space<vmem>>, vector<128x128xf32>
    %cst_55 = arith.constant dense<0.000000e+00> : vector<8x128xf32>
    %114 = tpu.matmul %112, %113, %cst_55 {dimension_numbers = #tpu.dot_dimension_numbers<[1], [0], [0], [1], [0, 0, 1, 1], [], []>} : vector<8x128xf32>, vector<128x128xf32>, vector<8x128xf32> -> vector<8x128xf32>
    %c0_56 = arith.constant 0 : index
    %c0_57 = arith.constant 0 : index
    %115 = vector.load %arg19[%c0_56, %c0_57] : memref<1x128xf32, #tpu.memory_space<vmem>>, vector<1x128xf32>
    %116 = vector.broadcast %115 : vector<1x128xf32> to vector<8x128xf32>
    %117 = arith.addf %114, %116 : vector<8x128xf32>
    %cst_58 = arith.constant 0.999994993 : f32
    %118 = vector.broadcast %cst_58 : f32 to vector<8x128xf32>
    %119 = arith.mulf %117, %118 : vector<8x128xf32>
    %cst_59 = arith.constant 0.000000e+00 : f32
    %120 = vector.broadcast %cst_59 : f32 to vector<8x128xf32>
    %121 = arith.maximumf %119, %120 : vector<8x128xf32>
    %cst_60 = arith.constant dense<0.000000e+00> : vector<8x128xf32>
    %122 = tpu.matmul %121, %94, %cst_60 {dimension_numbers = #tpu.dot_dimension_numbers<[1], [1], [0], [0], [0, 0, 1, 0], [], []>} : vector<8x128xf32>, vector<128x128xf32>, vector<8x128xf32> -> vector<8x128xf32>
    %c0_61 = arith.constant 0 : index
    %c0_62 = arith.constant 0 : index
    %123 = vector.load %arg20[%c0_61, %c0_62] : memref<1x128xf32, #tpu.memory_space<vmem>>, vector<1x128xf32>
    %124 = vector.broadcast %123 : vector<1x128xf32> to vector<8x128xf32>
    %125 = arith.addf %122, %124 : vector<8x128xf32>
    %cst_63 = arith.constant 0.000000e+00 : f32
    %126 = vector.broadcast %cst_63 : f32 to vector<8x128xf32>
    %127 = arith.subf %126, %125 : vector<8x128xf32>
    %128 = math.exp %127 : vector<8x128xf32>
    %cst_64 = arith.constant 1.000000e+00 : f32
    %129 = vector.broadcast %cst_64 : f32 to vector<8x128xf32>
    %130 = arith.addf %129, %128 : vector<8x128xf32>
    %cst_65 = arith.constant 1.000000e+00 : f32
    %131 = vector.broadcast %cst_65 : f32 to vector<8x128xf32>
    %132 = arith.divf %131, %130 : vector<8x128xf32>
    %c0_66 = arith.constant 0 : index
    %c0_67 = arith.constant 0 : index
    %133 = vector.load %arg21[%c0_66, %c0_67] : memref<8x128xf32, #tpu.memory_space<vmem>>, vector<8x128xf32>
    tpu.vector_store %arg21[%c0_66, %c0_67], %132 {strides = array<i32>} : memref<8x128xf32, #tpu.memory_space<vmem>>, vector<8x128xf32>,
    return
  }
  func.func @transform_0(%arg0: i32) -> (i32, i32) {
    %c0_i32 = arith.constant 0 : i32
    %c0_i32_0 = arith.constant 0 : i32
    %c0_i32_1 = arith.constant 0 : i32
    return %c0_i32, %c0_i32_0 : i32, i32
  }
  func.func @transform_1(%arg0: i32) -> (i32, i32) {
    %c0_i32 = arith.constant 0 : i32
    %c0_i32_0 = arith.constant 0 : i32
    %c0_i32_1 = arith.constant 0 : i32
    return %c0_i32, %c0_i32_0 : i32, i32
  }
  func.func @transform_2(%arg0: i32) -> (i32, i32) {
    %c0_i32 = arith.constant 0 : i32
    %c0_i32_0 = arith.constant 0 : i32
    %c0_i32_1 = arith.constant 0 : i32
    return %c0_i32, %c0_i32_0 : i32, i32
  }
  func.func @transform_3(%arg0: i32) -> (i32, i32) {
    %c0_i32 = arith.constant 0 : i32
    %c0_i32_0 = arith.constant 0 : i32
    %c0_i32_1 = arith.constant 0 : i32
    return %c0_i32, %c0_i32_0 : i32, i32
  }
  func.func @transform_4(%arg0: i32) -> (i32, i32) {
    %c0_i32 = arith.constant 0 : i32
    %c0_i32_0 = arith.constant 0 : i32
    %c0_i32_1 = arith.constant 0 : i32
    return %c0_i32, %c0_i32_0 : i32, i32
  }
  func.func @transform_5(%arg0: i32) -> (i32, i32) {
    %c0_i32 = arith.constant 0 : i32
    %c0_i32_0 = arith.constant 0 : i32
    %c0_i32_1 = arith.constant 0 : i32
    return %c0_i32, %c0_i32_0 : i32, i32
  }
  func.func @transform_6(%arg0: i32) -> (i32, i32) {
    %c0_i32 = arith.constant 0 : i32
    %c0_i32_0 = arith.constant 0 : i32
    %c0_i32_1 = arith.constant 0 : i32
    return %c0_i32, %c0_i32_0 : i32, i32
  }
  func.func @transform_7(%arg0: i32) -> (i32, i32) {
    %c0_i32 = arith.constant 0 : i32
    %c0_i32_0 = arith.constant 0 : i32
    %c0_i32_1 = arith.constant 0 : i32
    return %c0_i32, %c0_i32_0 : i32, i32
  }
  func.func @transform_8(%arg0: i32) -> (i32, i32) {
    %c0_i32 = arith.constant 0 : i32
    %c0_i32_0 = arith.constant 0 : i32
    %c0_i32_1 = arith.constant 0 : i32
    return %c0_i32, %c0_i32_0 : i32, i32
  }
  func.func @transform_9(%arg0: i32) -> (i32, i32) {
    %c0_i32 = arith.constant 0 : i32
    %c0_i32_0 = arith.constant 0 : i32
    %c0_i32_1 = arith.constant 0 : i32
    return %c0_i32, %c0_i32_0 : i32, i32
  }
  func.func @transform_10(%arg0: i32) -> (i32, i32) {
    %c0_i32 = arith.constant 0 : i32
    %c0_i32_0 = arith.constant 0 : i32
    %c0_i32_1 = arith.constant 0 : i32
    return %c0_i32, %c0_i32_0 : i32, i32
  }
  func.func @transform_11(%arg0: i32) -> (i32, i32) {
    %c0_i32 = arith.constant 0 : i32
    %c0_i32_0 = arith.constant 0 : i32
    %c0_i32_1 = arith.constant 0 : i32
    return %c0_i32, %c0_i32_0 : i32, i32
  }
  func.func @transform_12(%arg0: i32) -> (i32, i32) {
    %c0_i32 = arith.constant 0 : i32
    %c0_i32_0 = arith.constant 0 : i32
    %c0_i32_1 = arith.constant 0 : i32
    return %c0_i32, %c0_i32_0 : i32, i32
  }
  func.func @transform_13(%arg0: i32) -> (i32, i32) {
    %c0_i32 = arith.constant 0 : i32
    %c0_i32_0 = arith.constant 0 : i32
    %c0_i32_1 = arith.constant 0 : i32
    return %c0_i32, %c0_i32_0 : i32, i32
  }
  func.func @transform_14(%arg0: i32) -> (i32, i32) {
    %c0_i32 = arith.constant 0 : i32
    %c0_i32_0 = arith.constant 0 : i32
    %c0_i32_1 = arith.constant 0 : i32
    return %c0_i32, %c0_i32_0 : i32, i32
  }
  func.func @transform_15(%arg0: i32) -> (i32, i32) {
    %c0_i32 = arith.constant 0 : i32
    %c0_i32_0 = arith.constant 0 : i32
    %c0_i32_1 = arith.constant 0 : i32
    return %c0_i32, %c0_i32_0 : i32, i32
  }
  func.func @transform_16(%arg0: i32) -> (i32, i32) {
    %c0_i32 = arith.constant 0 : i32
    %c0_i32_0 = arith.constant 0 : i32
    %c0_i32_1 = arith.constant 0 : i32
    return %c0_i32, %c0_i32_0 : i32, i32
  }
  func.func @transform_17(%arg0: i32) -> (i32, i32) {
    %c0_i32 = arith.constant 0 : i32
    %c0_i32_0 = arith.constant 0 : i32
    %c0_i32_1 = arith.constant 0 : i32
    return %c0_i32, %c0_i32_0 : i32, i32
  }
  func.func @transform_18(%arg0: i32) -> (i32, i32) {
    %c0_i32 = arith.constant 0 : i32
    %c0_i32_0 = arith.constant 0 : i32
    %c0_i32_1 = arith.constant 0 : i32
    return %c0_i32, %c0_i32_0 : i32, i32
  }
  func.func @transform_19(%arg0: i32) -> (i32, i32) {
    %c0_i32 = arith.constant 0 : i32
    %c0_i32_0 = arith.constant 0 : i32
    %c0_i32_1 = arith.constant 0 : i32
    return %c0_i32, %c0_i32_0 : i32, i32
  }
  func.func @transform_20(%arg0: i32) -> (i32, i32) {
    %c0_i32 = arith.constant 0 : i32
    %c0_i32_0 = arith.constant 0 : i32
    %c0_i32_1 = arith.constant 0 : i32
    return %c0_i32, %c0_i32_0 : i32, i32
  }
}

</mosaic_0001>

<llo_original>
// kernel: compgcn_conve_forward.1
$region0: #{compgcn_conve_forward.1}
  #allocation0 [shape = 'u32[]', space=smem, size = 0x4, offset = 0x4, fixed_abs, tag = 'smem constant byte address 0x4 - core index']
  #allocation1 [shape = 'u32[144,128]{1,0:T(1,128)}', space=vmem, size = 0x12000, scoped, tag = 'internal scratch']
  %s0 = inlined_call_operand.hbm [shape: f32[128,128], index: 0, kind: input, shape index: {}]
  %s1 = inlined_call_operand.vmem [shape: f32[8,8], index: 1, kind: input, shape index: {}]
  %s2 = inlined_call_operand.vmem [shape: f32[8,128], index: 2, kind: input, shape index: {}]
  %s3 = inlined_call_operand.vmem [shape: f32[8,128], index: 3, kind: input, shape index: {}]
  %s4 = inlined_call_operand.vmem [shape: f32[8,8], index: 4, kind: input, shape index: {}]
  %s5 = inlined_call_operand.vmem [shape: f32[8,128], index: 5, kind: input, shape index: {}]
  %s6 = inlined_call_operand.vmem [shape: f32[128,512], index: 6, kind: input, shape index: {}]
  %s7 = inlined_call_operand.vmem [shape: f32[1,512], index: 7, kind: input, shape index: {}]
  %s8 = inlined_call_operand.hbm [shape: f32[128,128], index: 8, kind: input, shape index: {}]
  %s9 = inlined_call_operand.vmem [shape: f32[1,128], index: 9, kind: input, shape index: {}]
  %s10 = inlined_call_operand.vmem [shape: f32[1,128], index: 10, kind: input, shape index: {}]
  %s11 = inlined_call_operand.hbm [shape: f32[512,128], index: 11, kind: input, shape index: {}]
  %s12 = inlined_call_operand.vmem [shape: f32[512,8], index: 12, kind: input, shape index: {}]
  %s13 = inlined_call_operand.vmem [shape: f32[8,128], index: 13, kind: input, shape index: {}]
  %s14 = inlined_call_operand.vmem [shape: f32[8,8], index: 14, kind: input, shape index: {}]
  %s15 = inlined_call_operand.hbm [shape: f32[128,128], index: 15, kind: input, shape index: {}]
  %s16 = inlined_call_operand.hbm [shape: f32[128,128], index: 16, kind: input, shape index: {}]
  %s17 = inlined_call_operand.hbm [shape: f32[128,128], index: 17, kind: input, shape index: {}]
  %s18 = inlined_call_operand.vmem [shape: f32[1,128], index: 18, kind: input, shape index: {}]
  %s19 = inlined_call_operand.vmem [shape: f32[1,128], index: 19, kind: input, shape index: {}]
  %s20 = inlined_call_operand.vmem [shape: f32[8,128], index: 20, kind: output, shape index: {}]
  %s21 = sld [smem:[#allocation0]]
  $region114: #{compgcn_conve_forward.1} parent=0
    _
  %s23 = ssub.s32 1, %s21
  %s24 = scalar_select 0, %s23, %s21
  $region1: #{compgcn_conve_forward.1} parent=0
    #allocation2 [shape = 'u8[65536]{0}', space=vmem, size = 0x10000, scoped, tag = 'input window, operand 0, single buffered']
    #allocation3 [shape = 's32[1]{0}', space=sflag, size = 0x4, scoped, tag = 'scoped memory for compgcn_conve_forward.1']
    #allocation4 [shape = 'u8[65536]{0}', space=vmem, size = 0x10000, scoped, tag = 'input window, operand 8, single buffered']
    #allocation5 [shape = 's32[1]{0}', space=sflag, size = 0x4, scoped, tag = 'scoped memory for compgcn_conve_forward.1']
    #allocation6 [shape = 'u8[262144]{0}', space=vmem, size = 0x40000, scoped, tag = 'input window, operand 11, single buffered']
    #allocation7 [shape = 'u8[65536]{0}', space=vmem, size = 0x10000, scoped, tag = 'input window, operand 15, single buffered']
    #allocation8 [shape = 's32[1]{0}', space=sflag, size = 0x4, scoped, tag = 'scoped memory for compgcn_conve_forward.1']
    #allocation9 [shape = 'u8[65536]{0}', space=vmem, size = 0x10000, scoped, tag = 'input window, operand 16, single buffered']
    #allocation10 [shape = 'u8[65536]{0}', space=vmem, size = 0x10000, scoped, tag = 'input window, operand 17, single buffered']
    #allocation11 [shape = 's32[1]{0}', space=sflag, size = 0x4, scoped, tag = 'scoped memory for compgcn_conve_forward.1']
    %25 = vsyncpa [#allocation3], 0
    %26 = vsyncpa [#allocation5], 0
    %27 = vsyncpa [#allocation8], 0
    %28 = vsyncpa [#allocation11], 0
    // Predicated region
    $region2: #{compgcn_conve_forward.1} parent=1 // pred_check
      _
    $region3: #{compgcn_conve_forward.1} parent=1 // pred_check_branch
      %30 = sbr.rel (0) target = $region5
    $region4: #{compgcn_conve_forward.1} parent=1 // pred_region
      %s32 = ssub.s32 2048, 2048
      %33 = vsyncadd [#allocation3], %s32
      %s34 = sshll.u32 [#allocation2], 4
      %s35 = int_to_ptr.vmem [resolvable:$true] %s34
      %40 = dma.hbm_to_vmem [thread:$0]  %s0, 2048, %s35, [#allocation3], 128, 128, 8
    $region5: #{compgcn_conve_forward.1} parent=1 // pred_fallthru
      _
    // Predicated region
    $region6: #{compgcn_conve_forward.1} parent=1 // pred_check
      _
    $region7: #{compgcn_conve_forward.1} parent=1 // pred_check_branch
      %42 = sbr.rel (0) target = $region9
    $region8: #{compgcn_conve_forward.1} parent=1 // pred_region
      _
    $region9: #{compgcn_conve_forward.1} parent=1 // pred_fallthru
      _
    // Predicated region
    $region10: #{compgcn_conve_forward.1} parent=1 // pred_check
      _
    $region11: #{compgcn_conve_forward.1} parent=1 // pred_check_branch
      %44 = sbr.rel (0) target = $region13
    $region12: #{compgcn_conve_forward.1} parent=1 // pred_region
      _
    $region13: #{compgcn_conve_forward.1} parent=1 // pred_fallthru
      _
    // Predicated region
    $region14: #{compgcn_conve_forward.1} parent=1 // pred_check
      _
    $region15: #{compgcn_conve_forward.1} parent=1 // pred_check_branch
      %46 = sbr.rel (0) target = $region17
    $region16: #{compgcn_conve_forward.1} parent=1 // pred_region
      _
    $region17: #{compgcn_conve_forward.1} parent=1 // pred_fallthru
      _
    // Predicated region
    $region18: #{compgcn_conve_forward.1} parent=1 // pred_check
      _
    $region19: #{compgcn_conve_forward.1} parent=1 // pred_check_branch
      %48 = sbr.rel (0) target = $region21
    $region20: #{compgcn_conve_forward.1} parent=1 // pred_region
      _
    $region21: #{compgcn_conve_forward.1} parent=1 // pred_fallthru
      _
    // Predicated region
    $region22: #{compgcn_conve_forward.1} parent=1 // pred_check
      _
    $region23: #{compgcn_conve_forward.1} parent=1 // pred_check_branch
      %50 = sbr.rel (0) target = $region25
    $region24: #{compgcn_conve_forward.1} parent=1 // pred_region
      _
    $region25: #{compgcn_conve_forward.1} parent=1 // pred_fallthru
      _
    // Predicated region
    $region26: #{compgcn_conve_forward.1} parent=1 // pred_check
      _
    $region27: #{compgcn_conve_forward.1} parent=1 // pred_check_branch
      %52 = sbr.rel (0) target = $region29
    $region28: #{compgcn_conve_forward.1} parent=1 // pred_region
      _
    $region29: #{compgcn_conve_forward.1} parent=1 // pred_fallthru
      _
    // Predicated region
    $region30: #{compgcn_conve_forward.1} parent=1 // pred_check
      _
    $region31: #{compgcn_conve_forward.1} parent=1 // pred_check_branch
      %54 = sbr.rel (0) target = $region33
    $region32: #{compgcn_conve_forward.1} parent=1 // pred_region
      _
    $region33: #{compgcn_conve_forward.1} parent=1 // pred_fallthru
      _
    // Predicated region
    $region34: #{compgcn_conve_forward.1} parent=1 // pred_check
      _
    $region35: #{compgcn_conve_forward.1} parent=1 // pred_check_branch
      %56 = sbr.rel (0) target = $region37
    $region36: #{compgcn_conve_forward.1} parent=1 // pred_region
      %s58 = ssub.s32 2048, 2048
      %59 = vsyncadd [#allocation5], %s58
      %s60 = sshll.u32 [#allocation4], 4
      %s61 = int_to_ptr.vmem [resolvable:$true] %s60
      %66 = dma.hbm_to_vmem [thread:$0]  %s8, 2048, %s61, [#allocation5], 128, 128, 8
    $region37: #{compgcn_conve_forward.1} parent=1 // pred_fallthru
      _
    // Predicated region
    $region38: #{compgcn_conve_forward.1} parent=1 // pred_check
      _
    $region39: #{compgcn_conve_forward.1} parent=1 // pred_check_branch
      %68 = sbr.rel (0) target = $region41
    $region40: #{compgcn_conve_forward.1} parent=1 // pred_region
      _
    $region41: #{compgcn_conve_forward.1} parent=1 // pred_fallthru
      _
    // Predicated region
    $region42: #{compgcn_conve_forward.1} parent=1 // pred_check
      _
    $region43: #{compgcn_conve_forward.1} parent=1 // pred_check_branch
      %70 = sbr.rel (0) target = $region45
    $region44: #{compgcn_conve_forward.1} parent=1 // pred_region
      _
    $region45: #{compgcn_conve_forward.1} parent=1 // pred_fallthru
      _
    // Predicated region
    $region46: #{compgcn_conve_forward.1} parent=1 // pred_check
      _
    $region47: #{compgcn_conve_forward.1} parent=1 // pred_check_branch
      %72 = sbr.rel (0) target = $region49
    $region48: #{compgcn_conve_forward.1} parent=1 // pred_region
      %s74 = ssub.s32 8192, 8192
      %75 = vsyncadd [#allocation5], %s74
      %s76 = sshll.u32 [#allocation6], 4
      %s77 = int_to_ptr.vmem [resolvable:$true] %s76
      %82 = dma.hbm_to_vmem [thread:$0]  %s11, 8192, %s77, [#allocation5], 128, 128, 8
    $region49: #{compgcn_conve_forward.1} parent=1 // pred_fallthru
      _
    // Predicated region
    $region50: #{compgcn_conve_forward.1} parent=1 // pred_check
      _
    $region51: #{compgcn_conve_forward.1} parent=1 // pred_check_branch
      %84 = sbr.rel (0) target = $region53
    $region52: #{compgcn_conve_forward.1} parent=1 // pred_region
      _
    $region53: #{compgcn_conve_forward.1} parent=1 // pred_fallthru
      _
    // Predicated region
    $region54: #{compgcn_conve_forward.1} parent=1 // pred_check
      _
    $region55: #{compgcn_conve_forward.1} parent=1 // pred_check_branch
      %86 = sbr.rel (0) target = $region57
    $region56: #{compgcn_conve_forward.1} parent=1 // pred_region
      _
    $region57: #{compgcn_conve_forward.1} parent=1 // pred_fallthru
      _
    // Predicated region
    $region58: #{compgcn_conve_forward.1} parent=1 // pred_check
      _
    $region59: #{compgcn_conve_forward.1} parent=1 // pred_check_branch
      %88 = sbr.rel (0) target = $region61
    $region60: #{compgcn_conve_forward.1} parent=1 // pred_region
      _
    $region61: #{compgcn_conve_forward.1} parent=1 // pred_fallthru
      _
    // Predicated region
    $region62: #{compgcn_conve_forward.1} parent=1 // pred_check
      _
    $region63: #{compgcn_conve_forward.1} parent=1 // pred_check_branch
      %90 = sbr.rel (0) target = $region65
    $region64: #{compgcn_conve_forward.1} parent=1 // pred_region
      %s92 = ssub.s32 2048, 2048
      %93 = vsyncadd [#allocation8], %s92
      %s94 = sshll.u32 [#allocation7], 4
      %s95 = int_to_ptr.vmem [resolvable:$true] %s94
      %100 = dma.hbm_to_vmem [thread:$0]  %s15, 2048, %s95, [#allocation8], 128, 128, 8
    $region65: #{compgcn_conve_forward.1} parent=1 // pred_fallthru
      _
    // Predicated region
    $region66: #{compgcn_conve_forward.1} parent=1 // pred_check
      _
    $region67: #{compgcn_conve_forward.1} parent=1 // pred_check_branch
      %102 = sbr.rel (0) target = $region69
    $region68: #{compgcn_conve_forward.1} parent=1 // pred_region
      %s104 = ssub.s32 2048, 2048
      %105 = vsyncadd [#allocation8], %s104
      %s106 = sshll.u32 [#allocation9], 4
      %s107 = int_to_ptr.vmem [resolvable:$true] %s106
      %112 = dma.hbm_to_vmem [thread:$0]  %s16, 2048, %s107, [#allocation8], 128, 128, 8
    $region69: #{compgcn_conve_forward.1} parent=1 // pred_fallthru
      _
    // Predicated region
    $region70: #{compgcn_conve_forward.1} parent=1 // pred_check
      _
    $region71: #{compgcn_conve_forward.1} parent=1 // pred_check_branch
      %114 = sbr.rel (0) target = $region73
    $region72: #{compgcn_conve_forward.1} parent=1 // pred_region
      %s116 = ssub.s32 2048, 2048
      %117 = vsyncadd [#allocation11], %s116
      %s118 = sshll.u32 [#allocation10], 4
      %s119 = int_to_ptr.vmem [resolvable:$true] %s118
      %124 = dma.hbm_to_vmem [thread:$0]  %s17, 2048, %s119, [#allocation11], 128, 128, 8
    $region73: #{compgcn_conve_forward.1} parent=1 // pred_fallthru
      _
    // Predicated region
    $region74: #{compgcn_conve_forward.1} parent=1 // pred_check
      _
    $region75: #{compgcn_conve_forward.1} parent=1 // pred_check_branch
      %126 = sbr.rel (0) target = $region77
    $region76: #{compgcn_conve_forward.1} parent=1 // pred_region
      _
    $region77: #{compgcn_conve_forward.1} parent=1 // pred_fallthru
      _
    // Predicated region
    $region78: #{compgcn_conve_forward.1} parent=1 // pred_check
      _
    $region79: #{compgcn_conve_forward.1} parent=1 // pred_check_branch
      %128 = sbr.rel (0) target = $region81
    $region80: #{compgcn_conve_forward.1} parent=1 // pred_region
      _
    $region81: #{compgcn_conve_forward.1} parent=1 // pred_fallthru
      _
    // Predicated region
    $region82: #{compgcn_conve_forward.1} parent=1 // pred_check
      _
    $region83: #{compgcn_conve_forward.1} parent=1 // pred_check_branch
      %130 = sbr.rel (0) target = $region85
    $region84: #{compgcn_conve_forward.1} parent=1 // pred_region
      %131 = dma.done [#allocation3], 2048
    $region85: #{compgcn_conve_forward.1} parent=1 // pred_fallthru
      _
    // Predicated region
    $region86: #{compgcn_conve_forward.1} parent=1 // pred_check
      _
    $region87: #{compgcn_conve_forward.1} parent=1 // pred_check_branch
      %133 = sbr.rel (0) target = $region89
    $region88: #{compgcn_conve_forward.1} parent=1 // pred_region
      %134 = dma.done [#allocation5], 2048
    $region89: #{compgcn_conve_forward.1} parent=1 // pred_fallthru
      _
    // Predicated region
    $region90: #{compgcn_conve_forward.1} parent=1 // pred_check
      _
    $region91: #{compgcn_conve_forward.1} parent=1 // pred_check_branch
      %136 = sbr.rel (0) target = $region93
    $region92: #{compgcn_conve_forward.1} parent=1 // pred_region
      %137 = dma.done [#allocation5], 8192
    $region93: #{compgcn_conve_forward.1} parent=1 // pred_fallthru
      _
    // Predicated region
    $region94: #{compgcn_conve_forward.1} parent=1 // pred_check
      _
    $region95: #{compgcn_conve_forward.1} parent=1 // pred_check_branch
      %139 = sbr.rel (0) target = $region97
    $region96: #{compgcn_conve_forward.1} parent=1 // pred_region
      %140 = dma.done [#allocation8], 2048
    $region97: #{compgcn_conve_forward.1} parent=1 // pred_fallthru
      _
    // Predicated region
    $region98: #{compgcn_conve_forward.1} parent=1 // pred_check
      _
    $region99: #{compgcn_conve_forward.1} parent=1 // pred_check_branch
      %142 = sbr.rel (0) target = $region101
    $region100: #{compgcn_conve_forward.1} parent=1 // pred_region
      %143 = dma.done [#allocation8], 2048
    $region101: #{compgcn_conve_forward.1} parent=1 // pred_fallthru
      _
    // Predicated region
    $region102: #{compgcn_conve_forward.1} parent=1 // pred_check
      _
    $region103: #{compgcn_conve_forward.1} parent=1 // pred_check_branch
      %145 = sbr.rel (0) target = $region105
    $region104: #{compgcn_conve_forward.1} parent=1 // pred_region
      %146 = dma.done [#allocation11], 2048
    $region105: #{compgcn_conve_forward.1} parent=1 // pred_fallthru
      _
    %v147 = vld [vmem:[%s1] sm:$0xff]
    %v148 = vld [vmem:[%s2] sm:$0xff]
    %v149 = vld [vmem:[%s3] sm:$0xff]
    %vm150 = vcmask 64512
    %v152 = vsel %vm150, %v147, 0
    %154 = vmatprep.subr.mxu0 0.0
    %155 = vmatpush1.msra.mxu0 %v148
    %156 = vmatprep.subr.mxu0 0.0
    %157 = vmatpush1.msra.mxu0 0.0
    %158 = vmatprep.subr.mxu0 0.0
    %159 = vmatpush1.msra.mxu0 0.0
    %160 = vmatprep.subr.mxu0 0.0
    %161 = vmatpush1.msra.mxu0 0.0
    %162 = vmatprep.subr.mxu0 0.0
    %163 = vmatpush1.msra.mxu0 0.0
    %164 = vmatprep.subr.mxu0 0.0
    %165 = vmatpush1.msra.mxu0 0.0
    %166 = vmatprep.subr.mxu0 0.0
    %167 = vmatpush1.msra.mxu0 0.0
    %168 = vmatprep.subr.mxu0 0.0
    %169 = vmatpush1.msra.mxu0 0.0
    %170 = vmatprep.subr.mxu0 0.0
    %171 = vmatpush1.msra.mxu0 0.0
    %172 = vmatprep.subr.mxu0 0.0
    %173 = vmatpush1.msra.mxu0 0.0
    %174 = vmatprep.subr.mxu0 0.0
    %175 = vmatpush1.msra.mxu0 0.0
    %176 = vmatprep.subr.mxu0 0.0
    %177 = vmatpush1.msra.mxu0 0.0
    %178 = vmatprep.subr.mxu0 0.0
    %179 = vmatpush1.msra.mxu0 0.0
    %180 = vmatprep.subr.mxu0 0.0
    %181 = vmatpush1.msra.mxu0 0.0
    %182 = vmatprep.subr.mxu0 0.0
    %183 = vmatpush1.msra.mxu0 0.0
    %184 = vmatprep.subr.mxu0 0.0
    %185 = vmatpush1.msra.mxu0 0.0
    %186 = vmatprep.subr.mxu0 0.0
    %187 = vmatpush1.msra.mxu0 0.0
    %188 = vmatprep.subr.mxu0 0.0
    %189 = vmatpush1.msra.mxu0 0.0
    %190 = vmatprep.subr.mxu0 0.0
    %191 = vmatpush1.msra.mxu0 0.0
    %192 = vmatprep.subr.mxu0 0.0
    %193 = vmatpush1.msra.mxu0 0.0
    %194 = vmatprep.subr.mxu0 0.0
    %195 = vmatpush1.msra.mxu0 0.0
    %196 = vmatprep.subr.mxu0 0.0
    %197 = vmatpush1.msra.mxu0 0.0
    %198 = vmatprep.subr.mxu0 0.0
    %199 = vmatpush1.msra.mxu0 0.0
    %200 = vmatprep.subr.mxu0 0.0
    %201 = vmatpush1.msra.mxu0 0.0
    %202 = vmatprep.subr.mxu0 0.0
    %203 = vmatpush1.msra.mxu0 0.0
    %204 = vmatprep.subr.mxu0 0.0
    %205 = vmatpush1.msra.mxu0 0.0
    %206 = vmatprep.subr.mxu0 0.0
    %207 = vmatpush1.msra.mxu0 0.0
    %208 = vmatprep.subr.mxu0 0.0
    %209 = vmatpush1.msra.mxu0 0.0
    %210 = vmatprep.subr.mxu0 0.0
    %211 = vmatpush1.msra.mxu0 0.0
    %212 = vmatprep.subr.mxu0 0.0
    %213 = vmatpush1.msra.mxu0 0.0
    %214 = vmatprep.subr.mxu0 0.0
    %215 = vmatpush1.msra.mxu0 0.0
    %216 = vmatprep.subr.mxu0 0.0
    %217 = vmatpush1.msra.mxu0 0.0
    %218 = vmatprep.mubr.f32.mxu0 0.0
    %219 = vmatmul.mubr.f32.gmra.mrb[0].mxu0 %v152
    %v220 = vpop.f32.mrb[0].mxu0
    %v221 = vadd.f32 %v149, %v220
    %v222 = vpop.f32.mrb[0].mxu0
    %223 = vdwg.mxu0
    %v224 = vld [vmem:[%s4] sm:$0xff]
    %v225 = vld [vmem:[%s5] sm:$0xff]
    %v227 = vsel %vm150, %v224, 0
    %229 = vmatprep.subr.mxu0 0.0
    %230 = vmatpush1.msra.mxu0 %v225
    %231 = vmatprep.subr.mxu0 0.0
    %232 = vmatpush1.msra.mxu0 0.0
    %233 = vmatprep.subr.mxu0 0.0
    %234 = vmatpush1.msra.mxu0 0.0
    %235 = vmatprep.subr.mxu0 0.0
    %236 = vmatpush1.msra.mxu0 0.0
    %237 = vmatprep.subr.mxu0 0.0
    %238 = vmatpush1.msra.mxu0 0.0
    %239 = vmatprep.subr.mxu0 0.0
    %240 = vmatpush1.msra.mxu0 0.0
    %241 = vmatprep.subr.mxu0 0.0
    %242 = vmatpush1.msra.mxu0 0.0
    %243 = vmatprep.subr.mxu0 0.0
    %244 = vmatpush1.msra.mxu0 0.0
    %245 = vmatprep.subr.mxu0 0.0
    %246 = vmatpush1.msra.mxu0 0.0
    %247 = vmatprep.subr.mxu0 0.0
    %248 = vmatpush1.msra.mxu0 0.0
    %249 = vmatprep.subr.mxu0 0.0
    %250 = vmatpush1.msra.mxu0 0.0
    %251 = vmatprep.subr.mxu0 0.0
    %252 = vmatpush1.msra.mxu0 0.0
    %253 = vmatprep.subr.mxu0 0.0
    %254 = vmatpush1.msra.mxu0 0.0
    %255 = vmatprep.subr.mxu0 0.0
    %256 = vmatpush1.msra.mxu0 0.0
    %257 = vmatprep.subr.mxu0 0.0
    %258 = vmatpush1.msra.mxu0 0.0
    %259 = vmatprep.subr.mxu0 0.0
    %260 = vmatpush1.msra.mxu0 0.0
    %261 = vmatprep.subr.mxu0 0.0
    %262 = vmatpush1.msra.mxu0 0.0
    %263 = vmatprep.subr.mxu0 0.0
    %264 = vmatpush1.msra.mxu0 0.0
    %265 = vmatprep.subr.mxu0 0.0
    %266 = vmatpush1.msra.mxu0 0.0
    %267 = vmatprep.subr.mxu0 0.0
    %268 = vmatpush1.msra.mxu0 0.0
    %269 = vmatprep.subr.mxu0 0.0
    %270 = vmatpush1.msra.mxu0 0.0
    %271 = vmatprep.subr.mxu0 0.0
    %272 = vmatpush1.msra.mxu0 0.0
    %273 = vmatprep.subr.mxu0 0.0
    %274 = vmatpush1.msra.mxu0 0.0
    %275 = vmatprep.subr.mxu0 0.0
    %276 = vmatpush1.msra.mxu0 0.0
    %277 = vmatprep.subr.mxu0 0.0
    %278 = vmatpush1.msra.mxu0 0.0
    %279 = vmatprep.subr.mxu0 0.0
    %280 = vmatpush1.msra.mxu0 0.0
    %281 = vmatprep.subr.mxu0 0.0
    %282 = vmatpush1.msra.mxu0 0.0
    %283 = vmatprep.subr.mxu0 0.0
    %284 = vmatpush1.msra.mxu0 0.0
    %285 = vmatprep.subr.mxu0 0.0
    %286 = vmatpush1.msra.mxu0 0.0
    %287 = vmatprep.subr.mxu0 0.0
    %288 = vmatpush1.msra.mxu0 0.0
    %289 = vmatprep.subr.mxu0 0.0
    %290 = vmatpush1.msra.mxu0 0.0
    %291 = vmatprep.subr.mxu0 0.0
    %292 = vmatpush1.msra.mxu0 0.0
    %293 = vmatprep.mubr.f32.mxu0 0.0
    %294 = vmatmul.mubr.f32.gmra.mrb[0].mxu0 %v227
    %v295 = vpop.f32.mrb[0].mxu0
    %v296 = vadd.f32 0.0, %v295
    %v297 = vpop.f32.mrb[0].mxu0
    %298 = vdwg.mxu0
    %v299 = vld [vmem:[#allocation2] sm:$0xff]
    %v300 = vld [vmem:[#allocation2 + $0x8] sm:$0xff]
    %v301 = vld [vmem:[#allocation2 + $0x10] sm:$0xff]
    %v302 = vld [vmem:[#allocation2 + $0x18] sm:$0xff]
    %v303 = vld [vmem:[#allocation2 + $0x20] sm:$0xff]
    %v304 = vld [vmem:[#allocation2 + $0x28] sm:$0xff]
    %v305 = vld [vmem:[#allocation2 + $0x30] sm:$0xff]
    %v306 = vld [vmem:[#allocation2 + $0x38] sm:$0xff]
    %v307 = vld [vmem:[#allocation2 + $0x40] sm:$0xff]
    %v308 = vld [vmem:[#allocation2 + $0x48] sm:$0xff]
    %v309 = vld [vmem:[#allocation2 + $0x50] sm:$0xff]
    %v310 = vld [vmem:[#allocation2 + $0x58] sm:$0xff]
    %v311 = vld [vmem:[#allocation2 + $0x60] sm:$0xff]
    %v312 = vld [vmem:[#allocation2 + $0x68] sm:$0xff]
    %v313 = vld [vmem:[#allocation2 + $0x70] sm:$0xff]
    %v314 = vld [vmem:[#allocation2 + $0x78] sm:$0xff]
    %v315 = vld [vmem:[%s6] sm:$0xff]
    %v316 = vld [vmem:[%s6 + $0x8] sm:$0xff]
    %v317 = vld [vmem:[%s6 + $0x10] sm:$0xff]
    %v318 = vld [vmem:[%s6 + $0x18] sm:$0xff]
    %v319 = vld [vmem:[%s6 + $0x20] sm:$0xff]
    %v320 = vld [vmem:[%s6 + $0x28] sm:$0xff]
    %v321 = vld [vmem:[%s6 + $0x30] sm:$0xff]
    %v322 = vld [vmem:[%s6 + $0x38] sm:$0xff]
    %v323 = vld [vmem:[%s6 + $0x40] sm:$0xff]
    %v324 = vld [vmem:[%s6 + $0x48] sm:$0xff]
    %v325 = vld [vmem:[%s6 + $0x50] sm:$0xff]
    %v326 = vld [vmem:[%s6 + $0x58] sm:$0xff]
    %v327 = vld [vmem:[%s6 + $0x60] sm:$0xff]
    %v328 = vld [vmem:[%s6 + $0x68] sm:$0xff]
    %v329 = vld [vmem:[%s6 + $0x70] sm:$0xff]
    %v330 = vld [vmem:[%s6 + $0x78] sm:$0xff]
    %v331 = vld [vmem:[%s6 + $0x80] sm:$0xff]
    %v332 = vld [vmem:[%s6 + $0x88] sm:$0xff]
    %v333 = vld [vmem:[%s6 + $0x90] sm:$0xff]
    %v334 = vld [vmem:[%s6 + $0x98] sm:$0xff]
    %v335 = vld [vmem:[%s6 + $0xa0] sm:$0xff]
    %v336 = vld [vmem:[%s6 + $0xa8] sm:$0xff]
    %v337 = vld [vmem:[%s6 + $0xb0] sm:$0xff]
    %v338 = vld [vmem:[%s6 + $0xb8] sm:$0xff]
    %v339 = vld [vmem:[%s6 + $0xc0] sm:$0xff]
    %v340 = vld [vmem:[%s6 + $0xc8] sm:$0xff]
    %v341 = vld [vmem:[%s6 + $0xd0] sm:$0xff]
    %v342 = vld [vmem:[%s6 + $0xd8] sm:$0xff]
    %v343 = vld [vmem:[%s6 + $0xe0] sm:$0xff]
    %v344 = vld [vmem:[%s6 + $0xe8] sm:$0xff]
    %v345 = vld [vmem:[%s6 + $0xf0] sm:$0xff]
    %v346 = vld [vmem:[%s6 + $0xf8] sm:$0xff]
    %v347 = vld [vmem:[%s6 + $0x100] sm:$0xff]
    %v348 = vld [vmem:[%s6 + $0x108] sm:$0xff]
    %v349 = vld [vmem:[%s6 + $0x110] sm:$0xff]
    %v350 = vld [vmem:[%s6 + $0x118] sm:$0xff]
    %v351 = vld [vmem:[%s6 + $0x120] sm:$0xff]
    %v352 = vld [vmem:[%s6 + $0x128] sm:$0xff]
    %v353 = vld [vmem:[%s6 + $0x130] sm:$0xff]
    %v354 = vld [vmem:[%s6 + $0x138] sm:$0xff]
    %v355 = vld [vmem:[%s6 + $0x140] sm:$0xff]
    %v356 = vld [vmem:[%s6 + $0x148] sm:$0xff]
    %v357 = vld [vmem:[%s6 + $0x150] sm:$0xff]
    %v358 = vld [vmem:[%s6 + $0x158] sm:$0xff]
    %v359 = vld [vmem:[%s6 + $0x160] sm:$0xff]
    %v360 = vld [vmem:[%s6 + $0x168] sm:$0xff]
    %v361 = vld [vmem:[%s6 + $0x170] sm:$0xff]
    %v362 = vld [vmem:[%s6 + $0x178] sm:$0xff]
    %v363 = vld [vmem:[%s6 + $0x180] sm:$0xff]
    %v364 = vld [vmem:[%s6 + $0x188] sm:$0xff]
    %v365 = vld [vmem:[%s6 + $0x190] sm:$0xff]
    %v366 = vld [vmem:[%s6 + $0x198] sm:$0xff]
    %v367 = vld [vmem:[%s6 + $0x1a0] sm:$0xff]
    %v368 = vld [vmem:[%s6 + $0x1a8] sm:$0xff]
    %v369 = vld [vmem:[%s6 + $0x1b0] sm:$0xff]
    %v370 = vld [vmem:[%s6 + $0x1b8] sm:$0xff]
    %v371 = vld [vmem:[%s6 + $0x1c0] sm:$0xff]
    %v372 = vld [vmem:[%s6 + $0x1c8] sm:$0xff]
    %v373 = vld [vmem:[%s6 + $0x1d0] sm:$0xff]
    %v374 = vld [vmem:[%s6 + $0x1d8] sm:$0xff]
    %v375 = vld [vmem:[%s6 + $0x1e0] sm:$0xff]
    %v376 = vld [vmem:[%s6 + $0x1e8] sm:$0xff]
    %v377 = vld [vmem:[%s6 + $0x1f0] sm:$0xff]
    %v378 = vld [vmem:[%s6 + $0x1f8] sm:$0xff]
    %v379 = vld [vmem:[%s7] sm:$0xf]
    %v381 = vlaneseq
    %v382 = vshrl.u32 %v381, 7
    %v383 = vsub.s32 0, %v382
    %v384 = vrot.slane %v379, %v383
    %v385 = vlaneseq
    %v386 = vshrl.u32 %v385, 7
    %v387 = vsub.s32 1, %v386
    %v388 = vrot.slane %v379, %v387
    %v389 = vlaneseq
    %v390 = vshrl.u32 %v389, 7
    %v391 = vsub.s32 2, %v390
    %v392 = vrot.slane %v379, %v391
    %v393 = vlaneseq
    %v394 = vshrl.u32 %v393, 7
    %v395 = vsub.s32 3, %v394
    %v396 = vrot.slane %v379, %v395
    %401 = vmatprep.subr.mxu0 %v316
    %402 = vmatpush1.msra.mxu0 %v315
    %403 = vmatprep.subr.mxu0 %v320
    %404 = vmatpush1.msra.mxu0 %v319
    %405 = vmatprep.subr.mxu0 %v324
    %406 = vmatpush1.msra.mxu0 %v323
    %407 = vmatprep.subr.mxu0 %v328
    %408 = vmatpush1.msra.mxu0 %v327
    %409 = vmatprep.subr.mxu0 %v332
    %410 = vmatpush1.msra.mxu0 %v331
    %411 = vmatprep.subr.mxu0 %v336
    %412 = vmatpush1.msra.mxu0 %v335
    %413 = vmatprep.subr.mxu0 %v340
    %414 = vmatpush1.msra.mxu0 %v339
    %415 = vmatprep.subr.mxu0 %v344
    %416 = vmatpush1.msra.mxu0 %v343
    %417 = vmatprep.subr.mxu0 %v348
    %418 = vmatpush1.msra.mxu0 %v347
    %419 = vmatprep.subr.mxu0 %v352
    %420 = vmatpush1.msra.mxu0 %v351
    %421 = vmatprep.subr.mxu0 %v356
    %422 = vmatpush1.msra.mxu0 %v355
    %423 = vmatprep.subr.mxu0 %v360
    %424 = vmatpush1.msra.mxu0 %v359
    %425 = vmatprep.subr.mxu0 %v364
    %426 = vmatpush1.msra.mxu0 %v363
    %427 = vmatprep.subr.mxu0 %v368
    %428 = vmatpush1.msra.mxu0 %v367
    %429 = vmatprep.subr.mxu0 %v372
    %430 = vmatpush1.msra.mxu0 %v371
    %431 = vmatprep.subr.mxu0 %v376
    %432 = vmatpush1.msra.mxu0 %v375
    %433 = vmatprep.subr.mxu0 0.0
    %434 = vmatpush1.msra.mxu0 0.0
    %435 = vmatprep.subr.mxu0 0.0
    %436 = vmatpush1.msra.mxu0 0.0
    %437 = vmatprep.subr.mxu0 0.0
    %438 = vmatpush1.msra.mxu0 0.0
    %439 = vmatprep.subr.mxu0 0.0
    %440 = vmatpush1.msra.mxu0 0.0
    %441 = vmatprep.subr.mxu0 0.0
    %442 = vmatpush1.msra.mxu0 0.0
    %443 = vmatprep.subr.mxu0 0.0
    %444 = vmatpush1.msra.mxu0 0.0
    %445 = vmatprep.subr.mxu0 0.0
    %446 = vmatpush1.msra.mxu0 0.0
    %447 = vmatprep.subr.mxu0 0.0
    %448 = vmatpush1.msra.mxu0 0.0
    %449 = vmatprep.subr.mxu0 0.0
    %450 = vmatpush1.msra.mxu0 0.0
    %451 = vmatprep.subr.mxu0 0.0
    %452 = vmatpush1.msra.mxu0 0.0
    %453 = vmatprep.subr.mxu0 0.0
    %454 = vmatpush1.msra.mxu0 0.0
    %455 = vmatprep.subr.mxu0 0.0
    %456 = vmatpush1.msra.mxu0 0.0
    %457 = vmatprep.subr.mxu0 0.0
    %458 = vmatpush1.msra.mxu0 0.0
    %459 = vmatprep.subr.mxu0 0.0
    %460 = vmatpush1.msra.mxu0 0.0
    %461 = vmatprep.subr.mxu0 0.0
    %462 = vmatpush1.msra.mxu0 0.0
    %463 = vmatprep.subr.mxu0 0.0
    %464 = vmatpush1.msra.mxu0 0.0
    %465 = vmatprep.mubr.f32.mxu0 0.0
    %466 = vmatmul.mubr.f32.gmra.mrb[0].mxu0 %v299
    %v467 = vpop.f32.mrb[0].mxu0
    %v468 = vadd.f32 %v384, %v467
    %v469 = vpop.f32.mrb[0].mxu0
    %v470 = vadd.f32 %v388, %v469
    %471 = vmatprep.mubr.f32.mxu0 0.0
    %472 = vmatmul.mubr.f32.gmra.mrb[0].mxu0 %v300
    %v473 = vpop.f32.mrb[0].mxu0
    %v474 = vadd.f32 %v384, %v473
    %v475 = vpop.f32.mrb[0].mxu0
    %v476 = vadd.f32 %v388, %v475
    %477 = vmatprep.mubr.f32.mxu0 0.0
    %478 = vmatmul.mubr.f32.gmra.mrb[0].mxu0 %v301
    %v479 = vpop.f32.mrb[0].mxu0
    %v480 = vadd.f32 %v384, %v479
    %v481 = vpop.f32.mrb[0].mxu0
    %v482 = vadd.f32 %v388, %v481
    %483 = vmatprep.mubr.f32.mxu0 0.0
    %484 = vmatmul.mubr.f32.gmra.mrb[0].mxu0 %v302
    %v485 = vpop.f32.mrb[0].mxu0
    %v486 = vadd.f32 %v384, %v485
    %v487 = vpop.f32.mrb[0].mxu0
    %v488 = vadd.f32 %v388, %v487
    %489 = vmatprep.mubr.f32.mxu0 0.0
    %490 = vmatmul.mubr.f32.gmra.mrb[0].mxu0 %v303
    %v491 = vpop.f32.mrb[0].mxu0
    %v492 = vadd.f32 %v384, %v491
    %v493 = vpop.f32.mrb[0].mxu0
    %v494 = vadd.f32 %v388, %v493
    %495 = vmatprep.mubr.f32.mxu0 0.0
    %496 = vmatmul.mubr.f32.gmra.mrb[0].mxu0 %v304
    %v497 = vpop.f32.mrb[0].mxu0
    %v498 = vadd.f32 %v384, %v497
    %v499 = vpop.f32.mrb[0].mxu0
    %v500 = vadd.f32 %v388, %v499
    %501 = vmatprep.mubr.f32.mxu0 0.0
    %502 = vmatmul.mubr.f32.gmra.mrb[0].mxu0 %v305
    %v503 = vpop.f32.mrb[0].mxu0
    %v504 = vadd.f32 %v384, %v503
    %v505 = vpop.f32.mrb[0].mxu0
    %v506 = vadd.f32 %v388, %v505
    %507 = vmatprep.mubr.f32.mxu0 0.0
    %508 = vmatmul.mubr.f32.gmra.mrb[0].mxu0 %v306
    %v509 = vpop.f32.mrb[0].mxu0
    %v510 = vadd.f32 %v384, %v509
    %v511 = vpop.f32.mrb[0].mxu0
    %v512 = vadd.f32 %v388, %v511
    %513 = vmatprep.mubr.f32.mxu0 0.0
    %514 = vmatmul.mubr.f32.gmra.mrb[0].mxu0 %v307
    %v515 = vpop.f32.mrb[0].mxu0
    %v516 = vadd.f32 %v384, %v515
    %v517 = vpop.f32.mrb[0].mxu0
    %v518 = vadd.f32 %v388, %v517
    %519 = vmatprep.mubr.f32.mxu0 0.0
    %520 = vmatmul.mubr.f32.gmra.mrb[0].mxu0 %v308
    %v521 = vpop.f32.mrb[0].mxu0
    %v522 = vadd.f32 %v384, %v521
    %v523 = vpop.f32.mrb[0].mxu0
    %v524 = vadd.f32 %v388, %v523
    %525 = vmatprep.mubr.f32.mxu0 0.0
    %526 = vmatmul.mubr.f32.gmra.mrb[0].mxu0 %v309
    %v527 = vpop.f32.mrb[0].mxu0
    %v528 = vadd.f32 %v384, %v527
    %v529 = vpop.f32.mrb[0].mxu0
    %v530 = vadd.f32 %v388, %v529
    %531 = vmatprep.mubr.f32.mxu0 0.0
    %532 = vmatmul.mubr.f32.gmra.mrb[0].mxu0 %v310
    %v533 = vpop.f32.mrb[0].mxu0
    %v534 = vadd.f32 %v384, %v533
    %v535 = vpop.f32.mrb[0].mxu0
    %v536 = vadd.f32 %v388, %v535
    %537 = vmatprep.mubr.f32.mxu0 0.0
    %538 = vmatmul.mubr.f32.gmra.mrb[0].mxu0 %v311
    %v539 = vpop.f32.mrb[0].mxu0
    %v540 = vadd.f32 %v384, %v539
    %v541 = vpop.f32.mrb[0].mxu0
    %v542 = vadd.f32 %v388, %v541
    %543 = vmatprep.mubr.f32.mxu0 0.0
    %544 = vmatmul.mubr.f32.gmra.mrb[0].mxu0 %v312
    %v545 = vpop.f32.mrb[0].mxu0
    %v546 = vadd.f32 %v384, %v545
    %v547 = vpop.f32.mrb[0].mxu0
    %v548 = vadd.f32 %v388, %v547
    %549 = vmatprep.mubr.f32.mxu0 0.0
    %550 = vmatmul.mubr.f32.gmra.mrb[0].mxu0 %v313
    %v551 = vpop.f32.mrb[0].mxu0
    %v552 = vadd.f32 %v384, %v551
    %v553 = vpop.f32.mrb[0].mxu0
    %v554 = vadd.f32 %v388, %v553
    %555 = vmatprep.mubr.f32.mxu0 0.0
    %556 = vmatmul.mubr.f32.gmra.mrb[0].mxu0 %v314
    %v557 = vpop.f32.mrb[0].mxu0
    %v558 = vadd.f32 %v384, %v557
    %v559 = vpop.f32.mrb[0].mxu0
    %v560 = vadd.f32 %v388, %v559
    %561 = vdwg.mxu0
    %562 = vmatprep.subr.mxu0 %v318
    %563 = vmatpush1.msra.mxu0 %v317
    %564 = vmatprep.subr.mxu0 %v322
    %565 = vmatpush1.msra.mxu0 %v321
    %566 = vmatprep.subr.mxu0 %v326
    %567 = vmatpush1.msra.mxu0 %v325
    %568 = vmatprep.subr.mxu0 %v330
    %569 = vmatpush1.msra.mxu0 %v329
    %570 = vmatprep.subr.mxu0 %v334
    %571 = vmatpush1.msra.mxu0 %v333
    %572 = vmatprep.subr.mxu0 %v338
    %573 = vmatpush1.msra.mxu0 %v337
    %574 = vmatprep.subr.mxu0 %v342
    %575 = vmatpush1.msra.mxu0 %v341
    %576 = vmatprep.subr.mxu0 %v346
    %577 = vmatpush1.msra.mxu0 %v345
    %578 = vmatprep.subr.mxu0 %v350
    %579 = vmatpush1.msra.mxu0 %v349
    %580 = vmatprep.subr.mxu0 %v354
    %581 = vmatpush1.msra.mxu0 %v353
    %582 = vmatprep.subr.mxu0 %v358
    %583 = vmatpush1.msra.mxu0 %v357
    %584 = vmatprep.subr.mxu0 %v362
    %585 = vmatpush1.msra.mxu0 %v361
    %586 = vmatprep.subr.mxu0 %v366
    %587 = vmatpush1.msra.mxu0 %v365
    %588 = vmatprep.subr.mxu0 %v370
    %589 = vmatpush1.msra.mxu0 %v369
    %590 = vmatprep.subr.mxu0 %v374
    %591 = vmatpush1.msra.mxu0 %v373
    %592 = vmatprep.subr.mxu0 %v378
    %593 = vmatpush1.msra.mxu0 %v377
    %594 = vmatprep.subr.mxu0 0.0
    %595 = vmatpush1.msra.mxu0 0.0
    %596 = vmatprep.subr.mxu0 0.0
    %597 = vmatpush1.msra.mxu0 0.0
    %598 = vmatprep.subr.mxu0 0.0
    %599 = vmatpush1.msra.mxu0 0.0
    %600 = vmatprep.subr.mxu0 0.0
    %601 = vmatpush1.msra.mxu0 0.0
    %602 = vmatprep.subr.mxu0 0.0
    %603 = vmatpush1.msra.mxu0 0.0
    %604 = vmatprep.subr.mxu0 0.0
    %605 = vmatpush1.msra.mxu0 0.0
    %606 = vmatprep.subr.mxu0 0.0
    %607 = vmatpush1.msra.mxu0 0.0
    %608 = vmatprep.subr.mxu0 0.0
    %609 = vmatpush1.msra.mxu0 0.0
    %610 = vmatprep.subr.mxu0 0.0
    %611 = vmatpush1.msra.mxu0 0.0
    %612 = vmatprep.subr.mxu0 0.0
    %613 = vmatpush1.msra.mxu0 0.0
    %614 = vmatprep.subr.mxu0 0.0
    %615 = vmatpush1.msra.mxu0 0.0
    %616 = vmatprep.subr.mxu0 0.0
    %617 = vmatpush1.msra.mxu0 0.0
    %618 = vmatprep.subr.mxu0 0.0
    %619 = vmatpush1.msra.mxu0 0.0
    %620 = vmatprep.subr.mxu0 0.0
    %621 = vmatpush1.msra.mxu0 0.0
    %622 = vmatprep.subr.mxu0 0.0
    %623 = vmatpush1.msra.mxu0 0.0
    %624 = vmatprep.subr.mxu0 0.0
    %625 = vmatpush1.msra.mxu0 0.0
    %626 = vmatprep.mubr.f32.mxu0 0.0
    %627 = vmatmul.mubr.f32.gmra.mrb[0].mxu0 %v299
    %v628 = vpop.f32.mrb[0].mxu0
    %v629 = vadd.f32 %v392, %v628
    %v630 = vpop.f32.mrb[0].mxu0
    %v631 = vadd.f32 %v396, %v630
    %632 = vmatprep.mubr.f32.mxu0 0.0
    %633 = vmatmul.mubr.f32.gmra.mrb[0].mxu0 %v300
    %v634 = vpop.f32.mrb[0].mxu0
    %v635 = vadd.f32 %v392, %v634
    %v636 = vpop.f32.mrb[0].mxu0
    %v637 = vadd.f32 %v396, %v636
    %638 = vmatprep.mubr.f32.mxu0 0.0
    %639 = vmatmul.mubr.f32.gmra.mrb[0].mxu0 %v301
    %v640 = vpop.f32.mrb[0].mxu0
    %v641 = vadd.f32 %v392, %v640
    %v642 = vpop.f32.mrb[0].mxu0
    %v643 = vadd.f32 %v396, %v642
    %644 = vmatprep.mubr.f32.mxu0 0.0
    %645 = vmatmul.mubr.f32.gmra.mrb[0].mxu0 %v302
    %v646 = vpop.f32.mrb[0].mxu0
    %v647 = vadd.f32 %v392, %v646
    %v648 = vpop.f32.mrb[0].mxu0
    %v649 = vadd.f32 %v396, %v648
    %650 = vmatprep.mubr.f32.mxu0 0.0
    %651 = vmatmul.mubr.f32.gmra.mrb[0].mxu0 %v303
    %v652 = vpop.f32.mrb[0].mxu0
    %v653 = vadd.f32 %v392, %v652
    %v654 = vpop.f32.mrb[0].mxu0
    %v655 = vadd.f32 %v396, %v654
    %656 = vmatprep.mubr.f32.mxu0 0.0
    %657 = vmatmul.mubr.f32.gmra.mrb[0].mxu0 %v304
    %v658 = vpop.f32.mrb[0].mxu0
    %v659 = vadd.f32 %v392, %v658
    %v660 = vpop.f32.mrb[0].mxu0
    %v661 = vadd.f32 %v396, %v660
    %662 = vmatprep.mubr.f32.mxu0 0.0
    %663 = vmatmul.mubr.f32.gmra.mrb[0].mxu0 %v305
    %v664 = vpop.f32.mrb[0].mxu0
    %v665 = vadd.f32 %v392, %v664
    %v666 = vpop.f32.mrb[0].mxu0
    %v667 = vadd.f32 %v396, %v666
    %668 = vmatprep.mubr.f32.mxu0 0.0
    %669 = vmatmul.mubr.f32.gmra.mrb[0].mxu0 %v306
    %v670 = vpop.f32.mrb[0].mxu0
    %v671 = vadd.f32 %v392, %v670
    %v672 = vpop.f32.mrb[0].mxu0
    %v673 = vadd.f32 %v396, %v672
    %674 = vmatprep.mubr.f32.mxu0 0.0
    %675 = vmatmul.mubr.f32.gmra.mrb[0].mxu0 %v307
    %v676 = vpop.f32.mrb[0].mxu0
    %v677 = vadd.f32 %v392, %v676
    %v678 = vpop.f32.mrb[0].mxu0
    %v679 = vadd.f32 %v396, %v678
    %680 = vmatprep.mubr.f32.mxu0 0.0
    %681 = vmatmul.mubr.f32.gmra.mrb[0].mxu0 %v308
    %v682 = vpop.f32.mrb[0].mxu0
    %v683 = vadd.f32 %v392, %v682
    %v684 = vpop.f32.mrb[0].mxu0
    %v685 = vadd.f32 %v396, %v684
    %686 = vmatprep.mubr.f32.mxu0 0.0
    %687 = vmatmul.mubr.f32.gmra.mrb[0].mxu0 %v309
    %v688 = vpop.f32.mrb[0].mxu0
    %v689 = vadd.f32 %v392, %v688
    %v690 = vpop.f32.mrb[0].mxu0
    %v691 = vadd.f32 %v396, %v690
    %692 = vmatprep.mubr.f32.mxu0 0.0
    %693 = vmatmul.mubr.f32.gmra.mrb[0].mxu0 %v310
    %v694 = vpop.f32.mrb[0].mxu0
    %v695 = vadd.f32 %v392, %v694
    %v696 = vpop.f32.mrb[0].mxu0
    %v697 = vadd.f32 %v396, %v696
    %698 = vmatprep.mubr.f32.mxu0 0.0
    %699 = vmatmul.mubr.f32.gmra.mrb[0].mxu0 %v311
    %v700 = vpop.f32.mrb[0].mxu0
    %v701 = vadd.f32 %v392, %v700
    %v702 = vpop.f32.mrb[0].mxu0
    %v703 = vadd.f32 %v396, %v702
    %704 = vmatprep.mubr.f32.mxu0 0.0
    %705 = vmatmul.mubr.f32.gmra.mrb[0].mxu0 %v312
    %v706 = vpop.f32.mrb[0].mxu0
    %v707 = vadd.f32 %v392, %v706
    %v708 = vpop.f32.mrb[0].mxu0
    %v709 = vadd.f32 %v396, %v708
    %710 = vmatprep.mubr.f32.mxu0 0.0
    %711 = vmatmul.mubr.f32.gmra.mrb[0].mxu0 %v313
    %v712 = vpop.f32.mrb[0].mxu0
    %v713 = vadd.f32 %v392, %v712
    %v714 = vpop.f32.mrb[0].mxu0
    %v715 = vadd.f32 %v396, %v714
    %716 = vmatprep.mubr.f32.mxu0 0.0
    %717 = vmatmul.mubr.f32.gmra.mrb[0].mxu0 %v314
    %v718 = vpop.f32.mrb[0].mxu0
    %v719 = vadd.f32 %v392, %v718
    %v720 = vpop.f32.mrb[0].mxu0
    %v721 = vadd.f32 %v396, %v720
    %722 = vdwg.mxu0
    %v723 = vld [vmem:[#allocation6] sm:$0xff]
    %v724 = vld [vmem:[#allocation6 + $0x8] sm:$0xff]
    %v725 = vld [vmem:[#allocation6 + $0x10] sm:$0xff]
    %v726 = vld [vmem:[#allocation6 + $0x18] sm:$0xff]
    %v727 = vld [vmem:[#allocation6 + $0x20] sm:$0xff]
    %v728 = vld [vmem:[#allocation6 + $0x28] sm:$0xff]
    %v729 = vld [vmem:[#allocation6 + $0x30] sm:$0xff]
    %v730 = vld [vmem:[#allocation6 + $0x38] sm:$0xff]
    %v731 = vld [vmem:[#allocation6 + $0x40] sm:$0xff]
    %v732 = vld [vmem:[#allocation6 + $0x48] sm:$0xff]
    %v733 = vld [vmem:[#allocation6 + $0x50] sm:$0xff]
    %v734 = vld [vmem:[#allocation6 + $0x58] sm:$0xff]
    %v735 = vld [vmem:[#allocation6 + $0x60] sm:$0xff]
    %v736 = vld [vmem:[#allocation6 + $0x68] sm:$0xff]
    %v737 = vld [vmem:[#allocation6 + $0x70] sm:$0xff]
    %v738 = vld [vmem:[#allocation6 + $0x78] sm:$0xff]
    %v739 = vld [vmem:[#allocation6 + $0x80] sm:$0xff]
    %v740 = vld [vmem:[#allocation6 + $0x88] sm:$0xff]
    %v741 = vld [vmem:[#allocation6 + $0x90] sm:$0xff]
    %v742 = vld [vmem:[#allocation6 + $0x98] sm:$0xff]
    %v743 = vld [vmem:[#allocation6 + $0xa0] sm:$0xff]
    %v744 = vld [vmem:[#allocation6 + $0xa8] sm:$0xff]
    %v745 = vld [vmem:[#allocation6 + $0xb0] sm:$0xff]
    %v746 = vld [vmem:[#allocation6 + $0xb8] sm:$0xff]
    %v747 = vld [vmem:[#allocation6 + $0xc0] sm:$0xff]
    %v748 = vld [vmem:[#allocation6 + $0xc8] sm:$0xff]
    %v749 = vld [vmem:[#allocation6 + $0xd0] sm:$0xff]
    %v750 = vld [vmem:[#allocation6 + $0xd8] sm:$0xff]
    %v751 = vld [vmem:[#allocation6 + $0xe0] sm:$0xff]
    %v752 = vld [vmem:[#allocation6 + $0xe8] sm:$0xff]
    %v753 = vld [vmem:[#allocation6 + $0xf0] sm:$0xff]
    %v754 = vld [vmem:[#allocation6 + $0xf8] sm:$0xff]
    %v755 = vld [vmem:[#allocation6 + $0x100] sm:$0xff]
    %v756 = vld [vmem:[#allocation6 + $0x108] sm:$0xff]
    %v757 = vld [vmem:[#allocation6 + $0x110] sm:$0xff]
    %v758 = vld [vmem:[#allocation6 + $0x118] sm:$0xff]
    %v759 = vld [vmem:[#allocation6 + $0x120] sm:$0xff]
    %v760 = vld [vmem:[#allocation6 + $0x128] sm:$0xff]
    %v761 = vld [vmem:[#allocation6 + $0x130] sm:$0xff]
    %v762 = vld [vmem:[#allocation6 + $0x138] sm:$0xff]
    %v763 = vld [vmem:[#allocation6 + $0x140] sm:$0xff]
    %v764 = vld [vmem:[#allocation6 + $0x148] sm:$0xff]
    %v765 = vld [vmem:[#allocation6 + $0x150] sm:$0xff]
    %v766 = vld [vmem:[#allocation6 + $0x158] sm:$0xff]
    %v767 = vld [vmem:[#allocation6 + $0x160] sm:$0xff]
    %v768 = vld [vmem:[#allocation6 + $0x168] sm:$0xff]
    %v769 = vld [vmem:[#allocation6 + $0x170] sm:$0xff]
    %v770 = vld [vmem:[#allocation6 + $0x178] sm:$0xff]
    %v771 = vld [vmem:[#allocation6 + $0x180] sm:$0xff]
    %v772 = vld [vmem:[#allocation6 + $0x188] sm:$0xff]
    %v773 = vld [vmem:[#allocation6 + $0x190] sm:$0xff]
    %v774 = vld [vmem:[#allocation6 + $0x198] sm:$0xff]
    %v775 = vld [vmem:[#allocation6 + $0x1a0] sm:$0xff]
    %v776 = vld [vmem:[#allocation6 + $0x1a8] sm:$0xff]
    %v777 = vld [vmem:[#allocation6 + $0x1b0] sm:$0xff]
    %v778 = vld [vmem:[#allocation6 + $0x1b8] sm:$0xff]
    %v779 = vld [vmem:[#allocation6 + $0x1c0] sm:$0xff]
    %v780 = vld [vmem:[#allocation6 + $0x1c8] sm:$0xff]
    %v781 = vld [vmem:[#allocation6 + $0x1d0] sm:$0xff]
    %v782 = vld [vmem:[#allocation6 + $0x1d8] sm:$0xff]
    %v783 = vld [vmem:[#allocation6 + $0x1e0] sm:$0xff]
    %v784 = vld [vmem:[#allocation6 + $0x1e8] sm:$0xff]
    %v785 = vld [vmem:[#allocation6 + $0x1f0] sm:$0xff]
    %v786 = vld [vmem:[#allocation6 + $0x1f8] sm:$0xff]
    %787 = vmatprep.subr.mxu0 %v470
    %788 = vmatpush1.msra.mxu0 %v468
    %789 = vmatprep.subr.mxu0 %v476
    %790 = vmatpush1.msra.mxu0 %v474
    %791 = vmatprep.subr.mxu0 %v482
    %792 = vmatpush1.msra.mxu0 %v480
    %793 = vmatprep.subr.mxu0 %v488
    %794 = vmatpush1.msra.mxu0 %v486
    %795 = vmatprep.subr.mxu0 %v494
    %796 = vmatpush1.msra.mxu0 %v492
    %797 = vmatprep.subr.mxu0 %v500
    %798 = vmatpush1.msra.mxu0 %v498
    %799 = vmatprep.subr.mxu0 %v506
    %800 = vmatpush1.msra.mxu0 %v504
    %801 = vmatprep.subr.mxu0 %v512
    %802 = vmatpush1.msra.mxu0 %v510
    %803 = vmatprep.subr.mxu0 %v518
    %804 = vmatpush1.msra.mxu0 %v516
    %805 = vmatprep.subr.mxu0 %v524
    %806 = vmatpush1.msra.mxu0 %v522
    %807 = vmatprep.subr.mxu0 %v530
    %808 = vmatpush1.msra.mxu0 %v528
    %809 = vmatprep.subr.mxu0 %v536
    %810 = vmatpush1.msra.mxu0 %v534
    %811 = vmatprep.subr.mxu0 %v542
    %812 = vmatpush1.msra.mxu0 %v540
    %813 = vmatprep.subr.mxu0 %v548
    %814 = vmatpush1.msra.mxu0 %v546
    %815 = vmatprep.subr.mxu0 %v554
    %816 = vmatpush1.msra.mxu0 %v552
    %817 = vmatprep.subr.mxu0 %v560
    %818 = vmatpush1.msra.mxu0 %v558
    %819 = vmatprep.subr.mxu0 0.0
    %820 = vmatpush1.msra.mxu0 0.0
    %821 = vmatprep.subr.mxu0 0.0
    %822 = vmatpush1.msra.mxu0 0.0
    %823 = vmatprep.subr.mxu0 0.0
    %824 = vmatpush1.msra.mxu0 0.0
    %825 = vmatprep.subr.mxu0 0.0
    %826 = vmatpush1.msra.mxu0 0.0
    %827 = vmatprep.subr.mxu0 0.0
    %828 = vmatpush1.msra.mxu0 0.0
    %829 = vmatprep.subr.mxu0 0.0
    %830 = vmatpush1.msra.mxu0 0.0
    %831 = vmatprep.subr.mxu0 0.0
    %832 = vmatpush1.msra.mxu0 0.0
    %833 = vmatprep.subr.mxu0 0.0
    %834 = vmatpush1.msra.mxu0 0.0
    %835 = vmatprep.subr.mxu0 0.0
    %836 = vmatpush1.msra.mxu0 0.0
    %837 = vmatprep.subr.mxu0 0.0
    %838 = vmatpush1.msra.mxu0 0.0
    %839 = vmatprep.subr.mxu0 0.0
    %840 = vmatpush1.msra.mxu0 0.0
    %841 = vmatprep.subr.mxu0 0.0
    %842 = vmatpush1.msra.mxu0 0.0
    %843 = vmatprep.subr.mxu0 0.0
    %844 = vmatpush1.msra.mxu0 0.0
    %845 = vmatprep.subr.mxu0 0.0
    %846 = vmatpush1.msra.mxu0 0.0
    %847 = vmatprep.subr.mxu0 0.0
    %848 = vmatpush1.msra.mxu0 0.0
    %849 = vmatprep.subr.mxu0 0.0
    %850 = vmatpush1.msra.mxu0 0.0
    %851 = vmatprep.mubr.f32.mxu0 0.0
    %852 = vmatmul.mubr.f32.gmra.mrb[0].mxu0 %v723
    %v853 = vpop.f32.mrb[0].mxu0
    %v854 = vadd.f32 0.0, %v853
    %v855 = vpop.f32.mrb[0].mxu0
    %v856 = vadd.f32 0.0, %v855
    %857 = vmatprep.mubr.f32.mxu0 0.0
    %858 = vmatmul.mubr.f32.gmra.mrb[0].mxu0 %v724
    %v859 = vpop.f32.mrb[0].mxu0
    %v860 = vadd.f32 0.0, %v859
    %v861 = vpop.f32.mrb[0].mxu0
    %v862 = vadd.f32 0.0, %v861
    %863 = vmatprep.mubr.f32.mxu0 0.0
    %864 = vmatmul.mubr.f32.gmra.mrb[0].mxu0 %v725
    %v865 = vpop.f32.mrb[0].mxu0
    %v866 = vadd.f32 0.0, %v865
    %v867 = vpop.f32.mrb[0].mxu0
    %v868 = vadd.f32 0.0, %v867
    %869 = vmatprep.mubr.f32.mxu0 0.0
    %870 = vmatmul.mubr.f32.gmra.mrb[0].mxu0 %v726
    %v871 = vpop.f32.mrb[0].mxu0
    %v872 = vadd.f32 0.0, %v871
    %v873 = vpop.f32.mrb[0].mxu0
    %v874 = vadd.f32 0.0, %v873
    %875 = vmatprep.mubr.f32.mxu0 0.0
    %876 = vmatmul.mubr.f32.gmra.mrb[0].mxu0 %v727
    %v877 = vpop.f32.mrb[0].mxu0
    %v878 = vadd.f32 0.0, %v877
    %v879 = vpop.f32.mrb[0].mxu0
    %v880 = vadd.f32 0.0, %v879
    %881 = vmatprep.mubr.f32.mxu0 0.0
    %882 = vmatmul.mubr.f32.gmra.mrb[0].mxu0 %v728
    %v883 = vpop.f32.mrb[0].mxu0
    %v884 = vadd.f32 0.0, %v883
    %v885 = vpop.f32.mrb[0].mxu0
    %v886 = vadd.f32 0.0, %v885
    %887 = vmatprep.mubr.f32.mxu0 0.0
    %888 = vmatmul.mubr.f32.gmra.mrb[0].mxu0 %v729
    %v889 = vpop.f32.mrb[0].mxu0
    %v890 = vadd.f32 0.0, %v889
    %v891 = vpop.f32.mrb[0].mxu0
    %v892 = vadd.f32 0.0, %v891
    %893 = vmatprep.mubr.f32.mxu0 0.0
    %894 = vmatmul.mubr.f32.gmra.mrb[0].mxu0 %v730
    %v895 = vpop.f32.mrb[0].mxu0
    %v896 = vadd.f32 0.0, %v895
    %v897 = vpop.f32.mrb[0].mxu0
    %v898 = vadd.f32 0.0, %v897
    %899 = vmatprep.mubr.f32.mxu0 0.0
    %900 = vmatmul.mubr.f32.gmra.mrb[0].mxu0 %v731
    %v901 = vpop.f32.mrb[0].mxu0
    %v902 = vadd.f32 0.0, %v901
    %v903 = vpop.f32.mrb[0].mxu0
    %v904 = vadd.f32 0.0, %v903
    %905 = vmatprep.mubr.f32.mxu0 0.0
    %906 = vmatmul.mubr.f32.gmra.mrb[0].mxu0 %v732
    %v907 = vpop.f32.mrb[0].mxu0
    %v908 = vadd.f32 0.0, %v907
    %v909 = vpop.f32.mrb[0].mxu0
    %v910 = vadd.f32 0.0, %v909
    %911 = vmatprep.mubr.f32.mxu0 0.0
    %912 = vmatmul.mubr.f32.gmra.mrb[0].mxu0 %v733
    %v913 = vpop.f32.mrb[0].mxu0
    %v914 = vadd.f32 0.0, %v913
    %v915 = vpop.f32.mrb[0].mxu0
    %v916 = vadd.f32 0.0, %v915
    %917 = vmatprep.mubr.f32.mxu0 0.0
    %918 = vmatmul.mubr.f32.gmra.mrb[0].mxu0 %v734
    %v919 = vpop.f32.mrb[0].mxu0
    %v920 = vadd.f32 0.0, %v919
    %v921 = vpop.f32.mrb[0].mxu0
    %v922 = vadd.f32 0.0, %v921
    %923 = vmatprep.mubr.f32.mxu0 0.0
    %924 = vmatmul.mubr.f32.gmra.mrb[0].mxu0 %v735
    %v925 = vpop.f32.mrb[0].mxu0
    %v926 = vadd.f32 0.0, %v925
    %v927 = vpop.f32.mrb[0].mxu0
    %v928 = vadd.f32 0.0, %v927
    %929 = vmatprep.mubr.f32.mxu0 0.0
    %930 = vmatmul.mubr.f32.gmra.mrb[0].mxu0 %v736
    %v931 = vpop.f32.mrb[0].mxu0
    %v932 = vadd.f32 0.0, %v931
    %v933 = vpop.f32.mrb[0].mxu0
    %v934 = vadd.f32 0.0, %v933
    %935 = vmatprep.mubr.f32.mxu0 0.0
    %936 = vmatmul.mubr.f32.gmra.mrb[0].mxu0 %v737
    %v937 = vpop.f32.mrb[0].mxu0
    %v938 = vadd.f32 0.0, %v937
    %v939 = vpop.f32.mrb[0].mxu0
    %v940 = vadd.f32 0.0, %v939
    %941 = vmatprep.mubr.f32.mxu0 0.0
    %942 = vmatmul.mubr.f32.gmra.mrb[0].mxu0 %v738
    %v943 = vpop.f32.mrb[0].mxu0
    %v944 = vadd.f32 0.0, %v943
    %v945 = vpop.f32.mrb[0].mxu0
    %v946 = vadd.f32 0.0, %v945
    %947 = vmatprep.mubr.f32.mxu0 0.0
    %948 = vmatmul.mubr.f32.gmra.mrb[0].mxu0 %v739
    %v949 = vpop.f32.mrb[0].mxu0
    %v950 = vadd.f32 0.0, %v949
    %v951 = vpop.f32.mrb[0].mxu0
    %v952 = vadd.f32 0.0, %v951
    %953 = vmatprep.mubr.f32.mxu0 0.0
    %954 = vmatmul.mubr.f32.gmra.mrb[0].mxu0 %v740
    %v955 = vpop.f32.mrb[0].mxu0
    %v956 = vadd.f32 0.0, %v955
    %v957 = vpop.f32.mrb[0].mxu0
    %v958 = vadd.f32 0.0, %v957
    %959 = vmatprep.mubr.f32.mxu0 0.0
    %960 = vmatmul.mubr.f32.gmra.mrb[0].mxu0 %v741
    %v961 = vpop.f32.mrb[0].mxu0
    %v962 = vadd.f32 0.0, %v961
    %v963 = vpop.f32.mrb[0].mxu0
    %v964 = vadd.f32 0.0, %v963
    %965 = vmatprep.mubr.f32.mxu0 0.0
    %966 = vmatmul.mubr.f32.gmra.mrb[0].mxu0 %v742
    %v967 = vpop.f32.mrb[0].mxu0
    %v968 = vadd.f32 0.0, %v967
    %v969 = vpop.f32.mrb[0].mxu0
    %v970 = vadd.f32 0.0, %v969
    %971 = vmatprep.mubr.f32.mxu0 0.0
    %972 = vmatmul.mubr.f32.gmra.mrb[0].mxu0 %v743
    %v973 = vpop.f32.mrb[0].mxu0
    %v974 = vadd.f32 0.0, %v973
    %v975 = vpop.f32.mrb[0].mxu0
    %v976 = vadd.f32 0.0, %v975
    %977 = vmatprep.mubr.f32.mxu0 0.0
    %978 = vmatmul.mubr.f32.gmra.mrb[0].mxu0 %v744
    %v979 = vpop.f32.mrb[0].mxu0
    %v980 = vadd.f32 0.0, %v979
    %v981 = vpop.f32.mrb[0].mxu0
    %v982 = vadd.f32 0.0, %v981
    %983 = vmatprep.mubr.f32.mxu0 0.0
    %984 = vmatmul.mubr.f32.gmra.mrb[0].mxu0 %v745
    %v985 = vpop.f32.mrb[0].mxu0
    %v986 = vadd.f32 0.0, %v985
    %v987 = vpop.f32.mrb[0].mxu0
    %v988 = vadd.f32 0.0, %v987
    %989 = vmatprep.mubr.f32.mxu0 0.0
    %990 = vmatmul.mubr.f32.gmra.mrb[0].mxu0 %v746
    %v991 = vpop.f32.mrb[0].mxu0
    %v992 = vadd.f32 0.0, %v991
    %v993 = vpop.f32.mrb[0].mxu0
    %v994 = vadd.f32 0.0, %v993
    %995 = vmatprep.mubr.f32.mxu0 0.0
    %996 = vmatmul.mubr.f32.gmra.mrb[0].mxu0 %v747
    %v997 = vpop.f32.mrb[0].mxu0
    %v998 = vadd.f32 0.0, %v997
    %v999 = vpop.f32.mrb[0].mxu0
    %v1000 = vadd.f32 0.0, %v999
    %1001 = vmatprep.mubr.f32.mxu0 0.0
    %1002 = vmatmul.mubr.f32.gmra.mrb[0].mxu0 %v748
    %v1003 = vpop.f32.mrb[0].mxu0
    %v1004 = vadd.f32 0.0, %v1003
    %v1005 = vpop.f32.mrb[0].mxu0
    %v1006 = vadd.f32 0.0, %v1005
    %1007 = vmatprep.mubr.f32.mxu0 0.0
    %1008 = vmatmul.mubr.f32.gmra.mrb[0].mxu0 %v749
    %v1009 = vpop.f32.mrb[0].mxu0
    %v1010 = vadd.f32 0.0, %v1009
    %v1011 = vpop.f32.mrb[0].mxu0
    %v1012 = vadd.f32 0.0, %v1011
    %1013 = vmatprep.mubr.f32.mxu0 0.0
    %1014 = vmatmul.mubr.f32.gmra.mrb[0].mxu0 %v750
    %v1015 = vpop.f32.mrb[0].mxu0
    %v1016 = vadd.f32 0.0, %v1015
    %v1017 = vpop.f32.mrb[0].mxu0
    %v1018 = vadd.f32 0.0, %v1017
    %1019 = vmatprep.mubr.f32.mxu0 0.0
    %1020 = vmatmul.mubr.f32.gmra.mrb[0].mxu0 %v751
    %v1021 = vpop.f32.mrb[0].mxu0
    %v1022 = vadd.f32 0.0, %v1021
    %v1023 = vpop.f32.mrb[0].mxu0
    %v1024 = vadd.f32 0.0, %v1023
    %1025 = vmatprep.mubr.f32.mxu0 0.0
    %1026 = vmatmul.mubr.f32.gmra.mrb[0].mxu0 %v752
    %v1027 = vpop.f32.mrb[0].mxu0
    %v1028 = vadd.f32 0.0, %v1027
    %v1029 = vpop.f32.mrb[0].mxu0
    %v1030 = vadd.f32 0.0, %v1029
    %1031 = vmatprep.mubr.f32.mxu0 0.0
    %1032 = vmatmul.mubr.f32.gmra.mrb[0].mxu0 %v753
    %v1033 = vpop.f32.mrb[0].mxu0
    %v1034 = vadd.f32 0.0, %v1033
    %v1035 = vpop.f32.mrb[0].mxu0
    %v1036 = vadd.f32 0.0, %v1035
    %1037 = vmatprep.mubr.f32.mxu0 0.0
    %1038 = vmatmul.mubr.f32.gmra.mrb[0].mxu0 %v754
    %v1039 = vpop.f32.mrb[0].mxu0
    %v1040 = vadd.f32 0.0, %v1039
    %v1041 = vpop.f32.mrb[0].mxu0
    %v1042 = vadd.f32 0.0, %v1041
    %1043 = vmatprep.mubr.f32.mxu0 0.0
    %1044 = vmatmul.mubr.f32.gmra.mrb[0].mxu0 %v755
    %v1045 = vpop.f32.mrb[0].mxu0
    %v1046 = vadd.f32 0.0, %v1045
    %v1047 = vpop.f32.mrb[0].mxu0
    %v1048 = vadd.f32 0.0, %v1047
    %1049 = vmatprep.mubr.f32.mxu0 0.0
    %1050 = vmatmul.mubr.f32.gmra.mrb[0].mxu0 %v756
    %v1051 = vpop.f32.mrb[0].mxu0
    %v1052 = vadd.f32 0.0, %v1051
    %v1053 = vpop.f32.mrb[0].mxu0
    %v1054 = vadd.f32 0.0, %v1053
    %1055 = vmatprep.mubr.f32.mxu0 0.0
    %1056 = vmatmul.mubr.f32.gmra.mrb[0].mxu0 %v757
    %v1057 = vpop.f32.mrb[0].mxu0
    %v1058 = vadd.f32 0.0, %v1057
    %v1059 = vpop.f32.mrb[0].mxu0
    %v1060 = vadd.f32 0.0, %v1059
    %1061 = vmatprep.mubr.f32.mxu0 0.0
    %1062 = vmatmul.mubr.f32.gmra.mrb[0].mxu0 %v758
    %v1063 = vpop.f32.mrb[0].mxu0
    %v1064 = vadd.f32 0.0, %v1063
    %v1065 = vpop.f32.mrb[0].mxu0
    %v1066 = vadd.f32 0.0, %v1065
    %1067 = vmatprep.mubr.f32.mxu0 0.0
    %1068 = vmatmul.mubr.f32.gmra.mrb[0].mxu0 %v759
    %v1069 = vpop.f32.mrb[0].mxu0
    %v1070 = vadd.f32 0.0, %v1069
    %v1071 = vpop.f32.mrb[0].mxu0
    %v1072 = vadd.f32 0.0, %v1071
    %1073 = vmatprep.mubr.f32.mxu0 0.0
    %1074 = vmatmul.mubr.f32.gmra.mrb[0].mxu0 %v760
    %v1075 = vpop.f32.mrb[0].mxu0
    %v1076 = vadd.f32 0.0, %v1075
    %v1077 = vpop.f32.mrb[0].mxu0
    %v1078 = vadd.f32 0.0, %v1077
    %1079 = vmatprep.mubr.f32.mxu0 0.0
    %1080 = vmatmul.mubr.f32.gmra.mrb[0].mxu0 %v761
    %v1081 = vpop.f32.mrb[0].mxu0
    %v1082 = vadd.f32 0.0, %v1081
    %v1083 = vpop.f32.mrb[0].mxu0
    %v1084 = vadd.f32 0.0, %v1083
    %1085 = vmatprep.mubr.f32.mxu0 0.0
    %1086 = vmatmul.mubr.f32.gmra.mrb[0].mxu0 %v762
    %v1087 = vpop.f32.mrb[0].mxu0
    %v1088 = vadd.f32 0.0, %v1087
    %v1089 = vpop.f32.mrb[0].mxu0
    %v1090 = vadd.f32 0.0, %v1089
    %1091 = vmatprep.mubr.f32.mxu0 0.0
    %1092 = vmatmul.mubr.f32.gmra.mrb[0].mxu0 %v763
    %v1093 = vpop.f32.mrb[0].mxu0
    %v1094 = vadd.f32 0.0, %v1093
    %v1095 = vpop.f32.mrb[0].mxu0
    %v1096 = vadd.f32 0.0, %v1095
    %1097 = vmatprep.mubr.f32.mxu0 0.0
    %1098 = vmatmul.mubr.f32.gmra.mrb[0].mxu0 %v764
    %v1099 = vpop.f32.mrb[0].mxu0
    %v1100 = vadd.f32 0.0, %v1099
    %v1101 = vpop.f32.mrb[0].mxu0
    %v1102 = vadd.f32 0.0, %v1101
    %1103 = vmatprep.mubr.f32.mxu0 0.0
    %1104 = vmatmul.mubr.f32.gmra.mrb[0].mxu0 %v765
    %v1105 = vpop.f32.mrb[0].mxu0
    %v1106 = vadd.f32 0.0, %v1105
    %v1107 = vpop.f32.mrb[0].mxu0
    %v1108 = vadd.f32 0.0, %v1107
    %1109 = vmatprep.mubr.f32.mxu0 0.0
    %1110 = vmatmul.mubr.f32.gmra.mrb[0].mxu0 %v766
    %v1111 = vpop.f32.mrb[0].mxu0
    %v1112 = vadd.f32 0.0, %v1111
    %v1113 = vpop.f32.mrb[0].mxu0
    %v1114 = vadd.f32 0.0, %v1113
    %1115 = vmatprep.mubr.f32.mxu0 0.0
    %1116 = vmatmul.mubr.f32.gmra.mrb[0].mxu0 %v767
    %v1117 = vpop.f32.mrb[0].mxu0
    %v1118 = vadd.f32 0.0, %v1117
    %v1119 = vpop.f32.mrb[0].mxu0
    %v1120 = vadd.f32 0.0, %v1119
    %1121 = vmatprep.mubr.f32.mxu0 0.0
    %1122 = vmatmul.mubr.f32.gmra.mrb[0].mxu0 %v768
    %v1123 = vpop.f32.mrb[0].mxu0
    %v1124 = vadd.f32 0.0, %v1123
    %v1125 = vpop.f32.mrb[0].mxu0
    %v1126 = vadd.f32 0.0, %v1125
    %1127 = vmatprep.mubr.f32.mxu0 0.0
    %1128 = vmatmul.mubr.f32.gmra.mrb[0].mxu0 %v769
    %v1129 = vpop.f32.mrb[0].mxu0
    %v1130 = vadd.f32 0.0, %v1129
    %v1131 = vpop.f32.mrb[0].mxu0
    %v1132 = vadd.f32 0.0, %v1131
    %1133 = vmatprep.mubr.f32.mxu0 0.0
    %1134 = vmatmul.mubr.f32.gmra.mrb[0].mxu0 %v770
    %v1135 = vpop.f32.mrb[0].mxu0
    %v1136 = vadd.f32 0.0, %v1135
    %v1137 = vpop.f32.mrb[0].mxu0
    %v1138 = vadd.f32 0.0, %v1137
    %1139 = vmatprep.mubr.f32.mxu0 0.0
    %1140 = vmatmul.mubr.f32.gmra.mrb[0].mxu0 %v771
    %v1141 = vpop.f32.mrb[0].mxu0
    %v1142 = vadd.f32 0.0, %v1141
    %v1143 = vpop.f32.mrb[0].mxu0
    %v1144 = vadd.f32 0.0, %v1143
    %1145 = vmatprep.mubr.f32.mxu0 0.0
    %1146 = vmatmul.mubr.f32.gmra.mrb[0].mxu0 %v772
    %v1147 = vpop.f32.mrb[0].mxu0
    %v1148 = vadd.f32 0.0, %v1147
    %v1149 = vpop.f32.mrb[0].mxu0
    %v1150 = vadd.f32 0.0, %v1149
    %1151 = vmatprep.mubr.f32.mxu0 0.0
    %1152 = vmatmul.mubr.f32.gmra.mrb[0].mxu0 %v773
    %v1153 = vpop.f32.mrb[0].mxu0
    %v1154 = vadd.f32 0.0, %v1153
    %v1155 = vpop.f32.mrb[0].mxu0
    %v1156 = vadd.f32 0.0, %v1155
    %1157 = vmatprep.mubr.f32.mxu0 0.0
    %1158 = vmatmul.mubr.f32.gmra.mrb[0].mxu0 %v774
    %v1159 = vpop.f32.mrb[0].mxu0
    %v1160 = vadd.f32 0.0, %v1159
    %v1161 = vpop.f32.mrb[0].mxu0
    %v1162 = vadd.f32 0.0, %v1161
    %1163 = vmatprep.mubr.f32.mxu0 0.0
    %1164 = vmatmul.mubr.f32.gmra.mrb[0].mxu0 %v775
    %v1165 = vpop.f32.mrb[0].mxu0
    %v1166 = vadd.f32 0.0, %v1165
    %v1167 = vpop.f32.mrb[0].mxu0
    %v1168 = vadd.f32 0.0, %v1167
    %1169 = vmatprep.mubr.f32.mxu0 0.0
    %1170 = vmatmul.mubr.f32.gmra.mrb[0].mxu0 %v776
    %v1171 = vpop.f32.mrb[0].mxu0
    %v1172 = vadd.f32 0.0, %v1171
    %v1173 = vpop.f32.mrb[0].mxu0
    %v1174 = vadd.f32 0.0, %v1173
    %1175 = vmatprep.mubr.f32.mxu0 0.0
    %1176 = vmatmul.mubr.f32.gmra.mrb[0].mxu0 %v777
    %v1177 = vpop.f32.mrb[0].mxu0
    %v1178 = vadd.f32 0.0, %v1177
    %v1179 = vpop.f32.mrb[0].mxu0
    %v1180 = vadd.f32 0.0, %v1179
    %1181 = vmatprep.mubr.f32.mxu0 0.0
    %1182 = vmatmul.mubr.f32.gmra.mrb[0].mxu0 %v778
    %v1183 = vpop.f32.mrb[0].mxu0
    %v1184 = vadd.f32 0.0, %v1183
    %v1185 = vpop.f32.mrb[0].mxu0
    %v1186 = vadd.f32 0.0, %v1185
    %1187 = vmatprep.mubr.f32.mxu0 0.0
    %1188 = vmatmul.mubr.f32.gmra.mrb[0].mxu0 %v779
    %v1189 = vpop.f32.mrb[0].mxu0
    %v1190 = vadd.f32 0.0, %v1189
    %v1191 = vpop.f32.mrb[0].mxu0
    %v1192 = vadd.f32 0.0, %v1191
    %1193 = vmatprep.mubr.f32.mxu0 0.0
    %1194 = vmatmul.mubr.f32.gmra.mrb[0].mxu0 %v780
    %v1195 = vpop.f32.mrb[0].mxu0
    %v1196 = vadd.f32 0.0, %v1195
    %v1197 = vpop.f32.mrb[0].mxu0
    %v1198 = vadd.f32 0.0, %v1197
    %1199 = vmatprep.mubr.f32.mxu0 0.0
    %1200 = vmatmul.mubr.f32.gmra.mrb[0].mxu0 %v781
    %v1201 = vpop.f32.mrb[0].mxu0
    %v1202 = vadd.f32 0.0, %v1201
    %v1203 = vpop.f32.mrb[0].mxu0
    %v1204 = vadd.f32 0.0, %v1203
    %1205 = vmatprep.mubr.f32.mxu0 0.0
    %1206 = vmatmul.mubr.f32.gmra.mrb[0].mxu0 %v782
    %v1207 = vpop.f32.mrb[0].mxu0
    %v1208 = vadd.f32 0.0, %v1207
    %v1209 = vpop.f32.mrb[0].mxu0
    %v1210 = vadd.f32 0.0, %v1209
    %1211 = vmatprep.mubr.f32.mxu0 0.0
    %1212 = vmatmul.mubr.f32.gmra.mrb[0].mxu0 %v783
    %v1213 = vpop.f32.mrb[0].mxu0
    %v1214 = vadd.f32 0.0, %v1213
    %v1215 = vpop.f32.mrb[0].mxu0
    %v1216 = vadd.f32 0.0, %v1215
    %1217 = vmatprep.mubr.f32.mxu0 0.0
    %1218 = vmatmul.mubr.f32.gmra.mrb[0].mxu0 %v784
    %v1219 = vpop.f32.mrb[0].mxu0
    %v1220 = vadd.f32 0.0, %v1219
    %v1221 = vpop.f32.mrb[0].mxu0
    %v1222 = vadd.f32 0.0, %v1221
    %1223 = vmatprep.mubr.f32.mxu0 0.0
    %1224 = vmatmul.mubr.f32.gmra.mrb[0].mxu0 %v785
    %v1225 = vpop.f32.mrb[0].mxu0
    %v1226 = vadd.f32 0.0, %v1225
    %v1227 = vpop.f32.mrb[0].mxu0
    %v1228 = vadd.f32 0.0, %v1227
    %1229 = vmatprep.mubr.f32.mxu0 0.0
    %1230 = vmatmul.mubr.f32.gmra.mrb[0].mxu0 %v786
    %v1231 = vpop.f32.mrb[0].mxu0
    %v1232 = vadd.f32 0.0, %v1231
    %v1233 = vpop.f32.mrb[0].mxu0
    %v1234 = vadd.f32 0.0, %v1233
    %1235 = vdwg.mxu0
    %v1236 = vld [vmem:[%s12] sm:$0xff]
    %v1237 = vld [vmem:[%s12 + $0x8] sm:$0xff]
    %v1238 = vld [vmem:[%s12 + $0x10] sm:$0xff]
    %v1239 = vld [vmem:[%s12 + $0x18] sm:$0xff]
    %v1240 = vld [vmem:[%s12 + $0x20] sm:$0xff]
    %v1241 = vld [vmem:[%s12 + $0x28] sm:$0xff]
    %v1242 = vld [vmem:[%s12 + $0x30] sm:$0xff]
    %v1243 = vld [vmem:[%s12 + $0x38] sm:$0xff]
    %v1244 = vld [vmem:[%s12 + $0x40] sm:$0xff]
    %v1245 = vld [vmem:[%s12 + $0x48] sm:$0xff]
    %v1246 = vld [vmem:[%s12 + $0x50] sm:$0xff]
    %v1247 = vld [vmem:[%s12 + $0x58] sm:$0xff]
    %v1248 = vld [vmem:[%s12 + $0x60] sm:$0xff]
    %v1249 = vld [vmem:[%s12 + $0x68] sm:$0xff]
    %v1250 = vld [vmem:[%s12 + $0x70] sm:$0xff]
    %v1251 = vld [vmem:[%s12 + $0x78] sm:$0xff]
    %v1252 = vld [vmem:[%s12 + $0x80] sm:$0xff]
    %v1253 = vld [vmem:[%s12 + $0x88] sm:$0xff]
    %v1254 = vld [vmem:[%s12 + $0x90] sm:$0xff]
    %v1255 = vld [vmem:[%s12 + $0x98] sm:$0xff]
    %v1256 = vld [vmem:[%s12 + $0xa0] sm:$0xff]
    %v1257 = vld [vmem:[%s12 + $0xa8] sm:$0xff]
    %v1258 = vld [vmem:[%s12 + $0xb0] sm:$0xff]
    %v1259 = vld [vmem:[%s12 + $0xb8] sm:$0xff]
    %v1260 = vld [vmem:[%s12 + $0xc0] sm:$0xff]
    %v1261 = vld [vmem:[%s12 + $0xc8] sm:$0xff]
    %v1262 = vld [vmem:[%s12 + $0xd0] sm:$0xff]
    %v1263 = vld [vmem:[%s12 + $0xd8] sm:$0xff]
    %v1264 = vld [vmem:[%s12 + $0xe0] sm:$0xff]
    %v1265 = vld [vmem:[%s12 + $0xe8] sm:$0xff]
    %v1266 = vld [vmem:[%s12 + $0xf0] sm:$0xff]
    %v1267 = vld [vmem:[%s12 + $0xf8] sm:$0xff]
    %v1268 = vld [vmem:[%s12 + $0x100] sm:$0xff]
    %v1269 = vld [vmem:[%s12 + $0x108] sm:$0xff]
    %v1270 = vld [vmem:[%s12 + $0x110] sm:$0xff]
    %v1271 = vld [vmem:[%s12 + $0x118] sm:$0xff]
    %v1272 = vld [vmem:[%s12 + $0x120] sm:$0xff]
    %v1273 = vld [vmem:[%s12 + $0x128] sm:$0xff]
    %v1274 = vld [vmem:[%s12 + $0x130] sm:$0xff]
    %v1275 = vld [vmem:[%s12 + $0x138] sm:$0xff]
    %v1276 = vld [vmem:[%s12 + $0x140] sm:$0xff]
    %v1277 = vld [vmem:[%s12 + $0x148] sm:$0xff]
    %v1278 = vld [vmem:[%s12 + $0x150] sm:$0xff]
    %v1279 = vld [vmem:[%s12 + $0x158] sm:$0xff]
    %v1280 = vld [vmem:[%s12 + $0x160] sm:$0xff]
    %v1281 = vld [vmem:[%s12 + $0x168] sm:$0xff]
    %v1282 = vld [vmem:[%s12 + $0x170] sm:$0xff]
    %v1283 = vld [vmem:[%s12 + $0x178] sm:$0xff]
    %v1284 = vld [vmem:[%s12 + $0x180] sm:$0xff]
    %v1285 = vld [vmem:[%s12 + $0x188] sm:$0xff]
    %v1286 = vld [vmem:[%s12 + $0x190] sm:$0xff]
    %v1287 = vld [vmem:[%s12 + $0x198] sm:$0xff]
    %v1288 = vld [vmem:[%s12 + $0x1a0] sm:$0xff]
    %v1289 = vld [vmem:[%s12 + $0x1a8] sm:$0xff]
    %v1290 = vld [vmem:[%s12 + $0x1b0] sm:$0xff]
    %v1291 = vld [vmem:[%s12 + $0x1b8] sm:$0xff]
    %v1292 = vld [vmem:[%s12 + $0x1c0] sm:$0xff]
    %v1293 = vld [vmem:[%s12 + $0x1c8] sm:$0xff]
    %v1294 = vld [vmem:[%s12 + $0x1d0] sm:$0xff]
    %v1295 = vld [vmem:[%s12 + $0x1d8] sm:$0xff]
    %v1296 = vld [vmem:[%s12 + $0x1e0] sm:$0xff]
    %v1297 = vld [vmem:[%s12 + $0x1e8] sm:$0xff]
    %v1298 = vld [vmem:[%s12 + $0x1f0] sm:$0xff]
    %v1299 = vld [vmem:[%s12 + $0x1f8] sm:$0xff]
    %v1301 = vsel %vm150, %v1236, 0
    %v1304 = vsel %vm150, %v1237, 0
    %v1307 = vsel %vm150, %v1238, 0
    %v1310 = vsel %vm150, %v1239, 0
    %v1313 = vsel %vm150, %v1240, 0
    %v1316 = vsel %vm150, %v1241, 0
    %v1319 = vsel %vm150, %v1242, 0
    %v1322 = vsel %vm150, %v1243, 0
    %v1325 = vsel %vm150, %v1244, 0
    %v1328 = vsel %vm150, %v1245, 0
    %v1331 = vsel %vm150, %v1246, 0
    %v1334 = vsel %vm150, %v1247, 0
    %v1337 = vsel %vm150, %v1248, 0
    %v1340 = vsel %vm150, %v1249, 0
    %v1343 = vsel %vm150, %v1250, 0
    %v1346 = vsel %vm150, %v1251, 0
    %v1349 = vsel %vm150, %v1252, 0
    %v1352 = vsel %vm150, %v1253, 0
    %v1355 = vsel %vm150, %v1254, 0
    %v1358 = vsel %vm150, %v1255, 0
    %v1361 = vsel %vm150, %v1256, 0
    %v1364 = vsel %vm150, %v1257, 0
    %v1367 = vsel %vm150, %v1258, 0
    %v1370 = vsel %vm150, %v1259, 0
    %v1373 = vsel %vm150, %v1260, 0
    %v1376 = vsel %vm150, %v1261, 0
    %v1379 = vsel %vm150, %v1262, 0
    %v1382 = vsel %vm150, %v1263, 0
    %v1385 = vsel %vm150, %v1264, 0
    %v1388 = vsel %vm150, %v1265, 0
    %v1391 = vsel %vm150, %v1266, 0
    %v1394 = vsel %vm150, %v1267, 0
    %v1397 = vsel %vm150, %v1268, 0
    %v1400 = vsel %vm150, %v1269, 0
    %v1403 = vsel %vm150, %v1270, 0
    %v1406 = vsel %vm150, %v1271, 0
    %v1409 = vsel %vm150, %v1272, 0
    %v1412 = vsel %vm150, %v1273, 0
    %v1415 = vsel %vm150, %v1274, 0
    %v1418 = vsel %vm150, %v1275, 0
    %v1421 = vsel %vm150, %v1276, 0
    %v1424 = vsel %vm150, %v1277, 0
    %v1427 = vsel %vm150, %v1278, 0
    %v1430 = vsel %vm150, %v1279, 0
    %v1433 = vsel %vm150, %v1280, 0
    %v1436 = vsel %vm150, %v1281, 0
    %v1439 = vsel %vm150, %v1282, 0
    %v1442 = vsel %vm150, %v1283, 0
    %v1445 = vsel %vm150, %v1284, 0
    %v1448 = vsel %vm150, %v1285, 0
    %v1451 = vsel %vm150, %v1286, 0
    %v1454 = vsel %vm150, %v1287, 0
    %v1457 = vsel %vm150, %v1288, 0
    %v1460 = vsel %vm150, %v1289, 0
    %v1463 = vsel %vm150, %v1290, 0
    %v1466 = vsel %vm150, %v1291, 0
    %v1469 = vsel %vm150, %v1292, 0
    %v1472 = vsel %vm150, %v1293, 0
    %v1475 = vsel %vm150, %v1294, 0
    %v1478 = vsel %vm150, %v1295, 0
    %v1481 = vsel %vm150, %v1296, 0
    %v1484 = vsel %vm150, %v1297, 0
    %v1487 = vsel %vm150, %v1298, 0
    %v1490 = vsel %vm150, %v1299, 0
    %1492 = vmatprep.subr.mxu0 0.0
    %1493 = vmatpush1.msra.mxu0 %v296
    %1494 = vmatprep.subr.mxu0 0.0
    %1495 = vmatpush1.msra.mxu0 0.0
    %1496 = vmatprep.subr.mxu0 0.0
    %1497 = vmatpush1.msra.mxu0 0.0
    %1498 = vmatprep.subr.mxu0 0.0
    %1499 = vmatpush1.msra.mxu0 0.0
    %1500 = vmatprep.subr.mxu0 0.0
    %1501 = vmatpush1.msra.mxu0 0.0
    %1502 = vmatprep.subr.mxu0 0.0
    %1503 = vmatpush1.msra.mxu0 0.0
    %1504 = vmatprep.subr.mxu0 0.0
    %1505 = vmatpush1.msra.mxu0 0.0
    %1506 = vmatprep.subr.mxu0 0.0
    %1507 = vmatpush1.msra.mxu0 0.0
    %1508 = vmatprep.subr.mxu0 0.0
    %1509 = vmatpush1.msra.mxu0 0.0
    %1510 = vmatprep.subr.mxu0 0.0
    %1511 = vmatpush1.msra.mxu0 0.0
    %1512 = vmatprep.subr.mxu0 0.0
    %1513 = vmatpush1.msra.mxu0 0.0
    %1514 = vmatprep.subr.mxu0 0.0
    %1515 = vmatpush1.msra.mxu0 0.0
    %1516 = vmatprep.subr.mxu0 0.0
    %1517 = vmatpush1.msra.mxu0 0.0
    %1518 = vmatprep.subr.mxu0 0.0
    %1519 = vmatpush1.msra.mxu0 0.0
    %1520 = vmatprep.subr.mxu0 0.0
    %1521 = vmatpush1.msra.mxu0 0.0
    %1522 = vmatprep.subr.mxu0 0.0
    %1523 = vmatpush1.msra.mxu0 0.0
    %1524 = vmatprep.subr.mxu0 0.0
    %1525 = vmatpush1.msra.mxu0 0.0
    %1526 = vmatprep.subr.mxu0 0.0
    %1527 = vmatpush1.msra.mxu0 0.0
    %1528 = vmatprep.subr.mxu0 0.0
    %1529 = vmatpush1.msra.mxu0 0.0
    %1530 = vmatprep.subr.mxu0 0.0
    %1531 = vmatpush1.msra.mxu0 0.0
    %1532 = vmatprep.subr.mxu0 0.0
    %1533 = vmatpush1.msra.mxu0 0.0
    %1534 = vmatprep.subr.mxu0 0.0
    %1535 = vmatpush1.msra.mxu0 0.0
    %1536 = vmatprep.subr.mxu0 0.0
    %1537 = vmatpush1.msra.mxu0 0.0
    %1538 = vmatprep.subr.mxu0 0.0
    %1539 = vmatpush1.msra.mxu0 0.0
    %1540 = vmatprep.subr.mxu0 0.0
    %1541 = vmatpush1.msra.mxu0 0.0
    %1542 = vmatprep.subr.mxu0 0.0
    %1543 = vmatpush1.msra.mxu0 0.0
    %1544 = vmatprep.subr.mxu0 0.0
    %1545 = vmatpush1.msra.mxu0 0.0
    %1546 = vmatprep.subr.mxu0 0.0
    %1547 = vmatpush1.msra.mxu0 0.0
    %1548 = vmatprep.subr.mxu0 0.0
    %1549 = vmatpush1.msra.mxu0 0.0
    %1550 = vmatprep.subr.mxu0 0.0
    %1551 = vmatpush1.msra.mxu0 0.0
    %1552 = vmatprep.subr.mxu0 0.0
    %1553 = vmatpush1.msra.mxu0 0.0
    %1554 = vmatprep.subr.mxu0 0.0
    %1555 = vmatpush1.msra.mxu0 0.0
    %1556 = vmatprep.mubr.f32.mxu0 0.0
    %1557 = vmatmul.mubr.f32.gmra.mrb[0].mxu0 %v1301
    %v1558 = vpop.f32.mrb[0].mxu0
    %v1559 = vadd.f32 0.0, %v1558
    %v1560 = vpop.f32.mrb[0].mxu0
    %1561 = vmatprep.mubr.f32.mxu0 0.0
    %1562 = vmatmul.mubr.f32.gmra.mrb[0].mxu0 %v1304
    %v1563 = vpop.f32.mrb[0].mxu0
    %v1564 = vadd.f32 0.0, %v1563
    %v1565 = vpop.f32.mrb[0].mxu0
    %1566 = vmatprep.mubr.f32.mxu0 0.0
    %1567 = vmatmul.mubr.f32.gmra.mrb[0].mxu0 %v1307
    %v1568 = vpop.f32.mrb[0].mxu0
    %v1569 = vadd.f32 0.0, %v1568
    %v1570 = vpop.f32.mrb[0].mxu0
    %1571 = vmatprep.mubr.f32.mxu0 0.0
    %1572 = vmatmul.mubr.f32.gmra.mrb[0].mxu0 %v1310
    %v1573 = vpop.f32.mrb[0].mxu0
    %v1574 = vadd.f32 0.0, %v1573
    %v1575 = vpop.f32.mrb[0].mxu0
    %1576 = vmatprep.mubr.f32.mxu0 0.0
    %1577 = vmatmul.mubr.f32.gmra.mrb[0].mxu0 %v1313
    %v1578 = vpop.f32.mrb[0].mxu0
    %v1579 = vadd.f32 0.0, %v1578
    %v1580 = vpop.f32.mrb[0].mxu0
    %1581 = vmatprep.mubr.f32.mxu0 0.0
    %1582 = vmatmul.mubr.f32.gmra.mrb[0].mxu0 %v1316
    %v1583 = vpop.f32.mrb[0].mxu0
    %v1584 = vadd.f32 0.0, %v1583
    %v1585 = vpop.f32.mrb[0].mxu0
    %1586 = vmatprep.mubr.f32.mxu0 0.0
    %1587 = vmatmul.mubr.f32.gmra.mrb[0].mxu0 %v1319
    %v1588 = vpop.f32.mrb[0].mxu0
    %v1589 = vadd.f32 0.0, %v1588
    %v1590 = vpop.f32.mrb[0].mxu0
    %1591 = vmatprep.mubr.f32.mxu0 0.0
    %1592 = vmatmul.mubr.f32.gmra.mrb[0].mxu0 %v1322
    %v1593 = vpop.f32.mrb[0].mxu0
    %v1594 = vadd.f32 0.0, %v1593
    %v1595 = vpop.f32.mrb[0].mxu0
    %1596 = vmatprep.mubr.f32.mxu0 0.0
    %1597 = vmatmul.mubr.f32.gmra.mrb[0].mxu0 %v1325
    %v1598 = vpop.f32.mrb[0].mxu0
    %v1599 = vadd.f32 0.0, %v1598
    %v1600 = vpop.f32.mrb[0].mxu0
    %1601 = vmatprep.mubr.f32.mxu0 0.0
    %1602 = vmatmul.mubr.f32.gmra.mrb[0].mxu0 %v1328
    %v1603 = vpop.f32.mrb[0].mxu0
    %v1604 = vadd.f32 0.0, %v1603
    %v1605 = vpop.f32.mrb[0].mxu0
    %1606 = vmatprep.mubr.f32.mxu0 0.0
    %1607 = vmatmul.mubr.f32.gmra.mrb[0].mxu0 %v1331
    %v1608 = vpop.f32.mrb[0].mxu0
    %v1609 = vadd.f32 0.0, %v1608
    %v1610 = vpop.f32.mrb[0].mxu0
    %1611 = vmatprep.mubr.f32.mxu0 0.0
    %1612 = vmatmul.mubr.f32.gmra.mrb[0].mxu0 %v1334
    %v1613 = vpop.f32.mrb[0].mxu0
    %v1614 = vadd.f32 0.0, %v1613
    %v1615 = vpop.f32.mrb[0].mxu0
    %1616 = vmatprep.mubr.f32.mxu0 0.0
    %1617 = vmatmul.mubr.f32.gmra.mrb[0].mxu0 %v1337
    %v1618 = vpop.f32.mrb[0].mxu0
    %v1619 = vadd.f32 0.0, %v1618
    %v1620 = vpop.f32.mrb[0].mxu0
    %1621 = vmatprep.mubr.f32.mxu0 0.0
    %1622 = vmatmul.mubr.f32.gmra.mrb[0].mxu0 %v1340
    %v1623 = vpop.f32.mrb[0].mxu0
    %v1624 = vadd.f32 0.0, %v1623
    %v1625 = vpop.f32.mrb[0].mxu0
    %1626 = vmatprep.mubr.f32.mxu0 0.0
    %1627 = vmatmul.mubr.f32.gmra.mrb[0].mxu0 %v1343
    %v1628 = vpop.f32.mrb[0].mxu0
    %v1629 = vadd.f32 0.0, %v1628
    %v1630 = vpop.f32.mrb[0].mxu0
    %1631 = vmatprep.mubr.f32.mxu0 0.0
    %1632 = vmatmul.mubr.f32.gmra.mrb[0].mxu0 %v1346
    %v1633 = vpop.f32.mrb[0].mxu0
    %v1634 = vadd.f32 0.0, %v1633
    %v1635 = vpop.f32.mrb[0].mxu0
    %1636 = vmatprep.mubr.f32.mxu0 0.0
    %1637 = vmatmul.mubr.f32.gmra.mrb[0].mxu0 %v1349
    %v1638 = vpop.f32.mrb[0].mxu0
    %v1639 = vadd.f32 0.0, %v1638
    %v1640 = vpop.f32.mrb[0].mxu0
    %1641 = vmatprep.mubr.f32.mxu0 0.0
    %1642 = vmatmul.mubr.f32.gmra.mrb[0].mxu0 %v1352
    %v1643 = vpop.f32.mrb[0].mxu0
    %v1644 = vadd.f32 0.0, %v1643
    %v1645 = vpop.f32.mrb[0].mxu0
    %1646 = vmatprep.mubr.f32.mxu0 0.0
    %1647 = vmatmul.mubr.f32.gmra.mrb[0].mxu0 %v1355
    %v1648 = vpop.f32.mrb[0].mxu0
    %v1649 = vadd.f32 0.0, %v1648
    %v1650 = vpop.f32.mrb[0].mxu0
    %1651 = vmatprep.mubr.f32.mxu0 0.0
    %1652 = vmatmul.mubr.f32.gmra.mrb[0].mxu0 %v1358
    %v1653 = vpop.f32.mrb[0].mxu0
    %v1654 = vadd.f32 0.0, %v1653
    %v1655 = vpop.f32.mrb[0].mxu0
    %1656 = vmatprep.mubr.f32.mxu0 0.0
    %1657 = vmatmul.mubr.f32.gmra.mrb[0].mxu0 %v1361
    %v1658 = vpop.f32.mrb[0].mxu0
    %v1659 = vadd.f32 0.0, %v1658
    %v1660 = vpop.f32.mrb[0].mxu0
    %1661 = vmatprep.mubr.f32.mxu0 0.0
    %1662 = vmatmul.mubr.f32.gmra.mrb[0].mxu0 %v1364
    %v1663 = vpop.f32.mrb[0].mxu0
    %v1664 = vadd.f32 0.0, %v1663
    %v1665 = vpop.f32.mrb[0].mxu0
    %1666 = vmatprep.mubr.f32.mxu0 0.0
    %1667 = vmatmul.mubr.f32.gmra.mrb[0].mxu0 %v1367
    %v1668 = vpop.f32.mrb[0].mxu0
    %v1669 = vadd.f32 0.0, %v1668
    %v1670 = vpop.f32.mrb[0].mxu0
    %1671 = vmatprep.mubr.f32.mxu0 0.0
    %1672 = vmatmul.mubr.f32.gmra.mrb[0].mxu0 %v1370
    %v1673 = vpop.f32.mrb[0].mxu0
    %v1674 = vadd.f32 0.0, %v1673
    %v1675 = vpop.f32.mrb[0].mxu0
    %1676 = vmatprep.mubr.f32.mxu0 0.0
    %1677 = vmatmul.mubr.f32.gmra.mrb[0].mxu0 %v1373
    %v1678 = vpop.f32.mrb[0].mxu0
    %v1679 = vadd.f32 0.0, %v1678
    %v1680 = vpop.f32.mrb[0].mxu0
    %1681 = vmatprep.mubr.f32.mxu0 0.0
    %1682 = vmatmul.mubr.f32.gmra.mrb[0].mxu0 %v1376
    %v1683 = vpop.f32.mrb[0].mxu0
    %v1684 = vadd.f32 0.0, %v1683
    %v1685 = vpop.f32.mrb[0].mxu0
    %1686 = vmatprep.mubr.f32.mxu0 0.0
    %1687 = vmatmul.mubr.f32.gmra.mrb[0].mxu0 %v1379
    %v1688 = vpop.f32.mrb[0].mxu0
    %v1689 = vadd.f32 0.0, %v1688
    %v1690 = vpop.f32.mrb[0].mxu0
    %1691 = vmatprep.mubr.f32.mxu0 0.0
    %1692 = vmatmul.mubr.f32.gmra.mrb[0].mxu0 %v1382
    %v1693 = vpop.f32.mrb[0].mxu0
    %v1694 = vadd.f32 0.0, %v1693
    %v1695 = vpop.f32.mrb[0].mxu0
    %1696 = vmatprep.mubr.f32.mxu0 0.0
    %1697 = vmatmul.mubr.f32.gmra.mrb[0].mxu0 %v1385
    %v1698 = vpop.f32.mrb[0].mxu0
    %v1699 = vadd.f32 0.0, %v1698
    %v1700 = vpop.f32.mrb[0].mxu0
    %1701 = vmatprep.mubr.f32.mxu0 0.0
    %1702 = vmatmul.mubr.f32.gmra.mrb[0].mxu0 %v1388
    %v1703 = vpop.f32.mrb[0].mxu0
    %v1704 = vadd.f32 0.0, %v1703
    %v1705 = vpop.f32.mrb[0].mxu0
    %1706 = vmatprep.mubr.f32.mxu0 0.0
    %1707 = vmatmul.mubr.f32.gmra.mrb[0].mxu0 %v1391
    %v1708 = vpop.f32.mrb[0].mxu0
    %v1709 = vadd.f32 0.0, %v1708
    %v1710 = vpop.f32.mrb[0].mxu0
    %1711 = vmatprep.mubr.f32.mxu0 0.0
    %1712 = vmatmul.mubr.f32.gmra.mrb[0].mxu0 %v1394
    %v1713 = vpop.f32.mrb[0].mxu0
    %v1714 = vadd.f32 0.0, %v1713
    %v1715 = vpop.f32.mrb[0].mxu0
    %1716 = vmatprep.mubr.f32.mxu0 0.0
    %1717 = vmatmul.mubr.f32.gmra.mrb[0].mxu0 %v1397
    %v1718 = vpop.f32.mrb[0].mxu0
    %v1719 = vadd.f32 0.0, %v1718
    %v1720 = vpop.f32.mrb[0].mxu0
    %1721 = vmatprep.mubr.f32.mxu0 0.0
    %1722 = vmatmul.mubr.f32.gmra.mrb[0].mxu0 %v1400
    %v1723 = vpop.f32.mrb[0].mxu0
    %v1724 = vadd.f32 0.0, %v1723
    %v1725 = vpop.f32.mrb[0].mxu0
    %1726 = vmatprep.mubr.f32.mxu0 0.0
    %1727 = vmatmul.mubr.f32.gmra.mrb[0].mxu0 %v1403
    %v1728 = vpop.f32.mrb[0].mxu0
    %v1729 = vadd.f32 0.0, %v1728
    %v1730 = vpop.f32.mrb[0].mxu0
    %1731 = vmatprep.mubr.f32.mxu0 0.0
    %1732 = vmatmul.mubr.f32.gmra.mrb[0].mxu0 %v1406
    %v1733 = vpop.f32.mrb[0].mxu0
    %v1734 = vadd.f32 0.0, %v1733
    %v1735 = vpop.f32.mrb[0].mxu0
    %1736 = vmatprep.mubr.f32.mxu0 0.0
    %1737 = vmatmul.mubr.f32.gmra.mrb[0].mxu0 %v1409
    %v1738 = vpop.f32.mrb[0].mxu0
    %v1739 = vadd.f32 0.0, %v1738
    %v1740 = vpop.f32.mrb[0].mxu0
    %1741 = vmatprep.mubr.f32.mxu0 0.0
    %1742 = vmatmul.mubr.f32.gmra.mrb[0].mxu0 %v1412
    %v1743 = vpop.f32.mrb[0].mxu0
    %v1744 = vadd.f32 0.0, %v1743
    %v1745 = vpop.f32.mrb[0].mxu0
    %1746 = vmatprep.mubr.f32.mxu0 0.0
    %1747 = vmatmul.mubr.f32.gmra.mrb[0].mxu0 %v1415
    %v1748 = vpop.f32.mrb[0].mxu0
    %v1749 = vadd.f32 0.0, %v1748
    %v1750 = vpop.f32.mrb[0].mxu0
    %1751 = vmatprep.mubr.f32.mxu0 0.0
    %1752 = vmatmul.mubr.f32.gmra.mrb[0].mxu0 %v1418
    %v1753 = vpop.f32.mrb[0].mxu0
    %v1754 = vadd.f32 0.0, %v1753
    %v1755 = vpop.f32.mrb[0].mxu0
    %1756 = vmatprep.mubr.f32.mxu0 0.0
    %1757 = vmatmul.mubr.f32.gmra.mrb[0].mxu0 %v1421
    %v1758 = vpop.f32.mrb[0].mxu0
    %v1759 = vadd.f32 0.0, %v1758
    %v1760 = vpop.f32.mrb[0].mxu0
    %1761 = vmatprep.mubr.f32.mxu0 0.0
    %1762 = vmatmul.mubr.f32.gmra.mrb[0].mxu0 %v1424
    %v1763 = vpop.f32.mrb[0].mxu0
    %v1764 = vadd.f32 0.0, %v1763
    %v1765 = vpop.f32.mrb[0].mxu0
    %1766 = vmatprep.mubr.f32.mxu0 0.0
    %1767 = vmatmul.mubr.f32.gmra.mrb[0].mxu0 %v1427
    %v1768 = vpop.f32.mrb[0].mxu0
    %v1769 = vadd.f32 0.0, %v1768
    %v1770 = vpop.f32.mrb[0].mxu0
    %1771 = vmatprep.mubr.f32.mxu0 0.0
    %1772 = vmatmul.mubr.f32.gmra.mrb[0].mxu0 %v1430
    %v1773 = vpop.f32.mrb[0].mxu0
    %v1774 = vadd.f32 0.0, %v1773
    %v1775 = vpop.f32.mrb[0].mxu0
    %1776 = vmatprep.mubr.f32.mxu0 0.0
    %1777 = vmatmul.mubr.f32.gmra.mrb[0].mxu0 %v1433
    %v1778 = vpop.f32.mrb[0].mxu0
    %v1779 = vadd.f32 0.0, %v1778
    %v1780 = vpop.f32.mrb[0].mxu0
    %1781 = vmatprep.mubr.f32.mxu0 0.0
    %1782 = vmatmul.mubr.f32.gmra.mrb[0].mxu0 %v1436
    %v1783 = vpop.f32.mrb[0].mxu0
    %v1784 = vadd.f32 0.0, %v1783
    %v1785 = vpop.f32.mrb[0].mxu0
    %1786 = vmatprep.mubr.f32.mxu0 0.0
    %1787 = vmatmul.mubr.f32.gmra.mrb[0].mxu0 %v1439
    %v1788 = vpop.f32.mrb[0].mxu0
    %v1789 = vadd.f32 0.0, %v1788
    %v1790 = vpop.f32.mrb[0].mxu0
    %1791 = vmatprep.mubr.f32.mxu0 0.0
    %1792 = vmatmul.mubr.f32.gmra.mrb[0].mxu0 %v1442
    %v1793 = vpop.f32.mrb[0].mxu0
    %v1794 = vadd.f32 0.0, %v1793
    %v1795 = vpop.f32.mrb[0].mxu0
    %1796 = vmatprep.mubr.f32.mxu0 0.0
    %1797 = vmatmul.mubr.f32.gmra.mrb[0].mxu0 %v1445
    %v1798 = vpop.f32.mrb[0].mxu0
    %v1799 = vadd.f32 0.0, %v1798
    %v1800 = vpop.f32.mrb[0].mxu0
    %1801 = vmatprep.mubr.f32.mxu0 0.0
    %1802 = vmatmul.mubr.f32.gmra.mrb[0].mxu0 %v1448
    %v1803 = vpop.f32.mrb[0].mxu0
    %v1804 = vadd.f32 0.0, %v1803
    %v1805 = vpop.f32.mrb[0].mxu0
    %1806 = vmatprep.mubr.f32.mxu0 0.0
    %1807 = vmatmul.mubr.f32.gmra.mrb[0].mxu0 %v1451
    %v1808 = vpop.f32.mrb[0].mxu0
    %v1809 = vadd.f32 0.0, %v1808
    %v1810 = vpop.f32.mrb[0].mxu0
    %1811 = vmatprep.mubr.f32.mxu0 0.0
    %1812 = vmatmul.mubr.f32.gmra.mrb[0].mxu0 %v1454
    %v1813 = vpop.f32.mrb[0].mxu0
    %v1814 = vadd.f32 0.0, %v1813
    %v1815 = vpop.f32.mrb[0].mxu0
    %1816 = vmatprep.mubr.f32.mxu0 0.0
    %1817 = vmatmul.mubr.f32.gmra.mrb[0].mxu0 %v1457
    %v1818 = vpop.f32.mrb[0].mxu0
    %v1819 = vadd.f32 0.0, %v1818
    %v1820 = vpop.f32.mrb[0].mxu0
    %1821 = vmatprep.mubr.f32.mxu0 0.0
    %1822 = vmatmul.mubr.f32.gmra.mrb[0].mxu0 %v1460
    %v1823 = vpop.f32.mrb[0].mxu0
    %v1824 = vadd.f32 0.0, %v1823
    %v1825 = vpop.f32.mrb[0].mxu0
    %1826 = vmatprep.mubr.f32.mxu0 0.0
    %1827 = vmatmul.mubr.f32.gmra.mrb[0].mxu0 %v1463
    %v1828 = vpop.f32.mrb[0].mxu0
    %v1829 = vadd.f32 0.0, %v1828
    %v1830 = vpop.f32.mrb[0].mxu0
    %1831 = vmatprep.mubr.f32.mxu0 0.0
    %1832 = vmatmul.mubr.f32.gmra.mrb[0].mxu0 %v1466
    %v1833 = vpop.f32.mrb[0].mxu0
    %v1834 = vadd.f32 0.0, %v1833
    %v1835 = vpop.f32.mrb[0].mxu0
    %1836 = vmatprep.mubr.f32.mxu0 0.0
    %1837 = vmatmul.mubr.f32.gmra.mrb[0].mxu0 %v1469
    %v1838 = vpop.f32.mrb[0].mxu0
    %v1839 = vadd.f32 0.0, %v1838
    %v1840 = vpop.f32.mrb[0].mxu0
    %1841 = vmatprep.mubr.f32.mxu0 0.0
    %1842 = vmatmul.mubr.f32.gmra.mrb[0].mxu0 %v1472
    %v1843 = vpop.f32.mrb[0].mxu0
    %v1844 = vadd.f32 0.0, %v1843
    %v1845 = vpop.f32.mrb[0].mxu0
    %1846 = vmatprep.mubr.f32.mxu0 0.0
    %1847 = vmatmul.mubr.f32.gmra.mrb[0].mxu0 %v1475
    %v1848 = vpop.f32.mrb[0].mxu0
    %v1849 = vadd.f32 0.0, %v1848
    %v1850 = vpop.f32.mrb[0].mxu0
    %1851 = vmatprep.mubr.f32.mxu0 0.0
    %1852 = vmatmul.mubr.f32.gmra.mrb[0].mxu0 %v1478
    %v1853 = vpop.f32.mrb[0].mxu0
    %v1854 = vadd.f32 0.0, %v1853
    %v1855 = vpop.f32.mrb[0].mxu0
    %1856 = vmatprep.mubr.f32.mxu0 0.0
    %1857 = vmatmul.mubr.f32.gmra.mrb[0].mxu0 %v1481
    %v1858 = vpop.f32.mrb[0].mxu0
    %v1859 = vadd.f32 0.0, %v1858
    %v1860 = vpop.f32.mrb[0].mxu0
    %1861 = vmatprep.mubr.f32.mxu0 0.0
    %1862 = vmatmul.mubr.f32.gmra.mrb[0].mxu0 %v1484
    %v1863 = vpop.f32.mrb[0].mxu0
    %v1864 = vadd.f32 0.0, %v1863
    %v1865 = vpop.f32.mrb[0].mxu0
    %1866 = vmatprep.mubr.f32.mxu0 0.0
    %1867 = vmatmul.mubr.f32.gmra.mrb[0].mxu0 %v1487
    %v1868 = vpop.f32.mrb[0].mxu0
    %v1869 = vadd.f32 0.0, %v1868
    %v1870 = vpop.f32.mrb[0].mxu0
    %1871 = vmatprep.mubr.f32.mxu0 0.0
    %1872 = vmatmul.mubr.f32.gmra.mrb[0].mxu0 %v1490
    %v1873 = vpop.f32.mrb[0].mxu0
    %v1874 = vadd.f32 0.0, %v1873
    %v1875 = vpop.f32.mrb[0].mxu0
    %1876 = vdwg.mxu0
    %v1877 = vmul.f32 %v854, %v1559
    %v1878 = vmul.f32 %v860, %v1564
    %v1879 = vmul.f32 %v866, %v1569
    %v1880 = vmul.f32 %v872, %v1574
    %v1881 = vmul.f32 %v878, %v1579
    %v1882 = vmul.f32 %v884, %v1584
    %v1883 = vmul.f32 %v890, %v1589
    %v1884 = vmul.f32 %v896, %v1594
    %v1885 = vmul.f32 %v902, %v1599
    %v1886 = vmul.f32 %v908, %v1604
    %v1887 = vmul.f32 %v914, %v1609
    %v1888 = vmul.f32 %v920, %v1614
    %v1889 = vmul.f32 %v926, %v1619
    %v1890 = vmul.f32 %v932, %v1624
    %v1891 = vmul.f32 %v938, %v1629
    %v1892 = vmul.f32 %v944, %v1634
    %v1893 = vmul.f32 %v1877, %v629
    %v1894 = vmul.f32 %v1878, %v635
    %v1895 = vmul.f32 %v1879, %v641
    %v1896 = vmul.f32 %v1880, %v647
    %v1897 = vmul.f32 %v1881, %v653
    %v1898 = vmul.f32 %v1882, %v659
    %v1899 = vmul.f32 %v1883, %v665
    %v1900 = vmul.f32 %v1884, %v671
    %v1901 = vmul.f32 %v1885, %v677
    %v1902 = vmul.f32 %v1886, %v683
    %v1903 = vmul.f32 %v1887, %v689
    %v1904 = vmul.f32 %v1888, %v695
    %v1905 = vmul.f32 %v1889, %v701
    %v1906 = vmul.f32 %v1890, %v707
    %v1907 = vmul.f32 %v1891, %v713
    %v1908 = vmul.f32 %v1892, %v719
    %1909 = vadd.xlane.f32.xlu0 %v1893
    %v1910 = vpop.xlane.xlu0 %1909
    %1911 = vadd.xlane.f32.xlu0 %v1894
    %v1912 = vpop.xlane.xlu0 %1911
    %1913 = vadd.xlane.f32.xlu0 %v1895
    %v1914 = vpop.xlane.xlu0 %1913
    %1915 = vadd.xlane.f32.xlu0 %v1896
    %v1916 = vpop.xlane.xlu0 %1915
    %1917 = vadd.xlane.f32.xlu0 %v1897
    %v1918 = vpop.xlane.xlu0 %1917
    %1919 = vadd.xlane.f32.xlu0 %v1898
    %v1920 = vpop.xlane.xlu0 %1919
    %1921 = vadd.xlane.f32.xlu0 %v1899
    %v1922 = vpop.xlane.xlu0 %1921
    %1923 = vadd.xlane.f32.xlu0 %v1900
    %v1924 = vpop.xlane.xlu0 %1923
    %1925 = vadd.xlane.f32.xlu0 %v1901
    %v1926 = vpop.xlane.xlu0 %1925
    %1927 = vadd.xlane.f32.xlu0 %v1902
    %v1928 = vpop.xlane.xlu0 %1927
    %1929 = vadd.xlane.f32.xlu0 %v1903
    %v1930 = vpop.xlane.xlu0 %1929
    %1931 = vadd.xlane.f32.xlu0 %v1904
    %v1932 = vpop.xlane.xlu0 %1931
    %1933 = vadd.xlane.f32.xlu0 %v1905
    %v1934 = vpop.xlane.xlu0 %1933
    %1935 = vadd.xlane.f32.xlu0 %v1906
    %v1936 = vpop.xlane.xlu0 %1935
    %1937 = vadd.xlane.f32.xlu0 %v1907
    %v1938 = vpop.xlane.xlu0 %1937
    %1939 = vadd.xlane.f32.xlu0 %v1908
    %v1940 = vpop.xlane.xlu0 %1939
    %v1941 = vmul.f32 %v950, %v1639
    %v1942 = vmul.f32 %v956, %v1644
    %v1943 = vmul.f32 %v962, %v1649
    %v1944 = vmul.f32 %v968, %v1654
    %v1945 = vmul.f32 %v974, %v1659
    %v1946 = vmul.f32 %v980, %v1664
    %v1947 = vmul.f32 %v986, %v1669
    %v1948 = vmul.f32 %v992, %v1674
    %v1949 = vmul.f32 %v998, %v1679
    %v1950 = vmul.f32 %v1004, %v1684
    %v1951 = vmul.f32 %v1010, %v1689
    %v1952 = vmul.f32 %v1016, %v1694
    %v1953 = vmul.f32 %v1022, %v1699
    %v1954 = vmul.f32 %v1028, %v1704
    %v1955 = vmul.f32 %v1034, %v1709
    %v1956 = vmul.f32 %v1040, %v1714
    %v1957 = vmul.f32 %v1941, %v629
    %v1958 = vmul.f32 %v1942, %v635
    %v1959 = vmul.f32 %v1943, %v641
    %v1960 = vmul.f32 %v1944, %v647
    %v1961 = vmul.f32 %v1945, %v653
    %v1962 = vmul.f32 %v1946, %v659
    %v1963 = vmul.f32 %v1947, %v665
    %v1964 = vmul.f32 %v1948, %v671
    %v1965 = vmul.f32 %v1949, %v677
    %v1966 = vmul.f32 %v1950, %v683
    %v1967 = vmul.f32 %v1951, %v689
    %v1968 = vmul.f32 %v1952, %v695
    %v1969 = vmul.f32 %v1953, %v701
    %v1970 = vmul.f32 %v1954, %v707
    %v1971 = vmul.f32 %v1955, %v713
    %v1972 = vmul.f32 %v1956, %v719
    %1973 = vadd.xlane.f32.xlu0 %v1957
    %v1974 = vpop.xlane.xlu0 %1973
    %1975 = vadd.xlane.f32.xlu0 %v1958
    %v1976 = vpop.xlane.xlu0 %1975
    %1977 = vadd.xlane.f32.xlu0 %v1959
    %v1978 = vpop.xlane.xlu0 %1977
    %1979 = vadd.xlane.f32.xlu0 %v1960
    %v1980 = vpop.xlane.xlu0 %1979
    %1981 = vadd.xlane.f32.xlu0 %v1961
    %v1982 = vpop.xlane.xlu0 %1981
    %1983 = vadd.xlane.f32.xlu0 %v1962
    %v1984 = vpop.xlane.xlu0 %1983
    %1985 = vadd.xlane.f32.xlu0 %v1963
    %v1986 = vpop.xlane.xlu0 %1985
    %1987 = vadd.xlane.f32.xlu0 %v1964
    %v1988 = vpop.xlane.xlu0 %1987
    %1989 = vadd.xlane.f32.xlu0 %v1965
    %v1990 = vpop.xlane.xlu0 %1989
    %1991 = vadd.xlane.f32.xlu0 %v1966
    %v1992 = vpop.xlane.xlu0 %1991
    %1993 = vadd.xlane.f32.xlu0 %v1967
    %v1994 = vpop.xlane.xlu0 %1993
    %1995 = vadd.xlane.f32.xlu0 %v1968
    %v1996 = vpop.xlane.xlu0 %1995
    %1997 = vadd.xlane.f32.xlu0 %v1969
    %v1998 = vpop.xlane.xlu0 %1997
    %1999 = vadd.xlane.f32.xlu0 %v1970
    %v2000 = vpop.xlane.xlu0 %1999
    %2001 = vadd.xlane.f32.xlu0 %v1971
    %v2002 = vpop.xlane.xlu0 %2001
    %2003 = vadd.xlane.f32.xlu0 %v1972
    %v2004 = vpop.xlane.xlu0 %2003
    %v2005 = vmul.f32 %v1046, %v1719
    %v2006 = vmul.f32 %v1052, %v1724
    %v2007 = vmul.f32 %v1058, %v1729
    %v2008 = vmul.f32 %v1064, %v1734
    %v2009 = vmul.f32 %v1070, %v1739
    %v2010 = vmul.f32 %v1076, %v1744
    %v2011 = vmul.f32 %v1082, %v1749
    %v2012 = vmul.f32 %v1088, %v1754
    %v2013 = vmul.f32 %v1094, %v1759
    %v2014 = vmul.f32 %v1100, %v1764
    %v2015 = vmul.f32 %v1106, %v1769
    %v2016 = vmul.f32 %v1112, %v1774
    %v2017 = vmul.f32 %v1118, %v1779
    %v2018 = vmul.f32 %v1124, %v1784
    %v2019 = vmul.f32 %v1130, %v1789
    %v2020 = vmul.f32 %v1136, %v1794
    %v2021 = vmul.f32 %v2005, %v629
    %v2022 = vmul.f32 %v2006, %v635
    %v2023 = vmul.f32 %v2007, %v641
    %v2024 = vmul.f32 %v2008, %v647
    %v2025 = vmul.f32 %v2009, %v653
    %v2026 = vmul.f32 %v2010, %v659
    %v2027 = vmul.f32 %v2011, %v665
    %v2028 = vmul.f32 %v2012, %v671
    %v2029 = vmul.f32 %v2013, %v677
    %v2030 = vmul.f32 %v2014, %v683
    %v2031 = vmul.f32 %v2015, %v689
    %v2032 = vmul.f32 %v2016, %v695
    %v2033 = vmul.f32 %v2017, %v701
    %v2034 = vmul.f32 %v2018, %v707
    %v2035 = vmul.f32 %v2019, %v713
    %v2036 = vmul.f32 %v2020, %v719
    %2037 = vadd.xlane.f32.xlu0 %v2021
    %v2038 = vpop.xlane.xlu0 %2037
    %2039 = vadd.xlane.f32.xlu0 %v2022
    %v2040 = vpop.xlane.xlu0 %2039
    %2041 = vadd.xlane.f32.xlu0 %v2023
    %v2042 = vpop.xlane.xlu0 %2041
    %2043 = vadd.xlane.f32.xlu0 %v2024
    %v2044 = vpop.xlane.xlu0 %2043
    %2045 = vadd.xlane.f32.xlu0 %v2025
    %v2046 = vpop.xlane.xlu0 %2045
    %2047 = vadd.xlane.f32.xlu0 %v2026
    %v2048 = vpop.xlane.xlu0 %2047
    %2049 = vadd.xlane.f32.xlu0 %v2027
    %v2050 = vpop.xlane.xlu0 %2049
    %2051 = vadd.xlane.f32.xlu0 %v2028
    %v2052 = vpop.xlane.xlu0 %2051
    %2053 = vadd.xlane.f32.xlu0 %v2029
    %v2054 = vpop.xlane.xlu0 %2053
    %2055 = vadd.xlane.f32.xlu0 %v2030
    %v2056 = vpop.xlane.xlu0 %2055
    %2057 = vadd.xlane.f32.xlu0 %v2031
    %v2058 = vpop.xlane.xlu0 %2057
    %2059 = vadd.xlane.f32.xlu0 %v2032
    %v2060 = vpop.xlane.xlu0 %2059
    %2061 = vadd.xlane.f32.xlu0 %v2033
    %v2062 = vpop.xlane.xlu0 %2061
    %2063 = vadd.xlane.f32.xlu0 %v2034
    %v2064 = vpop.xlane.xlu0 %2063
    %2065 = vadd.xlane.f32.xlu0 %v2035
    %v2066 = vpop.xlane.xlu0 %2065
    %2067 = vadd.xlane.f32.xlu0 %v2036
    %v2068 = vpop.xlane.xlu0 %2067
    %v2069 = vmul.f32 %v1142, %v1799
    %v2070 = vmul.f32 %v1148, %v1804
    %v2071 = vmul.f32 %v1154, %v1809
    %v2072 = vmul.f32 %v1160, %v1814
    %v2073 = vmul.f32 %v1166, %v1819
    %v2074 = vmul.f32 %v1172, %v1824
    %v2075 = vmul.f32 %v1178, %v1829
    %v2076 = vmul.f32 %v1184, %v1834
    %v2077 = vmul.f32 %v1190, %v1839
    %v2078 = vmul.f32 %v1196, %v1844
    %v2079 = vmul.f32 %v1202, %v1849
    %v2080 = vmul.f32 %v1208, %v1854
    %v2081 = vmul.f32 %v1214, %v1859
    %v2082 = vmul.f32 %v1220, %v1864
    %v2083 = vmul.f32 %v1226, %v1869
    %v2084 = vmul.f32 %v1232, %v1874
    %v2085 = vmul.f32 %v2069, %v629
    %v2086 = vmul.f32 %v2070, %v635
    %v2087 = vmul.f32 %v2071, %v641
    %v2088 = vmul.f32 %v2072, %v647
    %v2089 = vmul.f32 %v2073, %v653
    %v2090 = vmul.f32 %v2074, %v659
    %v2091 = vmul.f32 %v2075, %v665
    %v2092 = vmul.f32 %v2076, %v671
    %v2093 = vmul.f32 %v2077, %v677
    %v2094 = vmul.f32 %v2078, %v683
    %v2095 = vmul.f32 %v2079, %v689
    %v2096 = vmul.f32 %v2080, %v695
    %v2097 = vmul.f32 %v2081, %v701
    %v2098 = vmul.f32 %v2082, %v707
    %v2099 = vmul.f32 %v2083, %v713
    %v2100 = vmul.f32 %v2084, %v719
    %2101 = vadd.xlane.f32.xlu0 %v2085
    %v2102 = vpop.xlane.xlu0 %2101
    %2103 = vadd.xlane.f32.xlu0 %v2086
    %v2104 = vpop.xlane.xlu0 %2103
    %2105 = vadd.xlane.f32.xlu0 %v2087
    %v2106 = vpop.xlane.xlu0 %2105
    %2107 = vadd.xlane.f32.xlu0 %v2088
    %v2108 = vpop.xlane.xlu0 %2107
    %2109 = vadd.xlane.f32.xlu0 %v2089
    %v2110 = vpop.xlane.xlu0 %2109
    %2111 = vadd.xlane.f32.xlu0 %v2090
    %v2112 = vpop.xlane.xlu0 %2111
    %2113 = vadd.xlane.f32.xlu0 %v2091
    %v2114 = vpop.xlane.xlu0 %2113
    %2115 = vadd.xlane.f32.xlu0 %v2092
    %v2116 = vpop.xlane.xlu0 %2115
    %2117 = vadd.xlane.f32.xlu0 %v2093
    %v2118 = vpop.xlane.xlu0 %2117
    %2119 = vadd.xlane.f32.xlu0 %v2094
    %v2120 = vpop.xlane.xlu0 %2119
    %2121 = vadd.xlane.f32.xlu0 %v2095
    %v2122 = vpop.xlane.xlu0 %2121
    %2123 = vadd.xlane.f32.xlu0 %v2096
    %v2124 = vpop.xlane.xlu0 %2123
    %2125 = vadd.xlane.f32.xlu0 %v2097
    %v2126 = vpop.xlane.xlu0 %2125
    %2127 = vadd.xlane.f32.xlu0 %v2098
    %v2128 = vpop.xlane.xlu0 %2127
    %2129 = vadd.xlane.f32.xlu0 %v2099
    %v2130 = vpop.xlane.xlu0 %2129
    %2131 = vadd.xlane.f32.xlu0 %v2100
    %v2132 = vpop.xlane.xlu0 %2131
    %v2133 = vmax.f32 %v1910, %v1974
    %v2134 = vmax.f32 %v1912, %v1976
    %v2135 = vmax.f32 %v1914, %v1978
    %v2136 = vmax.f32 %v1916, %v1980
    %v2137 = vmax.f32 %v1918, %v1982
    %v2138 = vmax.f32 %v1920, %v1984
    %v2139 = vmax.f32 %v1922, %v1986
    %v2140 = vmax.f32 %v1924, %v1988
    %v2141 = vmax.f32 %v1926, %v1990
    %v2142 = vmax.f32 %v1928, %v1992
    %v2143 = vmax.f32 %v1930, %v1994
    %v2144 = vmax.f32 %v1932, %v1996
    %v2145 = vmax.f32 %v1934, %v1998
    %v2146 = vmax.f32 %v1936, %v2000
    %v2147 = vmax.f32 %v1938, %v2002
    %v2148 = vmax.f32 %v1940, %v2004
    %v2149 = vmax.f32 %v2133, %v2038
    %v2150 = vmax.f32 %v2134, %v2040
    %v2151 = vmax.f32 %v2135, %v2042
    %v2152 = vmax.f32 %v2136, %v2044
    %v2153 = vmax.f32 %v2137, %v2046
    %v2154 = vmax.f32 %v2138, %v2048
    %v2155 = vmax.f32 %v2139, %v2050
    %v2156 = vmax.f32 %v2140, %v2052
    %v2157 = vmax.f32 %v2141, %v2054
    %v2158 = vmax.f32 %v2142, %v2056
    %v2159 = vmax.f32 %v2143, %v2058
    %v2160 = vmax.f32 %v2144, %v2060
    %v2161 = vmax.f32 %v2145, %v2062
    %v2162 = vmax.f32 %v2146, %v2064
    %v2163 = vmax.f32 %v2147, %v2066
    %v2164 = vmax.f32 %v2148, %v2068
    %v2165 = vmax.f32 %v2149, %v2102
    %v2166 = vmax.f32 %v2150, %v2104
    %v2167 = vmax.f32 %v2151, %v2106
    %v2168 = vmax.f32 %v2152, %v2108
    %v2169 = vmax.f32 %v2153, %v2110
    %v2170 = vmax.f32 %v2154, %v2112
    %v2171 = vmax.f32 %v2155, %v2114
    %v2172 = vmax.f32 %v2156, %v2116
    %v2173 = vmax.f32 %v2157, %v2118
    %v2174 = vmax.f32 %v2158, %v2120
    %v2175 = vmax.f32 %v2159, %v2122
    %v2176 = vmax.f32 %v2160, %v2124
    %v2177 = vmax.f32 %v2161, %v2126
    %v2178 = vmax.f32 %v2162, %v2128
    %v2179 = vmax.f32 %v2163, %v2130
    %v2180 = vmax.f32 %v2164, %v2132
    %v2181 = vsub.f32 %v1910, %v2165
    %v2182 = vsub.f32 %v1912, %v2166
    %v2183 = vsub.f32 %v1914, %v2167
    %v2184 = vsub.f32 %v1916, %v2168
    %v2185 = vsub.f32 %v1918, %v2169
    %v2186 = vsub.f32 %v1920, %v2170
    %v2187 = vsub.f32 %v1922, %v2171
    %v2188 = vsub.f32 %v1924, %v2172
    %v2189 = vsub.f32 %v1926, %v2173
    %v2190 = vsub.f32 %v1928, %v2174
    %v2191 = vsub.f32 %v1930, %v2175
    %v2192 = vsub.f32 %v1932, %v2176
    %v2193 = vsub.f32 %v1934, %v2177
    %v2194 = vsub.f32 %v1936, %v2178
    %v2195 = vsub.f32 %v1938, %v2179
    %v2196 = vsub.f32 %v1940, %v2180
    %v2197 = vmul.f32 %v2181, 1.442695
    %v2198 = vpow.pop %v2197
    %v2199 = vmul.f32 %v2182, 1.442695
    %v2200 = vpow.pop %v2199
    %v2201 = vmul.f32 %v2183, 1.442695
    %v2202 = vpow.pop %v2201
    %v2203 = vmul.f32 %v2184, 1.442695
    %v2204 = vpow.pop %v2203
    %v2205 = vmul.f32 %v2185, 1.442695
    %v2206 = vpow.pop %v2205
    %v2207 = vmul.f32 %v2186, 1.442695
    %v2208 = vpow.pop %v2207
    %v2209 = vmul.f32 %v2187, 1.442695
    %v2210 = vpow.pop %v2209
    %v2211 = vmul.f32 %v2188, 1.442695
    %v2212 = vpow.pop %v2211
    %v2213 = vmul.f32 %v2189, 1.442695
    %v2214 = vpow.pop %v2213
    %v2215 = vmul.f32 %v2190, 1.442695
    %v2216 = vpow.pop %v2215
    %v2217 = vmul.f32 %v2191, 1.442695
    %v2218 = vpow.pop %v2217
    %v2219 = vmul.f32 %v2192, 1.442695
    %v2220 = vpow.pop %v2219
    %v2221 = vmul.f32 %v2193, 1.442695
    %v2222 = vpow.pop %v2221
    %v2223 = vmul.f32 %v2194, 1.442695
    %v2224 = vpow.pop %v2223
    %v2225 = vmul.f32 %v2195, 1.442695
    %v2226 = vpow.pop %v2225
    %v2227 = vmul.f32 %v2196, 1.442695
    %v2228 = vpow.pop %v2227
    %v2229 = vsub.f32 %v1974, %v2165
    %v2230 = vsub.f32 %v1976, %v2166
    %v2231 = vsub.f32 %v1978, %v2167
    %v2232 = vsub.f32 %v1980, %v2168
    %v2233 = vsub.f32 %v1982, %v2169
    %v2234 = vsub.f32 %v1984, %v2170
    %v2235 = vsub.f32 %v1986, %v2171
    %v2236 = vsub.f32 %v1988, %v2172
    %v2237 = vsub.f32 %v1990, %v2173
    %v2238 = vsub.f32 %v1992, %v2174
    %v2239 = vsub.f32 %v1994, %v2175
    %v2240 = vsub.f32 %v1996, %v2176
    %v2241 = vsub.f32 %v1998, %v2177
    %v2242 = vsub.f32 %v2000, %v2178
    %v2243 = vsub.f32 %v2002, %v2179
    %v2244 = vsub.f32 %v2004, %v2180
    %v2245 = vmul.f32 %v2229, 1.442695
    %v2246 = vpow.pop %v2245
    %v2247 = vmul.f32 %v2230, 1.442695
    %v2248 = vpow.pop %v2247
    %v2249 = vmul.f32 %v2231, 1.442695
    %v2250 = vpow.pop %v2249
    %v2251 = vmul.f32 %v2232, 1.442695
    %v2252 = vpow.pop %v2251
    %v2253 = vmul.f32 %v2233, 1.442695
    %v2254 = vpow.pop %v2253
    %v2255 = vmul.f32 %v2234, 1.442695
    %v2256 = vpow.pop %v2255
    %v2257 = vmul.f32 %v2235, 1.442695
    %v2258 = vpow.pop %v2257
    %v2259 = vmul.f32 %v2236, 1.442695
    %v2260 = vpow.pop %v2259
    %v2261 = vmul.f32 %v2237, 1.442695
    %v2262 = vpow.pop %v2261
    %v2263 = vmul.f32 %v2238, 1.442695
    %v2264 = vpow.pop %v2263
    %v2265 = vmul.f32 %v2239, 1.442695
    %v2266 = vpow.pop %v2265
    %v2267 = vmul.f32 %v2240, 1.442695
    %v2268 = vpow.pop %v2267
    %v2269 = vmul.f32 %v2241, 1.442695
    %v2270 = vpow.pop %v2269
    %v2271 = vmul.f32 %v2242, 1.442695
    %v2272 = vpow.pop %v2271
    %v2273 = vmul.f32 %v2243, 1.442695
    %v2274 = vpow.pop %v2273
    %v2275 = vmul.f32 %v2244, 1.442695
    %v2276 = vpow.pop %v2275
    %v2277 = vsub.f32 %v2038, %v2165
    %v2278 = vsub.f32 %v2040, %v2166
    %v2279 = vsub.f32 %v2042, %v2167
    %v2280 = vsub.f32 %v2044, %v2168
    %v2281 = vsub.f32 %v2046, %v2169
    %v2282 = vsub.f32 %v2048, %v2170
    %v2283 = vsub.f32 %v2050, %v2171
    %v2284 = vsub.f32 %v2052, %v2172
    %v2285 = vsub.f32 %v2054, %v2173
    %v2286 = vsub.f32 %v2056, %v2174
    %v2287 = vsub.f32 %v2058, %v2175
    %v2288 = vsub.f32 %v2060, %v2176
    %v2289 = vsub.f32 %v2062, %v2177
    %v2290 = vsub.f32 %v2064, %v2178
    %v2291 = vsub.f32 %v2066, %v2179
    %v2292 = vsub.f32 %v2068, %v2180
    %v2293 = vmul.f32 %v2277, 1.442695
    %v2294 = vpow.pop %v2293
    %v2295 = vmul.f32 %v2278, 1.442695
    %v2296 = vpow.pop %v2295
    %v2297 = vmul.f32 %v2279, 1.442695
    %v2298 = vpow.pop %v2297
    %v2299 = vmul.f32 %v2280, 1.442695
    %v2300 = vpow.pop %v2299
    %v2301 = vmul.f32 %v2281, 1.442695
    %v2302 = vpow.pop %v2301
    %v2303 = vmul.f32 %v2282, 1.442695
    %v2304 = vpow.pop %v2303
    %v2305 = vmul.f32 %v2283, 1.442695
    %v2306 = vpow.pop %v2305
    %v2307 = vmul.f32 %v2284, 1.442695
    %v2308 = vpow.pop %v2307
    %v2309 = vmul.f32 %v2285, 1.442695
    %v2310 = vpow.pop %v2309
    %v2311 = vmul.f32 %v2286, 1.442695
    %v2312 = vpow.pop %v2311
    %v2313 = vmul.f32 %v2287, 1.442695
    %v2314 = vpow.pop %v2313
    %v2315 = vmul.f32 %v2288, 1.442695
    %v2316 = vpow.pop %v2315
    %v2317 = vmul.f32 %v2289, 1.442695
    %v2318 = vpow.pop %v2317
    %v2319 = vmul.f32 %v2290, 1.442695
    %v2320 = vpow.pop %v2319
    %v2321 = vmul.f32 %v2291, 1.442695
    %v2322 = vpow.pop %v2321
    %v2323 = vmul.f32 %v2292, 1.442695
    %v2324 = vpow.pop %v2323
    %v2325 = vsub.f32 %v2102, %v2165
    %v2326 = vsub.f32 %v2104, %v2166
    %v2327 = vsub.f32 %v2106, %v2167
    %v2328 = vsub.f32 %v2108, %v2168
    %v2329 = vsub.f32 %v2110, %v2169
    %v2330 = vsub.f32 %v2112, %v2170
    %v2331 = vsub.f32 %v2114, %v2171
    %v2332 = vsub.f32 %v2116, %v2172
    %v2333 = vsub.f32 %v2118, %v2173
    %v2334 = vsub.f32 %v2120, %v2174
    %v2335 = vsub.f32 %v2122, %v2175
    %v2336 = vsub.f32 %v2124, %v2176
    %v2337 = vsub.f32 %v2126, %v2177
    %v2338 = vsub.f32 %v2128, %v2178
    %v2339 = vsub.f32 %v2130, %v2179
    %v2340 = vsub.f32 %v2132, %v2180
    %v2341 = vmul.f32 %v2325, 1.442695
    %v2342 = vpow.pop %v2341
    %v2343 = vmul.f32 %v2326, 1.442695
    %v2344 = vpow.pop %v2343
    %v2345 = vmul.f32 %v2327, 1.442695
    %v2346 = vpow.pop %v2345
    %v2347 = vmul.f32 %v2328, 1.442695
    %v2348 = vpow.pop %v2347
    %v2349 = vmul.f32 %v2329, 1.442695
    %v2350 = vpow.pop %v2349
    %v2351 = vmul.f32 %v2330, 1.442695
    %v2352 = vpow.pop %v2351
    %v2353 = vmul.f32 %v2331, 1.442695
    %v2354 = vpow.pop %v2353
    %v2355 = vmul.f32 %v2332, 1.442695
    %v2356 = vpow.pop %v2355
    %v2357 = vmul.f32 %v2333, 1.442695
    %v2358 = vpow.pop %v2357
    %v2359 = vmul.f32 %v2334, 1.442695
    %v2360 = vpow.pop %v2359
    %v2361 = vmul.f32 %v2335, 1.442695
    %v2362 = vpow.pop %v2361
    %v2363 = vmul.f32 %v2336, 1.442695
    %v2364 = vpow.pop %v2363
    %v2365 = vmul.f32 %v2337, 1.442695
    %v2366 = vpow.pop %v2365
    %v2367 = vmul.f32 %v2338, 1.442695
    %v2368 = vpow.pop %v2367
    %v2369 = vmul.f32 %v2339, 1.442695
    %v2370 = vpow.pop %v2369
    %v2371 = vmul.f32 %v2340, 1.442695
    %v2372 = vpow.pop %v2371
    %v2373 = vadd.f32 %v2198, %v2246
    %v2374 = vadd.f32 %v2200, %v2248
    %v2375 = vadd.f32 %v2202, %v2250
    %v2376 = vadd.f32 %v2204, %v2252
    %v2377 = vadd.f32 %v2206, %v2254
    %v2378 = vadd.f32 %v2208, %v2256
    %v2379 = vadd.f32 %v2210, %v2258
    %v2380 = vadd.f32 %v2212, %v2260
    %v2381 = vadd.f32 %v2214, %v2262
    %v2382 = vadd.f32 %v2216, %v2264
    %v2383 = vadd.f32 %v2218, %v2266
    %v2384 = vadd.f32 %v2220, %v2268
    %v2385 = vadd.f32 %v2222, %v2270
    %v2386 = vadd.f32 %v2224, %v2272
    %v2387 = vadd.f32 %v2226, %v2274
    %v2388 = vadd.f32 %v2228, %v2276
    %v2389 = vadd.f32 %v2373, %v2294
    %v2390 = vadd.f32 %v2374, %v2296
    %v2391 = vadd.f32 %v2375, %v2298
    %v2392 = vadd.f32 %v2376, %v2300
    %v2393 = vadd.f32 %v2377, %v2302
    %v2394 = vadd.f32 %v2378, %v2304
    %v2395 = vadd.f32 %v2379, %v2306
    %v2396 = vadd.f32 %v2380, %v2308
    %v2397 = vadd.f32 %v2381, %v2310
    %v2398 = vadd.f32 %v2382, %v2312
    %v2399 = vadd.f32 %v2383, %v2314
    %v2400 = vadd.f32 %v2384, %v2316
    %v2401 = vadd.f32 %v2385, %v2318
    %v2402 = vadd.f32 %v2386, %v2320
    %v2403 = vadd.f32 %v2387, %v2322
    %v2404 = vadd.f32 %v2388, %v2324
    %v2405 = vadd.f32 %v2389, %v2342
    %v2406 = vadd.f32 %v2390, %v2344
    %v2407 = vadd.f32 %v2391, %v2346
    %v2408 = vadd.f32 %v2392, %v2348
    %v2409 = vadd.f32 %v2393, %v2350
    %v2410 = vadd.f32 %v2394, %v2352
    %v2411 = vadd.f32 %v2395, %v2354
    %v2412 = vadd.f32 %v2396, %v2356
    %v2413 = vadd.f32 %v2397, %v2358
    %v2414 = vadd.f32 %v2398, %v2360
    %v2415 = vadd.f32 %v2399, %v2362
    %v2416 = vadd.f32 %v2400, %v2364
    %v2417 = vadd.f32 %v2401, %v2366
    %v2418 = vadd.f32 %v2402, %v2368
    %v2419 = vadd.f32 %v2403, %v2370
    %v2420 = vadd.f32 %v2404, %v2372
    %v2421 = vmul.f32 %v2198, %v856
    %v2422 = vmul.f32 %v2200, %v862
    %v2423 = vmul.f32 %v2202, %v868
    %v2424 = vmul.f32 %v2204, %v874
    %v2425 = vmul.f32 %v2206, %v880
    %v2426 = vmul.f32 %v2208, %v886
    %v2427 = vmul.f32 %v2210, %v892
    %v2428 = vmul.f32 %v2212, %v898
    %v2429 = vmul.f32 %v2214, %v904
    %v2430 = vmul.f32 %v2216, %v910
    %v2431 = vmul.f32 %v2218, %v916
    %v2432 = vmul.f32 %v2220, %v922
    %v2433 = vmul.f32 %v2222, %v928
    %v2434 = vmul.f32 %v2224, %v934
    %v2435 = vmul.f32 %v2226, %v940
    %v2436 = vmul.f32 %v2228, %v946
    %v2437 = vmul.f32 %v2246, %v952
    %v2438 = vmul.f32 %v2248, %v958
    %v2439 = vmul.f32 %v2250, %v964
    %v2440 = vmul.f32 %v2252, %v970
    %v2441 = vmul.f32 %v2254, %v976
    %v2442 = vmul.f32 %v2256, %v982
    %v2443 = vmul.f32 %v2258, %v988
    %v2444 = vmul.f32 %v2260, %v994
    %v2445 = vmul.f32 %v2262, %v1000
    %v2446 = vmul.f32 %v2264, %v1006
    %v2447 = vmul.f32 %v2266, %v1012
    %v2448 = vmul.f32 %v2268, %v1018
    %v2449 = vmul.f32 %v2270, %v1024
    %v2450 = vmul.f32 %v2272, %v1030
    %v2451 = vmul.f32 %v2274, %v1036
    %v2452 = vmul.f32 %v2276, %v1042
    %v2453 = vadd.f32 %v2421, %v2437
    %v2454 = vadd.f32 %v2422, %v2438
    %v2455 = vadd.f32 %v2423, %v2439
    %v2456 = vadd.f32 %v2424, %v2440
    %v2457 = vadd.f32 %v2425, %v2441
    %v2458 = vadd.f32 %v2426, %v2442
    %v2459 = vadd.f32 %v2427, %v2443
    %v2460 = vadd.f32 %v2428, %v2444
    %v2461 = vadd.f32 %v2429, %v2445
    %v2462 = vadd.f32 %v2430, %v2446
    %v2463 = vadd.f32 %v2431, %v2447
    %v2464 = vadd.f32 %v2432, %v2448
    %v2465 = vadd.f32 %v2433, %v2449
    %v2466 = vadd.f32 %v2434, %v2450
    %v2467 = vadd.f32 %v2435, %v2451
    %v2468 = vadd.f32 %v2436, %v2452
    %v2469 = vmul.f32 %v2294, %v1048
    %v2470 = vmul.f32 %v2296, %v1054
    %v2471 = vmul.f32 %v2298, %v1060
    %v2472 = vmul.f32 %v2300, %v1066
    %v2473 = vmul.f32 %v2302, %v1072
    %v2474 = vmul.f32 %v2304, %v1078
    %v2475 = vmul.f32 %v2306, %v1084
    %v2476 = vmul.f32 %v2308, %v1090
    %v2477 = vmul.f32 %v2310, %v1096
    %v2478 = vmul.f32 %v2312, %v1102
    %v2479 = vmul.f32 %v2314, %v1108
    %v2480 = vmul.f32 %v2316, %v1114
    %v2481 = vmul.f32 %v2318, %v1120
    %v2482 = vmul.f32 %v2320, %v1126
    %v2483 = vmul.f32 %v2322, %v1132
    %v2484 = vmul.f32 %v2324, %v1138
    %v2485 = vadd.f32 %v2453, %v2469
    %v2486 = vadd.f32 %v2454, %v2470
    %v2487 = vadd.f32 %v2455, %v2471
    %v2488 = vadd.f32 %v2456, %v2472
    %v2489 = vadd.f32 %v2457, %v2473
    %v2490 = vadd.f32 %v2458, %v2474
    %v2491 = vadd.f32 %v2459, %v2475
    %v2492 = vadd.f32 %v2460, %v2476
    %v2493 = vadd.f32 %v2461, %v2477
    %v2494 = vadd.f32 %v2462, %v2478
    %v2495 = vadd.f32 %v2463, %v2479
    %v2496 = vadd.f32 %v2464, %v2480
    %v2497 = vadd.f32 %v2465, %v2481
    %v2498 = vadd.f32 %v2466, %v2482
    %v2499 = vadd.f32 %v2467, %v2483
    %v2500 = vadd.f32 %v2468, %v2484
    %v2501 = vmul.f32 %v2342, %v1144
    %v2502 = vmul.f32 %v2344, %v1150
    %v2503 = vmul.f32 %v2346, %v1156
    %v2504 = vmul.f32 %v2348, %v1162
    %v2505 = vmul.f32 %v2350, %v1168
    %v2506 = vmul.f32 %v2352, %v1174
    %v2507 = vmul.f32 %v2354, %v1180
    %v2508 = vmul.f32 %v2356, %v1186
    %v2509 = vmul.f32 %v2358, %v1192
    %v2510 = vmul.f32 %v2360, %v1198
    %v2511 = vmul.f32 %v2362, %v1204
    %v2512 = vmul.f32 %v2364, %v1210
    %v2513 = vmul.f32 %v2366, %v1216
    %v2514 = vmul.f32 %v2368, %v1222
    %v2515 = vmul.f32 %v2370, %v1228
    %v2516 = vmul.f32 %v2372, %v1234
    %v2517 = vadd.f32 %v2485, %v2501
    %v2518 = vadd.f32 %v2486, %v2502
    %v2519 = vadd.f32 %v2487, %v2503
    %v2520 = vadd.f32 %v2488, %v2504
    %v2521 = vadd.f32 %v2489, %v2505
    %v2522 = vadd.f32 %v2490, %v2506
    %v2523 = vadd.f32 %v2491, %v2507
    %v2524 = vadd.f32 %v2492, %v2508
    %v2525 = vadd.f32 %v2493, %v2509
    %v2526 = vadd.f32 %v2494, %v2510
    %v2527 = vadd.f32 %v2495, %v2511
    %v2528 = vadd.f32 %v2496, %v2512
    %v2529 = vadd.f32 %v2497, %v2513
    %v2530 = vadd.f32 %v2498, %v2514
    %v2531 = vadd.f32 %v2499, %v2515
    %v2532 = vadd.f32 %v2500, %v2516
    %v2533 = vrcp.pop %v2405
    %v2534 = vrcp.pop %v2406
    %v2535 = vrcp.pop %v2407
    %v2536 = vrcp.pop %v2408
    %v2537 = vrcp.pop %v2409
    %v2538 = vrcp.pop %v2410
    %v2539 = vrcp.pop %v2411
    %v2540 = vrcp.pop %v2412
    %v2541 = vrcp.pop %v2413
    %v2542 = vrcp.pop %v2414
    %v2543 = vrcp.pop %v2415
    %v2544 = vrcp.pop %v2416
    %v2545 = vrcp.pop %v2417
    %v2546 = vrcp.pop %v2418
    %v2547 = vrcp.pop %v2419
    %v2548 = vrcp.pop %v2420
    %v2549 = vmul.f32 %v2517, %v2533
    %v2550 = vmul.f32 %v2518, %v2534
    %v2551 = vmul.f32 %v2519, %v2535
    %v2552 = vmul.f32 %v2520, %v2536
    %v2553 = vmul.f32 %v2521, %v2537
    %v2554 = vmul.f32 %v2522, %v2538
    %v2555 = vmul.f32 %v2523, %v2539
    %v2556 = vmul.f32 %v2524, %v2540
    %v2557 = vmul.f32 %v2525, %v2541
    %v2558 = vmul.f32 %v2526, %v2542
    %v2559 = vmul.f32 %v2527, %v2543
    %v2560 = vmul.f32 %v2528, %v2544
    %v2561 = vmul.f32 %v2529, %v2545
    %v2562 = vmul.f32 %v2530, %v2546
    %v2563 = vmul.f32 %v2531, %v2547
    %v2564 = vmul.f32 %v2532, %v2548
    %v2565 = vld [vmem:[%s10] sm:$0x1]
    %v2566 = vsub.f32 0.0, %v2565
    %v2567 = vmul.f32 %v2566, 1.442695
    %v2568 = vpow.pop %v2567
    %v2569 = vadd.f32 %v2568, 1.0
    %v2570 = vrcp.pop %v2569
    %v2571 = vmul.f32 1.0, %v2570
    %v2573 = vlaneseq
    %v2574 = vshrl.u32 %v2573, 7
    %v2575 = vsub.s32 0, %v2574
    %v2576 = vrot.slane %v2571, %v2575
    %v2578 = vmul.f32 %v2576, %v631
    %v2579 = vmul.f32 %v2576, %v637
    %v2580 = vmul.f32 %v2576, %v643
    %v2581 = vmul.f32 %v2576, %v649
    %v2582 = vmul.f32 %v2576, %v655
    %v2583 = vmul.f32 %v2576, %v661
    %v2584 = vmul.f32 %v2576, %v667
    %v2585 = vmul.f32 %v2576, %v673
    %v2586 = vmul.f32 %v2576, %v679
    %v2587 = vmul.f32 %v2576, %v685
    %v2588 = vmul.f32 %v2576, %v691
    %v2589 = vmul.f32 %v2576, %v697
    %v2590 = vmul.f32 %v2576, %v703
    %v2591 = vmul.f32 %v2576, %v709
    %v2592 = vmul.f32 %v2576, %v715
    %v2593 = vmul.f32 %v2576, %v721
    %v2594 = vsub.f32 1.0, %v2571
    %v2596 = vlaneseq
    %v2597 = vshrl.u32 %v2596, 7
    %v2598 = vsub.s32 0, %v2597
    %v2599 = vrot.slane %v2594, %v2598
    %v2601 = vmul.f32 %v2599, %v2549
    %v2602 = vmul.f32 %v2599, %v2550
    %v2603 = vmul.f32 %v2599, %v2551
    %v2604 = vmul.f32 %v2599, %v2552
    %v2605 = vmul.f32 %v2599, %v2553
    %v2606 = vmul.f32 %v2599, %v2554
    %v2607 = vmul.f32 %v2599, %v2555
    %v2608 = vmul.f32 %v2599, %v2556
    %v2609 = vmul.f32 %v2599, %v2557
    %v2610 = vmul.f32 %v2599, %v2558
    %v2611 = vmul.f32 %v2599, %v2559
    %v2612 = vmul.f32 %v2599, %v2560
    %v2613 = vmul.f32 %v2599, %v2561
    %v2614 = vmul.f32 %v2599, %v2562
    %v2615 = vmul.f32 %v2599, %v2563
    %v2616 = vmul.f32 %v2599, %v2564
    %v2617 = vadd.f32 %v2578, %v2601
    %v2618 = vadd.f32 %v2579, %v2602
    %v2619 = vadd.f32 %v2580, %v2603
    %v2620 = vadd.f32 %v2581, %v2604
    %v2621 = vadd.f32 %v2582, %v2605
    %v2622 = vadd.f32 %v2583, %v2606
    %v2623 = vadd.f32 %v2584, %v2607
    %v2624 = vadd.f32 %v2585, %v2608
    %v2625 = vadd.f32 %v2586, %v2609
    %v2626 = vadd.f32 %v2587, %v2610
    %v2627 = vadd.f32 %v2588, %v2611
    %v2628 = vadd.f32 %v2589, %v2612
    %v2629 = vadd.f32 %v2590, %v2613
    %v2630 = vadd.f32 %v2591, %v2614
    %v2631 = vadd.f32 %v2592, %v2615
    %v2632 = vadd.f32 %v2593, %v2616
    %v2633 = vmul.f32 %v2617, 0.999995
    %v2634 = vmul.f32 %v2618, 0.999995
    %v2635 = vmul.f32 %v2619, 0.999995
    %v2636 = vmul.f32 %v2620, 0.999995
    %v2637 = vmul.f32 %v2621, 0.999995
    %v2638 = vmul.f32 %v2622, 0.999995
    %v2639 = vmul.f32 %v2623, 0.999995
    %v2640 = vmul.f32 %v2624, 0.999995
    %v2641 = vmul.f32 %v2625, 0.999995
    %v2642 = vmul.f32 %v2626, 0.999995
    %v2643 = vmul.f32 %v2627, 0.999995
    %v2644 = vmul.f32 %v2628, 0.999995
    %v2645 = vmul.f32 %v2629, 0.999995
    %v2646 = vmul.f32 %v2630, 0.999995
    %v2647 = vmul.f32 %v2631, 0.999995
    %v2648 = vmul.f32 %v2632, 0.999995
    %v2649 = vtanh.pop %v2633
    %v2650 = vtanh.pop %v2634
    %v2651 = vtanh.pop %v2635
    %v2652 = vtanh.pop %v2636
    %v2653 = vtanh.pop %v2637
    %v2654 = vtanh.pop %v2638
    %v2655 = vtanh.pop %v2639
    %v2656 = vtanh.pop %v2640
    %v2657 = vtanh.pop %v2641
    %v2658 = vtanh.pop %v2642
    %v2659 = vtanh.pop %v2643
    %v2660 = vtanh.pop %v2644
    %v2661 = vtanh.pop %v2645
    %v2662 = vtanh.pop %v2646
    %v2663 = vtanh.pop %v2647
    %v2664 = vtanh.pop %v2648
    %v2665 = vld [vmem:[#allocation4] sm:$0xff]
    %v2666 = vld [vmem:[#allocation4 + $0x8] sm:$0xff]
    %v2667 = vld [vmem:[#allocation4 + $0x10] sm:$0xff]
    %v2668 = vld [vmem:[#allocation4 + $0x18] sm:$0xff]
    %v2669 = vld [vmem:[#allocation4 + $0x20] sm:$0xff]
    %v2670 = vld [vmem:[#allocation4 + $0x28] sm:$0xff]
    %v2671 = vld [vmem:[#allocation4 + $0x30] sm:$0xff]
    %v2672 = vld [vmem:[#allocation4 + $0x38] sm:$0xff]
    %v2673 = vld [vmem:[#allocation4 + $0x40] sm:$0xff]
    %v2674 = vld [vmem:[#allocation4 + $0x48] sm:$0xff]
    %v2675 = vld [vmem:[#allocation4 + $0x50] sm:$0xff]
    %v2676 = vld [vmem:[#allocation4 + $0x58] sm:$0xff]
    %v2677 = vld [vmem:[#allocation4 + $0x60] sm:$0xff]
    %v2678 = vld [vmem:[#allocation4 + $0x68] sm:$0xff]
    %v2679 = vld [vmem:[#allocation4 + $0x70] sm:$0xff]
    %v2680 = vld [vmem:[#allocation4 + $0x78] sm:$0xff]
    %v2681 = vld [vmem:[%s9] sm:$0x1]
    %v2683 = vlaneseq
    %v2684 = vshrl.u32 %v2683, 7
    %v2685 = vsub.s32 0, %v2684
    %v2686 = vrot.slane %v2681, %v2685
    %2688 = vmatprep.subr.mxu0 0.0
    %2689 = vmatpush1.msra.mxu0 %v2665
    %2690 = vmatprep.subr.mxu0 0.0
    %2691 = vmatpush1.msra.mxu0 %v2666
    %2692 = vmatprep.subr.mxu0 0.0
    %2693 = vmatpush1.msra.mxu0 %v2667
    %2694 = vmatprep.subr.mxu0 0.0
    %2695 = vmatpush1.msra.mxu0 %v2668
    %2696 = vmatprep.subr.mxu0 0.0
    %2697 = vmatpush1.msra.mxu0 %v2669
    %2698 = vmatprep.subr.mxu0 0.0
    %2699 = vmatpush1.msra.mxu0 %v2670
    %2700 = vmatprep.subr.mxu0 0.0
    %2701 = vmatpush1.msra.mxu0 %v2671
    %2702 = vmatprep.subr.mxu0 0.0
    %2703 = vmatpush1.msra.mxu0 %v2672
    %2704 = vmatprep.subr.mxu0 0.0
    %2705 = vmatpush1.msra.mxu0 %v2673
    %2706 = vmatprep.subr.mxu0 0.0
    %2707 = vmatpush1.msra.mxu0 %v2674
    %2708 = vmatprep.subr.mxu0 0.0
    %2709 = vmatpush1.msra.mxu0 %v2675
    %2710 = vmatprep.subr.mxu0 0.0
    %2711 = vmatpush1.msra.mxu0 %v2676
    %2712 = vmatprep.subr.mxu0 0.0
    %2713 = vmatpush1.msra.mxu0 %v2677
    %2714 = vmatprep.subr.mxu0 0.0
    %2715 = vmatpush1.msra.mxu0 %v2678
    %2716 = vmatprep.subr.mxu0 0.0
    %2717 = vmatpush1.msra.mxu0 %v2679
    %2718 = vmatprep.subr.mxu0 0.0
    %2719 = vmatpush1.msra.mxu0 %v2680
    %2720 = vmatprep.subr.mxu0 0.0
    %2721 = vmatpush1.msra.mxu0 0.0
    %2722 = vmatprep.subr.mxu0 0.0
    %2723 = vmatpush1.msra.mxu0 0.0
    %2724 = vmatprep.subr.mxu0 0.0
    %2725 = vmatpush1.msra.mxu0 0.0
    %2726 = vmatprep.subr.mxu0 0.0
    %2727 = vmatpush1.msra.mxu0 0.0
    %2728 = vmatprep.subr.mxu0 0.0
    %2729 = vmatpush1.msra.mxu0 0.0
    %2730 = vmatprep.subr.mxu0 0.0
    %2731 = vmatpush1.msra.mxu0 0.0
    %2732 = vmatprep.subr.mxu0 0.0
    %2733 = vmatpush1.msra.mxu0 0.0
    %2734 = vmatprep.subr.mxu0 0.0
    %2735 = vmatpush1.msra.mxu0 0.0
    %2736 = vmatprep.subr.mxu0 0.0
    %2737 = vmatpush1.msra.mxu0 0.0
    %2738 = vmatprep.subr.mxu0 0.0
    %2739 = vmatpush1.msra.mxu0 0.0
    %2740 = vmatprep.subr.mxu0 0.0
    %2741 = vmatpush1.msra.mxu0 0.0
    %2742 = vmatprep.subr.mxu0 0.0
    %2743 = vmatpush1.msra.mxu0 0.0
    %2744 = vmatprep.subr.mxu0 0.0
    %2745 = vmatpush1.msra.mxu0 0.0
    %2746 = vmatprep.subr.mxu0 0.0
    %2747 = vmatpush1.msra.mxu0 0.0
    %2748 = vmatprep.subr.mxu0 0.0
    %2749 = vmatpush1.msra.mxu0 0.0
    %2750 = vmatprep.subr.mxu0 0.0
    %2751 = vmatpush1.msra.mxu0 0.0
    %2752 = vmatprep.mubr.f32.mxu0 0.0
    %2753 = vmatmul.mubr.f32.gmra.mrb[0].mxu0 %v221
    %v2754 = vpop.f32.mrb[0].mxu0
    %v2755 = vadd.f32 %v2686, %v2754
    %v2756 = vpop.f32.mrb[0].mxu0
    %2757 = vdwg.mxu0
    %v2758 = vld [vmem:[%s13] sm:$0xff]
    %2759 = vmatprep.subr.mxu0 0.0
    %2760 = vmatpush1.msra.mxu0 %v2649
    %2761 = vmatprep.subr.mxu0 0.0
    %2762 = vmatpush1.msra.mxu0 %v2650
    %2763 = vmatprep.subr.mxu0 0.0
    %2764 = vmatpush1.msra.mxu0 %v2651
    %2765 = vmatprep.subr.mxu0 0.0
    %2766 = vmatpush1.msra.mxu0 %v2652
    %2767 = vmatprep.subr.mxu0 0.0
    %2768 = vmatpush1.msra.mxu0 %v2653
    %2769 = vmatprep.subr.mxu0 0.0
    %2770 = vmatpush1.msra.mxu0 %v2654
    %2771 = vmatprep.subr.mxu0 0.0
    %2772 = vmatpush1.msra.mxu0 %v2655
    %2773 = vmatprep.subr.mxu0 0.0
    %2774 = vmatpush1.msra.mxu0 %v2656
    %2775 = vmatprep.subr.mxu0 0.0
    %2776 = vmatpush1.msra.mxu0 %v2657
    %2777 = vmatprep.subr.mxu0 0.0
    %2778 = vmatpush1.msra.mxu0 %v2658
    %2779 = vmatprep.subr.mxu0 0.0
    %2780 = vmatpush1.msra.mxu0 %v2659
    %2781 = vmatprep.subr.mxu0 0.0
    %2782 = vmatpush1.msra.mxu0 %v2660
    %2783 = vmatprep.subr.mxu0 0.0
    %2784 = vmatpush1.msra.mxu0 %v2661
    %2785 = vmatprep.subr.mxu0 0.0
    %2786 = vmatpush1.msra.mxu0 %v2662
    %2787 = vmatprep.subr.mxu0 0.0
    %2788 = vmatpush1.msra.mxu0 %v2663
    %2789 = vmatprep.subr.mxu0 0.0
    %2790 = vmatpush1.msra.mxu0 %v2664
    %2791 = vmatprep.subr.mxu0 0.0
    %2792 = vmatpush1.msra.mxu0 0.0
    %2793 = vmatprep.subr.mxu0 0.0
    %2794 = vmatpush1.msra.mxu0 0.0
    %2795 = vmatprep.subr.mxu0 0.0
    %2796 = vmatpush1.msra.mxu0 0.0
    %2797 = vmatprep.subr.mxu0 0.0
    %2798 = vmatpush1.msra.mxu0 0.0
    %2799 = vmatprep.subr.mxu0 0.0
    %2800 = vmatpush1.msra.mxu0 0.0
    %2801 = vmatprep.subr.mxu0 0.0
    %2802 = vmatpush1.msra.mxu0 0.0
    %2803 = vmatprep.subr.mxu0 0.0
    %2804 = vmatpush1.msra.mxu0 0.0
    %2805 = vmatprep.subr.mxu0 0.0
    %2806 = vmatpush1.msra.mxu0 0.0
    %2807 = vmatprep.subr.mxu0 0.0
    %2808 = vmatpush1.msra.mxu0 0.0
    %2809 = vmatprep.subr.mxu0 0.0
    %2810 = vmatpush1.msra.mxu0 0.0
    %2811 = vmatprep.subr.mxu0 0.0
    %2812 = vmatpush1.msra.mxu0 0.0
    %2813 = vmatprep.subr.mxu0 0.0
    %2814 = vmatpush1.msra.mxu0 0.0
    %2815 = vmatprep.subr.mxu0 0.0
    %2816 = vmatpush1.msra.mxu0 0.0
    %2817 = vmatprep.subr.mxu0 0.0
    %2818 = vmatpush1.msra.mxu0 0.0
    %2819 = vmatprep.subr.mxu0 0.0
    %2820 = vmatpush1.msra.mxu0 0.0
    %2821 = vmatprep.subr.mxu0 0.0
    %2822 = vmatpush1.msra.mxu0 0.0
    %2823 = vmatprep.mubr.f32.mxu0 0.0
    %2824 = vmatmul.mubr.f32.gmra.mrb[0].mxu0 %v2758
    %v2825 = vpop.f32.mrb[0].mxu0
    %v2826 = vadd.f32 0.0, %v2825
    %v2827 = vpop.f32.mrb[0].mxu0
    %2828 = vdwg.mxu0
    %v2829 = vld [vmem:[%s14] sm:$0xff]
    %v2831 = vsel %vm150, %v2829, 0
    %2833 = vmatprep.subr.mxu0 0.0
    %2834 = vmatpush1.msra.mxu0 %v2755
    %2835 = vmatprep.subr.mxu0 0.0
    %2836 = vmatpush1.msra.mxu0 0.0
    %2837 = vmatprep.subr.mxu0 0.0
    %2838 = vmatpush1.msra.mxu0 0.0
    %2839 = vmatprep.subr.mxu0 0.0
    %2840 = vmatpush1.msra.mxu0 0.0
    %2841 = vmatprep.subr.mxu0 0.0
    %2842 = vmatpush1.msra.mxu0 0.0
    %2843 = vmatprep.subr.mxu0 0.0
    %2844 = vmatpush1.msra.mxu0 0.0
    %2845 = vmatprep.subr.mxu0 0.0
    %2846 = vmatpush1.msra.mxu0 0.0
    %2847 = vmatprep.subr.mxu0 0.0
    %2848 = vmatpush1.msra.mxu0 0.0
    %2849 = vmatprep.subr.mxu0 0.0
    %2850 = vmatpush1.msra.mxu0 0.0
    %2851 = vmatprep.subr.mxu0 0.0
    %2852 = vmatpush1.msra.mxu0 0.0
    %2853 = vmatprep.subr.mxu0 0.0
    %2854 = vmatpush1.msra.mxu0 0.0
    %2855 = vmatprep.subr.mxu0 0.0
    %2856 = vmatpush1.msra.mxu0 0.0
    %2857 = vmatprep.subr.mxu0 0.0
    %2858 = vmatpush1.msra.mxu0 0.0
    %2859 = vmatprep.subr.mxu0 0.0
    %2860 = vmatpush1.msra.mxu0 0.0
    %2861 = vmatprep.subr.mxu0 0.0
    %2862 = vmatpush1.msra.mxu0 0.0
    %2863 = vmatprep.subr.mxu0 0.0
    %2864 = vmatpush1.msra.mxu0 0.0
    %2865 = vmatprep.subr.mxu0 0.0
    %2866 = vmatpush1.msra.mxu0 0.0
    %2867 = vmatprep.subr.mxu0 0.0
    %2868 = vmatpush1.msra.mxu0 0.0
    %2869 = vmatprep.subr.mxu0 0.0
    %2870 = vmatpush1.msra.mxu0 0.0
    %2871 = vmatprep.subr.mxu0 0.0
    %2872 = vmatpush1.msra.mxu0 0.0
    %2873 = vmatprep.subr.mxu0 0.0
    %2874 = vmatpush1.msra.mxu0 0.0
    %2875 = vmatprep.subr.mxu0 0.0
    %2876 = vmatpush1.msra.mxu0 0.0
    %2877 = vmatprep.subr.mxu0 0.0
    %2878 = vmatpush1.msra.mxu0 0.0
    %2879 = vmatprep.subr.mxu0 0.0
    %2880 = vmatpush1.msra.mxu0 0.0
    %2881 = vmatprep.subr.mxu0 0.0
    %2882 = vmatpush1.msra.mxu0 0.0
    %2883 = vmatprep.subr.mxu0 0.0
    %2884 = vmatpush1.msra.mxu0 0.0
    %2885 = vmatprep.subr.mxu0 0.0
    %2886 = vmatpush1.msra.mxu0 0.0
    %2887 = vmatprep.subr.mxu0 0.0
    %2888 = vmatpush1.msra.mxu0 0.0
    %2889 = vmatprep.subr.mxu0 0.0
    %2890 = vmatpush1.msra.mxu0 0.0
    %2891 = vmatprep.subr.mxu0 0.0
    %2892 = vmatpush1.msra.mxu0 0.0
    %2893 = vmatprep.subr.mxu0 0.0
    %2894 = vmatpush1.msra.mxu0 0.0
    %2895 = vmatprep.subr.mxu0 0.0
    %2896 = vmatpush1.msra.mxu0 0.0
    %2897 = vmatprep.mubr.f32.mxu0 0.0
    %2898 = vmatmul.mubr.f32.gmra.mrb[0].mxu0 %v2831
    %v2899 = vpop.f32.mrb[0].mxu0
    %v2900 = vadd.f32 0.0, %v2899
    %v2901 = vpop.f32.mrb[0].mxu0
    %2902 = vdwg.mxu0
    %v2903 = vld [vmem:[#allocation7] sm:$0xff]
    %v2904 = vld [vmem:[#allocation7 + $0x8] sm:$0xff]
    %v2905 = vld [vmem:[#allocation7 + $0x10] sm:$0xff]
    %v2906 = vld [vmem:[#allocation7 + $0x18] sm:$0xff]
    %v2907 = vld [vmem:[#allocation7 + $0x20] sm:$0xff]
    %v2908 = vld [vmem:[#allocation7 + $0x28] sm:$0xff]
    %v2909 = vld [vmem:[#allocation7 + $0x30] sm:$0xff]
    %v2910 = vld [vmem:[#allocation7 + $0x38] sm:$0xff]
    %v2911 = vld [vmem:[#allocation7 + $0x40] sm:$0xff]
    %v2912 = vld [vmem:[#allocation7 + $0x48] sm:$0xff]
    %v2913 = vld [vmem:[#allocation7 + $0x50] sm:$0xff]
    %v2914 = vld [vmem:[#allocation7 + $0x58] sm:$0xff]
    %v2915 = vld [vmem:[#allocation7 + $0x60] sm:$0xff]
    %v2916 = vld [vmem:[#allocation7 + $0x68] sm:$0xff]
    %v2917 = vld [vmem:[#allocation7 + $0x70] sm:$0xff]
    %v2918 = vld [vmem:[#allocation7 + $0x78] sm:$0xff]
    %v2919 = vld [vmem:[#allocation9] sm:$0xff]
    %v2920 = vld [vmem:[#allocation9 + $0x8] sm:$0xff]
    %v2921 = vld [vmem:[#allocation9 + $0x10] sm:$0xff]
    %v2922 = vld [vmem:[#allocation9 + $0x18] sm:$0xff]
    %v2923 = vld [vmem:[#allocation9 + $0x20] sm:$0xff]
    %v2924 = vld [vmem:[#allocation9 + $0x28] sm:$0xff]
    %v2925 = vld [vmem:[#allocation9 + $0x30] sm:$0xff]
    %v2926 = vld [vmem:[#allocation9 + $0x38] sm:$0xff]
    %v2927 = vld [vmem:[#allocation9 + $0x40] sm:$0xff]
    %v2928 = vld [vmem:[#allocation9 + $0x48] sm:$0xff]
    %v2929 = vld [vmem:[#allocation9 + $0x50] sm:$0xff]
    %v2930 = vld [vmem:[#allocation9 + $0x58] sm:$0xff]
    %v2931 = vld [vmem:[#allocation9 + $0x60] sm:$0xff]
    %v2932 = vld [vmem:[#allocation9 + $0x68] sm:$0xff]
    %v2933 = vld [vmem:[#allocation9 + $0x70] sm:$0xff]
    %v2934 = vld [vmem:[#allocation9 + $0x78] sm:$0xff]
    %2935 = vmatprep.subr.mxu0 0.0
    %2936 = vmatpush1.msra.mxu0 %v2919
    %2937 = vmatprep.subr.mxu0 0.0
    %2938 = vmatpush1.msra.mxu0 %v2920
    %2939 = vmatprep.subr.mxu0 0.0
    %2940 = vmatpush1.msra.mxu0 %v2921
    %2941 = vmatprep.subr.mxu0 0.0
    %2942 = vmatpush1.msra.mxu0 %v2922
    %2943 = vmatprep.subr.mxu0 0.0
    %2944 = vmatpush1.msra.mxu0 %v2923
    %2945 = vmatprep.subr.mxu0 0.0
    %2946 = vmatpush1.msra.mxu0 %v2924
    %2947 = vmatprep.subr.mxu0 0.0
    %2948 = vmatpush1.msra.mxu0 %v2925
    %2949 = vmatprep.subr.mxu0 0.0
    %2950 = vmatpush1.msra.mxu0 %v2926
    %2951 = vmatprep.subr.mxu0 0.0
    %2952 = vmatpush1.msra.mxu0 %v2927
    %2953 = vmatprep.subr.mxu0 0.0
    %2954 = vmatpush1.msra.mxu0 %v2928
    %2955 = vmatprep.subr.mxu0 0.0
    %2956 = vmatpush1.msra.mxu0 %v2929
    %2957 = vmatprep.subr.mxu0 0.0
    %2958 = vmatpush1.msra.mxu0 %v2930
    %2959 = vmatprep.subr.mxu0 0.0
    %2960 = vmatpush1.msra.mxu0 %v2931
    %2961 = vmatprep.subr.mxu0 0.0
    %2962 = vmatpush1.msra.mxu0 %v2932
    %2963 = vmatprep.subr.mxu0 0.0
    %2964 = vmatpush1.msra.mxu0 %v2933
    %2965 = vmatprep.subr.mxu0 0.0
    %2966 = vmatpush1.msra.mxu0 %v2934
    %2967 = vmatprep.subr.mxu0 0.0
    %2968 = vmatpush1.msra.mxu0 0.0
    %2969 = vmatprep.subr.mxu0 0.0
    %2970 = vmatpush1.msra.mxu0 0.0
    %2971 = vmatprep.subr.mxu0 0.0
    %2972 = vmatpush1.msra.mxu0 0.0
    %2973 = vmatprep.subr.mxu0 0.0
    %2974 = vmatpush1.msra.mxu0 0.0
    %2975 = vmatprep.subr.mxu0 0.0
    %2976 = vmatpush1.msra.mxu0 0.0
    %2977 = vmatprep.subr.mxu0 0.0
    %2978 = vmatpush1.msra.mxu0 0.0
    %2979 = vmatprep.subr.mxu0 0.0
    %2980 = vmatpush1.msra.mxu0 0.0
    %2981 = vmatprep.subr.mxu0 0.0
    %2982 = vmatpush1.msra.mxu0 0.0
    %2983 = vmatprep.subr.mxu0 0.0
    %2984 = vmatpush1.msra.mxu0 0.0
    %2985 = vmatprep.subr.mxu0 0.0
    %2986 = vmatpush1.msra.mxu0 0.0
    %2987 = vmatprep.subr.mxu0 0.0
    %2988 = vmatpush1.msra.mxu0 0.0
    %2989 = vmatprep.subr.mxu0 0.0
    %2990 = vmatpush1.msra.mxu0 0.0
    %2991 = vmatprep.subr.mxu0 0.0
    %2992 = vmatpush1.msra.mxu0 0.0
    %2993 = vmatprep.subr.mxu0 0.0
    %2994 = vmatpush1.msra.mxu0 0.0
    %2995 = vmatprep.subr.mxu0 0.0
    %2996 = vmatpush1.msra.mxu0 0.0
    %2997 = vmatprep.subr.mxu0 0.0
    %2998 = vmatpush1.msra.mxu0 0.0
    %2999 = vmatprep.mubr.f32.mxu0 0.0
    %3000 = vmatmul.mubr.f32.gmra.mrb[0].mxu0 %v2900
    %v3001 = vpop.f32.mrb[0].mxu0
    %v3002 = vadd.f32 0.0, %v3001
    %v3003 = vpop.f32.mrb[0].mxu0
    %3004 = vdwg.mxu0
    %3005 = vmatprep.subr.mxu0 0.0
    %3006 = vmatpush1.msra.mxu0 %v2903
    %3007 = vmatprep.subr.mxu0 0.0
    %3008 = vmatpush1.msra.mxu0 %v2904
    %3009 = vmatprep.subr.mxu0 0.0
    %3010 = vmatpush1.msra.mxu0 %v2905
    %3011 = vmatprep.subr.mxu0 0.0
    %3012 = vmatpush1.msra.mxu0 %v2906
    %3013 = vmatprep.subr.mxu0 0.0
    %3014 = vmatpush1.msra.mxu0 %v2907
    %3015 = vmatprep.subr.mxu0 0.0
    %3016 = vmatpush1.msra.mxu0 %v2908
    %3017 = vmatprep.subr.mxu0 0.0
    %3018 = vmatpush1.msra.mxu0 %v2909
    %3019 = vmatprep.subr.mxu0 0.0
    %3020 = vmatpush1.msra.mxu0 %v2910
    %3021 = vmatprep.subr.mxu0 0.0
    %3022 = vmatpush1.msra.mxu0 %v2911
    %3023 = vmatprep.subr.mxu0 0.0
    %3024 = vmatpush1.msra.mxu0 %v2912
    %3025 = vmatprep.subr.mxu0 0.0
    %3026 = vmatpush1.msra.mxu0 %v2913
    %3027 = vmatprep.subr.mxu0 0.0
    %3028 = vmatpush1.msra.mxu0 %v2914
    %3029 = vmatprep.subr.mxu0 0.0
    %3030 = vmatpush1.msra.mxu0 %v2915
    %3031 = vmatprep.subr.mxu0 0.0
    %3032 = vmatpush1.msra.mxu0 %v2916
    %3033 = vmatprep.subr.mxu0 0.0
    %3034 = vmatpush1.msra.mxu0 %v2917
    %3035 = vmatprep.subr.mxu0 0.0
    %3036 = vmatpush1.msra.mxu0 %v2918
    %3037 = vmatprep.subr.mxu0 0.0
    %3038 = vmatpush1.msra.mxu0 0.0
    %3039 = vmatprep.subr.mxu0 0.0
    %3040 = vmatpush1.msra.mxu0 0.0
    %3041 = vmatprep.subr.mxu0 0.0
    %3042 = vmatpush1.msra.mxu0 0.0
    %3043 = vmatprep.subr.mxu0 0.0
    %3044 = vmatpush1.msra.mxu0 0.0
    %3045 = vmatprep.subr.mxu0 0.0
    %3046 = vmatpush1.msra.mxu0 0.0
    %3047 = vmatprep.subr.mxu0 0.0
    %3048 = vmatpush1.msra.mxu0 0.0
    %3049 = vmatprep.subr.mxu0 0.0
    %3050 = vmatpush1.msra.mxu0 0.0
    %3051 = vmatprep.subr.mxu0 0.0
    %3052 = vmatpush1.msra.mxu0 0.0
    %3053 = vmatprep.subr.mxu0 0.0
    %3054 = vmatpush1.msra.mxu0 0.0
    %3055 = vmatprep.subr.mxu0 0.0
    %3056 = vmatpush1.msra.mxu0 0.0
    %3057 = vmatprep.subr.mxu0 0.0
    %3058 = vmatpush1.msra.mxu0 0.0
    %3059 = vmatprep.subr.mxu0 0.0
    %3060 = vmatpush1.msra.mxu0 0.0
    %3061 = vmatprep.subr.mxu0 0.0
    %3062 = vmatpush1.msra.mxu0 0.0
    %3063 = vmatprep.subr.mxu0 0.0
    %3064 = vmatpush1.msra.mxu0 0.0
    %3065 = vmatprep.subr.mxu0 0.0
    %3066 = vmatpush1.msra.mxu0 0.0
    %3067 = vmatprep.subr.mxu0 0.0
    %3068 = vmatpush1.msra.mxu0 0.0
    %3069 = vmatprep.mubr.f32.mxu0 0.0
    %3070 = vmatmul.mubr.f32.gmra.mrb[0].mxu0 %v2826
    %v3071 = vpop.f32.mrb[0].mxu0
    %v3072 = vadd.f32 %v3002, %v3071
    %v3073 = vpop.f32.mrb[0].mxu0
    %3074 = vdwg.mxu0
    %v3075 = vmul.f32 %v3072, 0.99999
    %v3076 = vmax.f32 %v3075, 0.0
    %v3077 = vld [vmem:[#allocation10] sm:$0xff]
    %v3078 = vld [vmem:[#allocation10 + $0x8] sm:$0xff]
    %v3079 = vld [vmem:[#allocation10 + $0x10] sm:$0xff]
    %v3080 = vld [vmem:[#allocation10 + $0x18] sm:$0xff]
    %v3081 = vld [vmem:[#allocation10 + $0x20] sm:$0xff]
    %v3082 = vld [vmem:[#allocation10 + $0x28] sm:$0xff]
    %v3083 = vld [vmem:[#allocation10 + $0x30] sm:$0xff]
    %v3084 = vld [vmem:[#allocation10 + $0x38] sm:$0xff]
    %v3085 = vld [vmem:[#allocation10 + $0x40] sm:$0xff]
    %v3086 = vld [vmem:[#allocation10 + $0x48] sm:$0xff]
    %v3087 = vld [vmem:[#allocation10 + $0x50] sm:$0xff]
    %v3088 = vld [vmem:[#allocation10 + $0x58] sm:$0xff]
    %v3089 = vld [vmem:[#allocation10 + $0x60] sm:$0xff]
    %v3090 = vld [vmem:[#allocation10 + $0x68] sm:$0xff]
    %v3091 = vld [vmem:[#allocation10 + $0x70] sm:$0xff]
    %v3092 = vld [vmem:[#allocation10 + $0x78] sm:$0xff]
    %v3093 = vld [vmem:[%s18] sm:$0x1]
    %v3095 = vlaneseq
    %v3096 = vshrl.u32 %v3095, 7
    %v3097 = vsub.s32 0, %v3096
    %v3098 = vrot.slane %v3093, %v3097
    %3100 = vmatprep.subr.mxu0 0.0
    %3101 = vmatpush1.msra.mxu0 %v3077
    %3102 = vmatprep.subr.mxu0 0.0
    %3103 = vmatpush1.msra.mxu0 %v3078
    %3104 = vmatprep.subr.mxu0 0.0
    %3105 = vmatpush1.msra.mxu0 %v3079
    %3106 = vmatprep.subr.mxu0 0.0
    %3107 = vmatpush1.msra.mxu0 %v3080
    %3108 = vmatprep.subr.mxu0 0.0
    %3109 = vmatpush1.msra.mxu0 %v3081
    %3110 = vmatprep.subr.mxu0 0.0
    %3111 = vmatpush1.msra.mxu0 %v3082
    %3112 = vmatprep.subr.mxu0 0.0
    %3113 = vmatpush1.msra.mxu0 %v3083
    %3114 = vmatprep.subr.mxu0 0.0
    %3115 = vmatpush1.msra.mxu0 %v3084
    %3116 = vmatprep.subr.mxu0 0.0
    %3117 = vmatpush1.msra.mxu0 %v3085
    %3118 = vmatprep.subr.mxu0 0.0
    %3119 = vmatpush1.msra.mxu0 %v3086
    %3120 = vmatprep.subr.mxu0 0.0
    %3121 = vmatpush1.msra.mxu0 %v3087
    %3122 = vmatprep.subr.mxu0 0.0
    %3123 = vmatpush1.msra.mxu0 %v3088
    %3124 = vmatprep.subr.mxu0 0.0
    %3125 = vmatpush1.msra.mxu0 %v3089
    %3126 = vmatprep.subr.mxu0 0.0
    %3127 = vmatpush1.msra.mxu0 %v3090
    %3128 = vmatprep.subr.mxu0 0.0
    %3129 = vmatpush1.msra.mxu0 %v3091
    %3130 = vmatprep.subr.mxu0 0.0
    %3131 = vmatpush1.msra.mxu0 %v3092
    %3132 = vmatprep.subr.mxu0 0.0
    %3133 = vmatpush1.msra.mxu0 0.0
    %3134 = vmatprep.subr.mxu0 0.0
    %3135 = vmatpush1.msra.mxu0 0.0
    %3136 = vmatprep.subr.mxu0 0.0
    %3137 = vmatpush1.msra.mxu0 0.0
    %3138 = vmatprep.subr.mxu0 0.0
    %3139 = vmatpush1.msra.mxu0 0.0
    %3140 = vmatprep.subr.mxu0 0.0
    %3141 = vmatpush1.msra.mxu0 0.0
    %3142 = vmatprep.subr.mxu0 0.0
    %3143 = vmatpush1.msra.mxu0 0.0
    %3144 = vmatprep.subr.mxu0 0.0
    %3145 = vmatpush1.msra.mxu0 0.0
    %3146 = vmatprep.subr.mxu0 0.0
    %3147 = vmatpush1.msra.mxu0 0.0
    %3148 = vmatprep.subr.mxu0 0.0
    %3149 = vmatpush1.msra.mxu0 0.0
    %3150 = vmatprep.subr.mxu0 0.0
    %3151 = vmatpush1.msra.mxu0 0.0
    %3152 = vmatprep.subr.mxu0 0.0
    %3153 = vmatpush1.msra.mxu0 0.0
    %3154 = vmatprep.subr.mxu0 0.0
    %3155 = vmatpush1.msra.mxu0 0.0
    %3156 = vmatprep.subr.mxu0 0.0
    %3157 = vmatpush1.msra.mxu0 0.0
    %3158 = vmatprep.subr.mxu0 0.0
    %3159 = vmatpush1.msra.mxu0 0.0
    %3160 = vmatprep.subr.mxu0 0.0
    %3161 = vmatpush1.msra.mxu0 0.0
    %3162 = vmatprep.subr.mxu0 0.0
    %3163 = vmatpush1.msra.mxu0 0.0
    %3164 = vmatprep.mubr.f32.mxu0 0.0
    %3165 = vmatmul.mubr.f32.gmra.mrb[0].mxu0 %v3076
    %v3166 = vpop.f32.mrb[0].mxu0
    %v3167 = vadd.f32 %v3098, %v3166
    %v3168 = vpop.f32.mrb[0].mxu0
    %3169 = vdwg.mxu0
    %v3170 = vmul.f32 %v3167, 0.999995
    %v3171 = vmax.f32 %v3170, 0.0
    %v3172 = vld [vmem:[%s19] sm:$0x1]
    %v3174 = vlaneseq
    %v3175 = vshrl.u32 %v3174, 7
    %v3176 = vsub.s32 0, %v3175
    %v3177 = vrot.slane %v3172, %v3176
    %3179 = vmatprep.subr.mxu0 0.0
    %3180 = vmatpush1.xpose.msra.mxu0 %v2649
    %3181 = vmatprep.subr.mxu0 0.0
    %3182 = vmatpush1.xpose.msra.mxu0 %v2650
    %3183 = vmatprep.subr.mxu0 0.0
    %3184 = vmatpush1.xpose.msra.mxu0 %v2651
    %3185 = vmatprep.subr.mxu0 0.0
    %3186 = vmatpush1.xpose.msra.mxu0 %v2652
    %3187 = vmatprep.subr.mxu0 0.0
    %3188 = vmatpush1.xpose.msra.mxu0 %v2653
    %3189 = vmatprep.subr.mxu0 0.0
    %3190 = vmatpush1.xpose.msra.mxu0 %v2654
    %3191 = vmatprep.subr.mxu0 0.0
    %3192 = vmatpush1.xpose.msra.mxu0 %v2655
    %3193 = vmatprep.subr.mxu0 0.0
    %3194 = vmatpush1.xpose.msra.mxu0 %v2656
    %3195 = vmatprep.subr.mxu0 0.0
    %3196 = vmatpush1.xpose.msra.mxu0 %v2657
    %3197 = vmatprep.subr.mxu0 0.0
    %3198 = vmatpush1.xpose.msra.mxu0 %v2658
    %3199 = vmatprep.subr.mxu0 0.0
    %3200 = vmatpush1.xpose.msra.mxu0 %v2659
    %3201 = vmatprep.subr.mxu0 0.0
    %3202 = vmatpush1.xpose.msra.mxu0 %v2660
    %3203 = vmatprep.subr.mxu0 0.0
    %3204 = vmatpush1.xpose.msra.mxu0 %v2661
    %3205 = vmatprep.subr.mxu0 0.0
    %3206 = vmatpush1.xpose.msra.mxu0 %v2662
    %3207 = vmatprep.subr.mxu0 0.0
    %3208 = vmatpush1.xpose.msra.mxu0 %v2663
    %3209 = vmatprep.subr.mxu0 0.0
    %3210 = vmatpush1.xpose.msra.mxu0 %v2664
    %3211 = vmatprep.subr.mxu0 0.0
    %3212 = vmatpush1.xpose.msra.mxu0 0.0
    %3213 = vmatprep.subr.mxu0 0.0
    %3214 = vmatpush1.xpose.msra.mxu0 0.0
    %3215 = vmatprep.subr.mxu0 0.0
    %3216 = vmatpush1.xpose.msra.mxu0 0.0
    %3217 = vmatprep.subr.mxu0 0.0
    %3218 = vmatpush1.xpose.msra.mxu0 0.0
    %3219 = vmatprep.subr.mxu0 0.0
    %3220 = vmatpush1.xpose.msra.mxu0 0.0
    %3221 = vmatprep.subr.mxu0 0.0
    %3222 = vmatpush1.xpose.msra.mxu0 0.0
    %3223 = vmatprep.subr.mxu0 0.0
    %3224 = vmatpush1.xpose.msra.mxu0 0.0
    %3225 = vmatprep.subr.mxu0 0.0
    %3226 = vmatpush1.xpose.msra.mxu0 0.0
    %3227 = vmatprep.subr.mxu0 0.0
    %3228 = vmatpush1.xpose.msra.mxu0 0.0
    %3229 = vmatprep.subr.mxu0 0.0
    %3230 = vmatpush1.xpose.msra.mxu0 0.0
    %3231 = vmatprep.subr.mxu0 0.0
    %3232 = vmatpush1.xpose.msra.mxu0 0.0
    %3233 = vmatprep.subr.mxu0 0.0
    %3234 = vmatpush1.xpose.msra.mxu0 0.0
    %3235 = vmatprep.subr.mxu0 0.0
    %3236 = vmatpush1.xpose.msra.mxu0 0.0
    %3237 = vmatprep.subr.mxu0 0.0
    %3238 = vmatpush1.xpose.msra.mxu0 0.0
    %3239 = vmatprep.subr.mxu0 0.0
    %3240 = vmatpush1.xpose.msra.mxu0 0.0
    %3241 = vmatprep.subr.mxu0 0.0
    %3242 = vmatpush1.xpose.msra.mxu0 0.0
    %3243 = vmatprep.mubr.f32.mxu0 0.0
    %3244 = vmatmul.mubr.f32.gmra.mrb[0].mxu0 %v3171
    %v3245 = vpop.f32.mrb[0].mxu0
    %v3246 = vadd.f32 %v3177, %v3245
    %v3247 = vpop.f32.mrb[0].mxu0
    %3248 = vdwg.mxu0
    %v3249 = vsub.f32 0.0, %v3246
    %v3250 = vmul.f32 %v3249, 1.442695
    %v3251 = vpow.pop %v3250
    %v3252 = vadd.f32 %v3251, 1.0
    %v3253 = vrcp.pop %v3252
    %v3254 = vmul.f32 1.0, %v3253
    %3255 = vst [vmem:[%s20] sm:$0xff] %v3254
    // Predicated region
    $region106: #{compgcn_conve_forward.1} parent=1 // pred_check
      _
    $region107: #{compgcn_conve_forward.1} parent=1 // pred_check_branch
      %3257 = sbr.rel (0) target = $region109
    $region108: #{compgcn_conve_forward.1} parent=1 // pred_region
      _
    $region109: #{compgcn_conve_forward.1} parent=1 // pred_fallthru
      _
    // Predicated region
    $region110: #{compgcn_conve_forward.1} parent=1 // pred_check
      _
    $region111: #{compgcn_conve_forward.1} parent=1 // pred_check_branch
      %3259 = sbr.rel (0) target = $region113
    $region112: #{compgcn_conve_forward.1} parent=1 // pred_region
      _
    $region113: #{compgcn_conve_forward.1} parent=1 // pred_fallthru
      _
    %3260 = vsyncpa [#allocation3], 1
    %3261 = vsyncpa [#allocation5], 1
    %3262 = vsyncpa [#allocation8], 1
    %3263 = vsyncpa [#allocation11], 1

</llo_original>
